<compile_context>
chip_gen: v5e
topology: v5e:2x2
jax: 0.10.0
libtpu: 0.0.40
codegen_flags: <defaults>
</compile_context>

<pallas_src>
import jax
import jax.numpy as jnp
from jax.experimental import pallas as pl
from jax.experimental.pallas import tpu as pltpu

LANE = 128      # TPU lane width; channel dims are padded to a multiple of this.
MID_PAD = 16    # left pad of the mid scratch -> bf16-sublane-aligned interior store.


def _round_up(x, m):
    return (x + m - 1) // m * m


def double_conv_kernel(x_ref, w1_ref, b1_ref, w2_ref, b2_ref, o_ref, mid_ref):
    # x_ref  : (1, 1, TH+4, W+2, Ci)  bf16, spatially pre-padded halo'd row tile
    # w1_ref : (9*Ci, Cm) bf16        im2col-flattened conv1 weight, BN scale folded
    # b1_ref : (1, Cm)    f32         per-channel shift (conv bias + BN folded)
    # w2_ref : (9*Cm, Co) bf16
    # b2_ref : (1, Co)    f32
    # o_ref  : (1, TH, W, Co) f32     lane-dense output row tile
    # mid_ref: VMEM scratch (TH+2, 2*MID_PAD + W, Cm) bf16
    TH, W, Co = o_ref.shape[1], o_ref.shape[2], o_ref.shape[3]
    Ci = x_ref.shape[4]
    Cm = w1_ref.shape[1]
    P = MID_PAD
    t = pl.program_id(1)
    H_img = pl.num_programs(1) * TH   # total image height (H divisible by TH)

    # ---- conv1: row-im2col (3 W-shifts only) + 3 accumulating MXU dots ----
    rows1 = jnp.concatenate(
        [x_ref[0, 0, :, kx:kx + W, :] for kx in range(3)], axis=-1)   # (TH+4, W, 3Ci)
    M1 = (TH + 2) * W
    acc1 = None
    for ky in range(3):
        p = rows1[ky:ky + TH + 2].reshape(M1, 3 * Ci)                  # bf16 patches
        d = jnp.dot(p, w1_ref[ky * 3 * Ci:(ky + 1) * 3 * Ci, :],
                    preferred_element_type=jnp.float32)
        acc1 = d if acc1 is None else acc1 + d
    y1 = jnp.maximum(acc1 + b1_ref[...], 0.0)          # folded BN shift + ReLU (f32)

    # Zero the mid rows that fall outside the image (conv2 zero padding) — this is
    # the only place the tile's first/last row halo differs at the image boundary.
    mrow = t * TH - 1 + jax.lax.broadcasted_iota(jnp.int32, (TH + 2, 1), 0)
    rmask = (mrow >= 0) & (mrow < H_img)                               # (TH+2, 1)
    y1 = y1.reshape(TH + 2, W, Cm)
    y1 = jnp.where(rmask[:, :, None], y1, 0.0).astype(jnp.bfloat16)

    # ---- stage mid activation in the scratch ----
    # Interior store starts at sublane offset P (multiple of 16 -> dense bf16 store);
    # only the two 1-column zero halos are masked stores.  Invariant: conv2 below
    # reads exactly columns [P-1, P+W+1), i.e. only what is written here.
    zcol = jnp.zeros((TH + 2, 1, Cm), jnp.bfloat16)
    mid_ref[:, P - 1:P, :] = zcol
    mid_ref[:, P + W:P + W + 1, :] = zcol
    mid_ref[:, P:P + W, :] = y1

    # ---- conv2: same row-im2col from the scratch + 3 accumulating dots ----
    rows2 = jnp.concatenate(
        [mid_ref[:, P - 1 + kx:P - 1 + kx + W, :] for kx in range(3)], axis=-1)
    M2 = TH * W
    acc2 = None
    for ky in range(3):
        p = rows2[ky:ky + TH].reshape(M2, 3 * Cm)
        d = jnp.dot(p, w2_ref[ky * 3 * Cm:(ky + 1) * 3 * Cm, :],
                    preferred_element_type=jnp.float32)
        acc2 = d if acc2 is None else acc2 + d
    y2 = jnp.maximum(acc2 + b2_ref[...], 0.0)
    o_ref[0] = y2.reshape(TH, W, Co).astype(o_ref.dtype)


def fold_bn_into_conv(w_oihw, bias, gamma, beta, mean, var, eps=1e-5):
    """Fold eval-mode BatchNorm into the conv: (scaled OIHW weight, per-channel shift)."""
    scale = gamma / jnp.sqrt(var + eps)                  # (Cout,)
    shift = beta + (bias - mean) * scale                 # (Cout,)
    return w_oihw * scale[:, None, None, None], shift


def _prep_weight(w_oihw, cin_pad, cout_pad):
    """OIHW -> im2col-flattened (9*cin_pad, cout_pad) bf16, channels zero-padded."""
    cout, cin, kh, kw = w_oihw.shape
    w = jnp.transpose(w_oihw, (2, 3, 1, 0))              # (kh, kw, cin, cout)
    w = jnp.pad(w, ((0, 0), (0, 0), (0, cin_pad - cin), (0, cout_pad - cout)))
    return w.reshape(kh * kw * cin_pad, cout_pad).astype(jnp.bfloat16)


def _prep_shift(shift, cpad):
    return jnp.pad(shift, (0, cpad - shift.shape[0]))[None, :].astype(jnp.float32)


def _pick_row_tile(H, W, ci_p, cm_p, co_p, budget_bytes=12 * 1024 * 1024):
    """Largest divisor-of-H row tile fitting a v5e-conservative VMEM budget,
    preferring >= 2 tiles per image so v7x's two TensorCores get work at B=1."""
    def vmem_bytes(th):
        x_t = (th + 4) * (W + 2) * ci_p * 2               # bf16 input tile
        o_t = th * W * co_p * 4                           # f32 output tile
        w_all = 9 * (ci_p * cm_p + cm_p * co_p) * 2 + (cm_p + co_p) * 4
        rows1 = (th + 4) * W * 3 * ci_p * 2
        rows2 = (th + 2) * W * 3 * cm_p * 2
        acc = (th + 2) * W * cm_p * 4 + th * W * co_p * 4
        mid = (th + 2) * (2 * MID_PAD + W) * cm_p * 2
        return 2 * (x_t + o_t) + 2 * w_all + rows1 + rows2 + acc + mid
    divisors = [d for d in range(H, 0, -1) if H % d == 0]
    fitting = [d for d in divisors if vmem_bytes(d) <= budget_bytes] or [divisors[-1]]
    th = fitting[0]
    if th == H and H >= 16:
        smaller = [d for d in fitting if d < H]
        if smaller:
            th = smaller[0]
    return th


def double_conv_pallas(x_nchw, params, eps=1e-5):
    """x_nchw: (B, Cin, H, W) f32 -> (B, Cout, H, W) f32 (eval-mode DoubleConv)."""
    B, Cin, H, W = x_nchw.shape
    Cmid = params["w1"].shape[0]
    Cout = params["w2"].shape[0]
    Ci_p = _round_up(Cin, LANE)
    Cm_p = _round_up(Cmid, LANE)
    Co_p = _round_up(Cout, LANE)

    w1s, sh1 = fold_bn_into_conv(params["w1"], params["b1"], params["g1"],
                                 params["beta1"], params["mean1"], params["var1"], eps)
    w2s, sh2 = fold_bn_into_conv(params["w2"], params["b2"], params["g2"],
                                 params["beta2"], params["mean2"], params["var2"], eps)
    w1f = _prep_weight(w1s, Ci_p, Cm_p)       # bf16 MXU operands
    w2f = _prep_weight(w2s, Cm_p, Co_p)
    b1f = _prep_shift(sh1, Cm_p)              # f32 shifts
    b2f = _prep_shift(sh2, Co_p)

    TH = _pick_row_tile(H, W, Ci_p, Cm_p, Co_p)
    nt = H // TH

    # NCHW -> NHWC bf16 with a 2-row / 1-col zero halo and channel pad, then
    # materialize non-overlapping halo'd row tiles (safe Blocked index maps).
    x = jnp.transpose(x_nchw, (0, 2, 3, 1)).astype(jnp.bfloat16)
    x = jnp.pad(x, ((0, 0), (2, 2), (1, 1), (0, Ci_p - Cin)))
    x_tiles = jnp.stack([x[:, t * TH:t * TH + TH + 4] for t in range(nt)], axis=1)
    # x_tiles: (B, nt, TH+4, W+2, Ci_p)

    out = pl.pallas_call(
        double_conv_kernel,
        out_shape=jax.ShapeDtypeStruct((B, H, W, Co_p), jnp.float32),
        grid=(B, nt),
        in_specs=[
            pl.BlockSpec((1, 1, TH + 4, W + 2, Ci_p), lambda b, t: (b, t, 0, 0, 0)),
            pl.BlockSpec((9 * Ci_p, Cm_p), lambda b, t: (0, 0)),
            pl.BlockSpec((1, Cm_p), lambda b, t: (0, 0)),
            pl.BlockSpec((9 * Cm_p, Co_p), lambda b, t: (0, 0)),
            pl.BlockSpec((1, Co_p), lambda b, t: (0, 0)),
        ],
        out_specs=pl.BlockSpec((1, TH, W, Co_p), lambda b, t: (b, t, 0, 0)),
        scratch_shapes=[pltpu.VMEM((TH + 2, 2 * MID_PAD + W, Cm_p), jnp.bfloat16)],
        compiler_params=pltpu.CompilerParams(
            dimension_semantics=("parallel", "parallel"),
            vmem_limit_bytes=32 * 1024 * 1024),
    )(x_tiles, w1f, b1f, w2f, b2f)

    # Drop the padded output channels and go back to NCHW.
    return jnp.transpose(out[..., :Cout], (0, 3, 1, 2))


def make_params(key, cin, cout):
    cmid = cout // 2
    ks = jax.random.split(key, 12)
    w1 = 0.2 * jax.random.normal(ks[0], (cmid, cin, 3, 3), jnp.float32)   # OIHW
    b1 = 0.1 * jax.random.normal(ks[1], (cmid,), jnp.float32)
    g1 = 1.0 + 0.1 * jax.random.normal(ks[2], (cmid,), jnp.float32)
    beta1 = 0.1 * jax.random.normal(ks[3], (cmid,), jnp.float32)
    mean1 = 0.1 * jax.random.normal(ks[4], (cmid,), jnp.float32)
    var1 = 1.0 + 0.1 * jnp.abs(jax.random.normal(ks[5], (cmid,), jnp.float32))

    w2 = 0.2 * jax.random.normal(ks[6], (cout, cmid, 3, 3), jnp.float32)  # OIHW
    b2 = 0.1 * jax.random.normal(ks[7], (cout,), jnp.float32)
    g2 = 1.0 + 0.1 * jax.random.normal(ks[8], (cout,), jnp.float32)
    beta2 = 0.1 * jax.random.normal(ks[9], (cout,), jnp.float32)
    mean2 = 0.1 * jax.random.normal(ks[10], (cout,), jnp.float32)
    var2 = 1.0 + 0.1 * jnp.abs(jax.random.normal(ks[11], (cout,), jnp.float32))

    return dict(w1=w1, b1=b1, g1=g1, beta1=beta1, mean1=mean1, var1=var1,
                w2=w2, b2=b2, g2=g2, beta2=beta2, mean2=mean2, var2=var2)


def reference_double_conv(x, p, eps=1e-5):
    """Pure-JAX f32 NCHW reference (matches PyTorch eval-mode DoubleConv)."""
    dn = ("NCHW", "OIHW", "NCHW")
    y = jax.lax.conv_general_dilated(x, p["w1"], (1, 1), [(1, 1), (1, 1)],
                                     dimension_numbers=dn)
    y = y + p["b1"][None, :, None, None]
    y = (y - p["mean1"][None, :, None, None]) / jnp.sqrt(
        p["var1"][None, :, None, None] + eps)
    y = y * p["g1"][None, :, None, None] + p["beta1"][None, :, None, None]
    y = jnp.maximum(y, 0.0)

    y = jax.lax.conv_general_dilated(y, p["w2"], (1, 1), [(1, 1), (1, 1)],
                                     dimension_numbers=dn)
    y = y + p["b2"][None, :, None, None]
    y = (y - p["mean2"][None, :, None, None]) / jnp.sqrt(
        p["var2"][None, :, None, None] + eps)
    y = y * p["g2"][None, :, None, None] + p["beta2"][None, :, None, None]
    return jnp.maximum(y, 0.0)


if __name__ == "__main__":
    B, Cin, Cout, H, W = 2, 4, 8, 16, 16
    key = jax.random.PRNGKey(0)
    kx, kp = jax.random.split(key)
    x = jax.random.normal(kx, (B, Cin, H, W), jnp.float32)
    p = make_params(kp, Cin, Cout)

    out = double_conv_pallas(x, p)
    out = jax.block_until_ready(out)

    ref = reference_double_conv(x, p)
    assert out.shape == (B, Cout, H, W)
    err = jnp.max(jnp.abs(out - ref))
    # bf16 MXU operands with f32 accumulation: allow bf16-level error.
    assert jnp.allclose(out, ref, atol=0.15, rtol=0.05), f"max abs err = {err}"

    print("KERNEL_OK")
</pallas_src>

<mosaic_0001>
module attributes {stable_mosaic.version = 11 : i64} {
  func.func @double_conv_kernel(%arg0: i32, %arg1: i32, %arg2: memref<1x1x12x18x128xbf16, #tpu.memory_space<vmem>>, %arg3: memref<1152x128xbf16, #tpu.memory_space<vmem>>, %arg4: memref<1x128xf32, #tpu.memory_space<vmem>>, %arg5: memref<1152x128xbf16, #tpu.memory_space<vmem>>, %arg6: memref<1x128xf32, #tpu.memory_space<vmem>>, %arg7: memref<1x8x16x128xf32, #tpu.memory_space<vmem>>, %arg8: memref<10x48x128xbf16, #tpu.memory_space<vmem>>) attributes {dimension_semantics = [#tpu.dimension_semantics<parallel>, #tpu.dimension_semantics<parallel>], iteration_bounds = array<i64: 2, 2>, scalar_prefetch = 0 : i64, scratch_operands = 1 : i64, tpu.core_type = #tpu.core_type<tc>, window_params = [{transform_indices = @transform_0, window_bounds = array<i64: 1, 1, 12, 18, 128>}, {pipeline_mode = #tpu.pipeline_mode<synchronous>, transform_indices = @transform_1, window_bounds = array<i64: 1152, 128>}, {pipeline_mode = #tpu.pipeline_mode<synchronous>, transform_indices = @transform_2, window_bounds = array<i64: 1, 128>}, {pipeline_mode = #tpu.pipeline_mode<synchronous>, transform_indices = @transform_3, window_bounds = array<i64: 1152, 128>}, {pipeline_mode = #tpu.pipeline_mode<synchronous>, transform_indices = @transform_4, window_bounds = array<i64: 1, 128>}, {transform_indices = @transform_5, window_bounds = array<i64: 1, 8, 16, 128>}]} {
    %c0 = arith.constant 0 : index
    %c0_0 = arith.constant 0 : index
    %c0_1 = arith.constant 0 : index
    %c0_2 = arith.constant 0 : index
    %c0_3 = arith.constant 0 : index
    %0 = vector.load %arg2[%c0, %c0_0, %c0_1, %c0_2, %c0_3] : memref<1x1x12x18x128xbf16, #tpu.memory_space<vmem>>, vector<1x1x12x16x128xbf16>
    %1 = vector.shape_cast %0 : vector<1x1x12x16x128xbf16> to vector<12x16x128xbf16>
    %c0_4 = arith.constant 0 : index
    %c0_5 = arith.constant 0 : index
    %c0_6 = arith.constant 0 : index
    %c1 = arith.constant 1 : index
    %c0_7 = arith.constant 0 : index
    %2 = vector.load %arg2[%c0_4, %c0_5, %c0_6, %c1, %c0_7] : memref<1x1x12x18x128xbf16, #tpu.memory_space<vmem>>, vector<1x1x12x16x128xbf16>
    %3 = vector.shape_cast %2 : vector<1x1x12x16x128xbf16> to vector<12x16x128xbf16>
    %c0_8 = arith.constant 0 : index
    %c0_9 = arith.constant 0 : index
    %c0_10 = arith.constant 0 : index
    %c2 = arith.constant 2 : index
    %c0_11 = arith.constant 0 : index
    %4 = vector.load %arg2[%c0_8, %c0_9, %c0_10, %c2, %c0_11] : memref<1x1x12x18x128xbf16, #tpu.memory_space<vmem>>, vector<1x1x12x16x128xbf16>
    %5 = vector.shape_cast %4 : vector<1x1x12x16x128xbf16> to vector<12x16x128xbf16>
    %6 = tpu.concatenate %1, %3, %5 in 2 : vector<12x16x128xbf16>, vector<12x16x128xbf16>, vector<12x16x128xbf16> -> vector<12x16x384xbf16>
    %7 = vector.extract_strided_slice %6 {offsets = [0, 0, 0], sizes = [10, 16, 384], strides = [1, 1, 1]} : vector<12x16x384xbf16> to vector<10x16x384xbf16>
    %8 = vector.shape_cast %7 : vector<10x16x384xbf16> to vector<160x384xbf16>
    %c0_12 = arith.constant 0 : index
    %c0_13 = arith.constant 0 : index
    %9 = vector.load %arg3[%c0_12, %c0_13] : memref<1152x128xbf16, #tpu.memory_space<vmem>>, vector<384x128xbf16>
    %cst = arith.constant dense<0.000000e+00> : vector<160x128xf32>
    %10 = tpu.matmul %8, %9, %cst {dimension_numbers = #tpu.dot_dimension_numbers<[1], [0], [0], [1], [0, 0, 1, 1], [], []>} : vector<160x384xbf16>, vector<384x128xbf16>, vector<160x128xf32> -> vector<160x128xf32>
    %11 = vector.extract_strided_slice %6 {offsets = [1, 0, 0], sizes = [10, 16, 384], strides = [1, 1, 1]} : vector<12x16x384xbf16> to vector<10x16x384xbf16>
    %12 = vector.shape_cast %11 : vector<10x16x384xbf16> to vector<160x384xbf16>
    %c384 = arith.constant 384 : index
    %c0_14 = arith.constant 0 : index
    %13 = vector.load %arg3[%c384, %c0_14] : memref<1152x128xbf16, #tpu.memory_space<vmem>>, vector<384x128xbf16>
    %cst_15 = arith.constant dense<0.000000e+00> : vector<160x128xf32>
    %14 = tpu.matmul %12, %13, %cst_15 {dimension_numbers = #tpu.dot_dimension_numbers<[1], [0], [0], [1], [0, 0, 1, 1], [], []>} : vector<160x384xbf16>, vector<384x128xbf16>, vector<160x128xf32> -> vector<160x128xf32>
    %15 = arith.addf %10, %14 : vector<160x128xf32>
    %16 = vector.extract_strided_slice %6 {offsets = [2, 0, 0], sizes = [10, 16, 384], strides = [1, 1, 1]} : vector<12x16x384xbf16> to vector<10x16x384xbf16>
    %17 = vector.shape_cast %16 : vector<10x16x384xbf16> to vector<160x384xbf16>
    %c768 = arith.constant 768 : index
    %c0_16 = arith.constant 0 : index
    %18 = vector.load %arg3[%c768, %c0_16] : memref<1152x128xbf16, #tpu.memory_space<vmem>>, vector<384x128xbf16>
    %cst_17 = arith.constant dense<0.000000e+00> : vector<160x128xf32>
    %19 = tpu.matmul %17, %18, %cst_17 {dimension_numbers = #tpu.dot_dimension_numbers<[1], [0], [0], [1], [0, 0, 1, 1], [], []>} : vector<160x384xbf16>, vector<384x128xbf16>, vector<160x128xf32> -> vector<160x128xf32>
    %20 = arith.addf %15, %19 : vector<160x128xf32>
    %c0_18 = arith.constant 0 : index
    %c0_19 = arith.constant 0 : index
    %21 = vector.load %arg4[%c0_18, %c0_19] : memref<1x128xf32, #tpu.memory_space<vmem>>, vector<1x128xf32>
    %22 = vector.broadcast %21 : vector<1x128xf32> to vector<160x128xf32>
    %23 = arith.addf %20, %22 : vector<160x128xf32>
    %cst_20 = arith.constant 0.000000e+00 : f32
    %24 = vector.broadcast %cst_20 : f32 to vector<160x128xf32>
    %25 = arith.maximumf %23, %24 : vector<160x128xf32>
    %c8_i32 = arith.constant 8 : i32
    %26 = arith.muli %arg1, %c8_i32 : i32
    %c1_i32 = arith.constant 1 : i32
    %27 = arith.subi %26, %c1_i32 : i32
    %28 = tpu.iota {dimensions = array<i32: 0>} : vector<10x1xi32>
    %29 = vector.broadcast %27 : i32 to vector<10x1xi32>
    %30 = arith.addi %29, %28 : vector<10x1xi32>
    %c0_i32 = arith.constant 0 : i32
    %31 = vector.broadcast %c0_i32 : i32 to vector<10x1xi32>
    %32 = arith.cmpi sge, %30, %31 : vector<10x1xi32>
    %c16_i32 = arith.constant 16 : i32
    %33 = vector.broadcast %c16_i32 : i32 to vector<10x1xi32>
    %34 = arith.cmpi slt, %30, %33 : vector<10x1xi32>
    %35 = arith.andi %32, %34 : vector<10x1xi1>
    %36 = vector.shape_cast %25 : vector<160x128xf32> to vector<10x16x128xf32>
    %37 = vector.shape_cast %35 : vector<10x1xi1> to vector<10x1x1xi1>
    %cst_21 = arith.constant 0.000000e+00 : f32
    %38 = vector.shape_cast %37 : vector<10x1x1xi1> to vector<10x1x1xi1>
    %39 = vector.broadcast %38 : vector<10x1x1xi1> to vector<10x16x128xi1>
    %40 = vector.broadcast %cst_21 : f32 to vector<10x16x128xf32>
    %41 = arith.select %39, %36, %40 : vector<10x16x128xi1>, vector<10x16x128xf32>
    %42 = arith.truncf %41 : vector<10x16x128xf32> to vector<10x16x128xbf16>
    %cst_22 = arith.constant 0.000000e+00 : bf16
    %43 = vector.broadcast %cst_22 : bf16 to vector<10x1x128xbf16>
    %c0_23 = arith.constant 0 : index
    %c15 = arith.constant 15 : index
    %c0_24 = arith.constant 0 : index
    %44 = vector.load %arg8[%c0_23, %c15, %c0_24] : memref<10x48x128xbf16, #tpu.memory_space<vmem>>, vector<10x1x128xbf16>
    tpu.vector_store %arg8[%c0_23, %c15, %c0_24], %43 {strides = array<i32>} : memref<10x48x128xbf16, #tpu.memory_space<vmem>>, vector<10x1x128xbf16>,
    %c0_25 = arith.constant 0 : index
    %c32 = arith.constant 32 : index
    %c0_26 = arith.constant 0 : index
    %45 = vector.load %arg8[%c0_25, %c32, %c0_26] : memref<10x48x128xbf16, #tpu.memory_space<vmem>>, vector<10x1x128xbf16>
    tpu.vector_store %arg8[%c0_25, %c32, %c0_26], %43 {strides = array<i32>} : memref<10x48x128xbf16, #tpu.memory_space<vmem>>, vector<10x1x128xbf16>,
    %c0_27 = arith.constant 0 : index
    %c16 = arith.constant 16 : index
    %c0_28 = arith.constant 0 : index
    %46 = vector.load %arg8[%c0_27, %c16, %c0_28] : memref<10x48x128xbf16, #tpu.memory_space<vmem>>, vector<10x16x128xbf16>
    tpu.vector_store %arg8[%c0_27, %c16, %c0_28], %42 {strides = array<i32>} : memref<10x48x128xbf16, #tpu.memory_space<vmem>>, vector<10x16x128xbf16>,
    %c0_29 = arith.constant 0 : index
    %c15_30 = arith.constant 15 : index
    %c0_31 = arith.constant 0 : index
    %47 = vector.load %arg8[%c0_29, %c15_30, %c0_31] : memref<10x48x128xbf16, #tpu.memory_space<vmem>>, vector<10x16x128xbf16>
    %c0_32 = arith.constant 0 : index
    %c16_33 = arith.constant 16 : index
    %c0_34 = arith.constant 0 : index
    %48 = vector.load %arg8[%c0_32, %c16_33, %c0_34] : memref<10x48x128xbf16, #tpu.memory_space<vmem>>, vector<10x16x128xbf16>
    %c0_35 = arith.constant 0 : index
    %c17 = arith.constant 17 : index
    %c0_36 = arith.constant 0 : index
    %49 = vector.load %arg8[%c0_35, %c17, %c0_36] : memref<10x48x128xbf16, #tpu.memory_space<vmem>>, vector<10x16x128xbf16>
    %50 = tpu.concatenate %47, %48, %49 in 2 : vector<10x16x128xbf16>, vector<10x16x128xbf16>, vector<10x16x128xbf16> -> vector<10x16x384xbf16>
    %51 = vector.extract_strided_slice %50 {offsets = [0, 0, 0], sizes = [8, 16, 384], strides = [1, 1, 1]} : vector<10x16x384xbf16> to vector<8x16x384xbf16>
    %52 = vector.shape_cast %51 : vector<8x16x384xbf16> to vector<128x384xbf16>
    %c0_37 = arith.constant 0 : index
    %c0_38 = arith.constant 0 : index
    %53 = vector.load %arg5[%c0_37, %c0_38] : memref<1152x128xbf16, #tpu.memory_space<vmem>>, vector<384x128xbf16>
    %cst_39 = arith.constant dense<0.000000e+00> : vector<128x128xf32>
    %54 = tpu.matmul %52, %53, %cst_39 {dimension_numbers = #tpu.dot_dimension_numbers<[1], [0], [0], [1], [0, 0, 1, 1], [], []>} : vector<128x384xbf16>, vector<384x128xbf16>, vector<128x128xf32> -> vector<128x128xf32>
    %55 = vector.extract_strided_slice %50 {offsets = [1, 0, 0], sizes = [8, 16, 384], strides = [1, 1, 1]} : vector<10x16x384xbf16> to vector<8x16x384xbf16>
    %56 = vector.shape_cast %55 : vector<8x16x384xbf16> to vector<128x384xbf16>
    %c384_40 = arith.constant 384 : index
    %c0_41 = arith.constant 0 : index
    %57 = vector.load %arg5[%c384_40, %c0_41] : memref<1152x128xbf16, #tpu.memory_space<vmem>>, vector<384x128xbf16>
    %cst_42 = arith.constant dense<0.000000e+00> : vector<128x128xf32>
    %58 = tpu.matmul %56, %57, %cst_42 {dimension_numbers = #tpu.dot_dimension_numbers<[1], [0], [0], [1], [0, 0, 1, 1], [], []>} : vector<128x384xbf16>, vector<384x128xbf16>, vector<128x128xf32> -> vector<128x128xf32>
    %59 = arith.addf %54, %58 : vector<128x128xf32>
    %60 = vector.extract_strided_slice %50 {offsets = [2, 0, 0], sizes = [8, 16, 384], strides = [1, 1, 1]} : vector<10x16x384xbf16> to vector<8x16x384xbf16>
    %61 = vector.shape_cast %60 : vector<8x16x384xbf16> to vector<128x384xbf16>
    %c768_43 = arith.constant 768 : index
    %c0_44 = arith.constant 0 : index
    %62 = vector.load %arg5[%c768_43, %c0_44] : memref<1152x128xbf16, #tpu.memory_space<vmem>>, vector<384x128xbf16>
    %cst_45 = arith.constant dense<0.000000e+00> : vector<128x128xf32>
    %63 = tpu.matmul %61, %62, %cst_45 {dimension_numbers = #tpu.dot_dimension_numbers<[1], [0], [0], [1], [0, 0, 1, 1], [], []>} : vector<128x384xbf16>, vector<384x128xbf16>, vector<128x128xf32> -> vector<128x128xf32>
    %64 = arith.addf %59, %63 : vector<128x128xf32>
    %c0_46 = arith.constant 0 : index
    %c0_47 = arith.constant 0 : index
    %65 = vector.load %arg6[%c0_46, %c0_47] : memref<1x128xf32, #tpu.memory_space<vmem>>, vector<1x128xf32>
    %66 = vector.broadcast %65 : vector<1x128xf32> to vector<128x128xf32>
    %67 = arith.addf %64, %66 : vector<128x128xf32>
    %cst_48 = arith.constant 0.000000e+00 : f32
    %68 = vector.broadcast %cst_48 : f32 to vector<128x128xf32>
    %69 = arith.maximumf %67, %68 : vector<128x128xf32>
    %70 = vector.shape_cast %69 : vector<128x128xf32> to vector<8x16x128xf32>
    %c0_49 = arith.constant 0 : index
    %c0_50 = arith.constant 0 : index
    %c0_51 = arith.constant 0 : index
    %c0_52 = arith.constant 0 : index
    %71 = vector.load %arg7[%c0_49, %c0_50, %c0_51, %c0_52] : memref<1x8x16x128xf32, #tpu.memory_space<vmem>>, vector<1x8x16x128xf32>
    %72 = vector.shape_cast %71 : vector<1x8x16x128xf32> to vector<8x16x128xf32>
    %73 = vector.shape_cast %70 : vector<8x16x128xf32> to vector<1x8x16x128xf32>
    tpu.vector_store %arg7[%c0_49, %c0_50, %c0_51, %c0_52], %73 {strides = array<i32>} : memref<1x8x16x128xf32, #tpu.memory_space<vmem>>, vector<1x8x16x128xf32>,
    return
  }
  func.func @transform_0(%arg0: i32, %arg1: i32) -> (i32, i32, i32, i32, i32) {
    %c0_i32 = arith.constant 0 : i32
    %c0_i32_0 = arith.constant 0 : i32
    %c0_i32_1 = arith.constant 0 : i32
    %c0_i32_2 = arith.constant 0 : i32
    return %arg0, %arg1, %c0_i32, %c0_i32_0, %c0_i32_1 : i32, i32, i32, i32, i32
  }
  func.func @transform_1(%arg0: i32, %arg1: i32) -> (i32, i32) {
    %c0_i32 = arith.constant 0 : i32
    %c0_i32_0 = arith.constant 0 : i32
    %c0_i32_1 = arith.constant 0 : i32
    return %c0_i32, %c0_i32_0 : i32, i32
  }
  func.func @transform_2(%arg0: i32, %arg1: i32) -> (i32, i32) {
    %c0_i32 = arith.constant 0 : i32
    %c0_i32_0 = arith.constant 0 : i32
    %c0_i32_1 = arith.constant 0 : i32
    return %c0_i32, %c0_i32_0 : i32, i32
  }
  func.func @transform_3(%arg0: i32, %arg1: i32) -> (i32, i32) {
    %c0_i32 = arith.constant 0 : i32
    %c0_i32_0 = arith.constant 0 : i32
    %c0_i32_1 = arith.constant 0 : i32
    return %c0_i32, %c0_i32_0 : i32, i32
  }
  func.func @transform_4(%arg0: i32, %arg1: i32) -> (i32, i32) {
    %c0_i32 = arith.constant 0 : i32
    %c0_i32_0 = arith.constant 0 : i32
    %c0_i32_1 = arith.constant 0 : i32
    return %c0_i32, %c0_i32_0 : i32, i32
  }
  func.func @transform_5(%arg0: i32, %arg1: i32) -> (i32, i32, i32, i32) {
    %c0_i32 = arith.constant 0 : i32
    %c0_i32_0 = arith.constant 0 : i32
    %c0_i32_1 = arith.constant 0 : i32
    return %arg0, %arg1, %c0_i32, %c0_i32_0 : i32, i32, i32, i32
  }
}

</mosaic_0001>

<llo_original>
// kernel: tpu_custom_call.1
$region0: #{tpu_custom_call.1}
  #allocation0 [shape = 'u32[]', space=smem, size = 0x4, offset = 0x4, fixed_abs, tag = 'smem constant byte address 0x4 - core index']
  #allocation1 [shape = 'u32[72,128]{1,0:T(1,128)}', space=vmem, size = 0x9000, scoped, tag = 'internal scratch']
  #allocation2 [shape = 'bf16[10,48,128]{2,1,0:T(8,128)(2,1)}', space=vmem, size = 0x1e000, scoped, tag = 'scratch operand']
  %s0 = inlined_call_operand.vmem [shape: bf16[2,2,12,18,128], index: 0, kind: input, shape index: {}]
  %s1 = inlined_call_operand.vmem [shape: bf16[1152,128], index: 1, kind: input, shape index: {}]
  %s2 = inlined_call_operand.vmem [shape: f32[1,128], index: 2, kind: input, shape index: {}]
  %s3 = inlined_call_operand.hbm [shape: bf16[1152,128], index: 3, kind: input, shape index: {}]
  %s4 = inlined_call_operand.vmem [shape: f32[1,128], index: 4, kind: input, shape index: {}]
  %s5 = inlined_call_operand.hbm [shape: f32[2,16,16,128], index: 5, kind: output, shape index: {}]
  %s6 = sld [smem:[#allocation0]]
  $region57: #{tpu_custom_call.1} parent=0
    _
  %s8 = ssub.s32 1, %s6
  %s9 = scalar_select 0, %s8, %s6
  $region1: #{tpu_custom_call.1} parent=0
    #allocation3 [shape = 'u8[294912]{0}', space=vmem, size = 0x48000, scoped, tag = 'input window, operand 3, single buffered']
    #allocation4 [shape = 's32[2]{0}', space=sflag, size = 0x8, scoped, tag = 'scoped memory for tpu_custom_call.1']
    #allocation5 [shape = 's32[2]{0}', space=sflag, size = 0x8, scoped, tag = 'scoped memory for tpu_custom_call.1']
    #allocation6 [shape = 'u8[131072]{0}', space=vmem, size = 0x20000, scoped, tag = 'output window, operand 0']
    %10 = vsyncpa [#allocation4], 0
    %11 = vsyncpa [#allocation5], 0
    %s12 = scalar_lea.sflag [#allocation5], 1
    %13 = vsyncpa %s12, 0
    loop: start=0, step=1, limit=6
    $region2: #{tpu_custom_call.1} parent=1 // loop_pre_header
      _
    $region3: #{tpu_custom_call.1} parent=1 // loop_header
      %s15 = sphi 0, %s19
      %p16 = scmp.ge.s32.totalorder %s15, 6
      %s22 = sphi 0, %s34
      %s23 = sphi 0, %s30
      %s24 = sphi 0, %s22
      %s25 = sphi 0, %s23
      %s26 = sphi 0, %s24
      %s27 = sphi 0, %s25
      %s39 = sphi 0, %s41
      %s42 = sphi 0, %s39
      %s43 = sphi 0, %s42
      %s59 = sphi 0, %s43
      %s63 = sphi 0, %s63
      %s65 = sphi 0, %s63
      %s66 = sphi 0, %s65
      %s80 = sphi 0, %s66
      %s84 = sphi 0, %s84
      %s86 = sphi 0, %s84
      %s87 = sphi 0, %s86
      %s101 = sphi 0, %s87
      %s105 = sphi 0, %s105
      %s107 = sphi 0, %s105
      %s108 = sphi 0, %s107
      %s122 = sphi 0, %s108
      %s126 = sphi 0, %s126
      %s128 = sphi 0, %s126
      %s129 = sphi 0, %s128
      %s143 = sphi 0, %s129
      %s151 = sphi 0, %s153
      %s154 = sphi 0, %s151
      %s155 = sphi 0, %s154
      %s171 = sphi 0, %s155
    $region4: #{tpu_custom_call.1} parent=1 // loop_header_branch
      %18 = sbr.rel (%p16) target = $region8
    $region5: #{tpu_custom_call.1} parent=1 // loop_body
      %s20 = ssub.s32 %s15, 1
      %s21 = ssub.s32 %s15, 2
      %s28 = sadd.s32 1, %s23
      %p29 = scmp.ge.s32.totalorder %s28, 2
      %s30 = scalar_select %p29, 0, %s28
      %s31 = sadd.s32 1, %s22
      %s32 = scalar_select %p29, %s31, %s22
      %p33 = scmp.ge.s32.totalorder %s32, 2
      %s34 = scalar_select %p33, 0, %s32
      %s35 = ssub.s32 %s22, %s34
      %s36 = ssub.s32 %s23, %s30
      %s37 = sor.u32 %s35, %s36
      %p38 = scmp.eq.s32.totalorder %s37, 0
      %s40 = sadd.s32 %s39, 1
      %s41 = scalar_select %p38, %s39, %s40
      %p44 = pneg %p38
      %p45 = scmp.eq.s32.totalorder %s15, 3
      %p46 = por %p44, %p45
      %p47 = scmp.ne.s32.totalorder %s39, %s42
      %p48 = scmp.eq.s32.totalorder %s15, 0
      %p49 = por %p47, %p48
      %p50 = scmp.ne.s32.totalorder %s39, %s42
      %p51 = scmp.eq.s32.totalorder %s20, 3
      %p52 = por %p50, %p51
      %p53 = scmp.ne.s32.totalorder %s42, %s43
      %p54 = scmp.eq.s32.totalorder %s20, 0
      %p55 = por %p53, %p54
      %p56 = scmp.ne.s32.totalorder %s42, %s43
      %p57 = scmp.eq.s32.totalorder %s21, 3
      %p58 = por %p56, %p57
      %p60 = scmp.ne.s32.totalorder %s43, %s59
      %p61 = scmp.eq.s32.totalorder %s21, 0
      %p62 = por %p60, %p61
      %s64 = sadd.s32 %s63, 1
      %p67 = scmp.eq.s32.totalorder %s15, 3
      %p68 = scmp.ne.s32.totalorder %s63, %s65
      %p69 = scmp.eq.s32.totalorder %s15, 0
      %p70 = por %p68, %p69
      %p71 = scmp.ne.s32.totalorder %s63, %s65
      %p72 = scmp.eq.s32.totalorder %s20, 3
      %p73 = por %p71, %p72
      %p74 = scmp.ne.s32.totalorder %s65, %s66
      %p75 = scmp.eq.s32.totalorder %s20, 0
      %p76 = por %p74, %p75
      %p77 = scmp.ne.s32.totalorder %s65, %s66
      %p78 = scmp.eq.s32.totalorder %s21, 3
      %p79 = por %p77, %p78
      %p81 = scmp.ne.s32.totalorder %s66, %s80
      %p82 = scmp.eq.s32.totalorder %s21, 0
      %p83 = por %p81, %p82
      %s85 = sadd.s32 %s84, 1
      %p88 = scmp.eq.s32.totalorder %s15, 3
      %p89 = scmp.ne.s32.totalorder %s84, %s86
      %p90 = scmp.eq.s32.totalorder %s15, 0
      %p91 = por %p89, %p90
      %p92 = scmp.ne.s32.totalorder %s84, %s86
      %p93 = scmp.eq.s32.totalorder %s20, 3
      %p94 = por %p92, %p93
      %p95 = scmp.ne.s32.totalorder %s86, %s87
      %p96 = scmp.eq.s32.totalorder %s20, 0
      %p97 = por %p95, %p96
      %p98 = scmp.ne.s32.totalorder %s86, %s87
      %p99 = scmp.eq.s32.totalorder %s21, 3
      %p100 = por %p98, %p99
      %p102 = scmp.ne.s32.totalorder %s87, %s101
      %p103 = scmp.eq.s32.totalorder %s21, 0
      %p104 = por %p102, %p103
      %s106 = sadd.s32 %s105, 1
      %p109 = scmp.eq.s32.totalorder %s15, 3
      %p110 = scmp.ne.s32.totalorder %s105, %s107
      %p111 = scmp.eq.s32.totalorder %s15, 0
      %p112 = por %p110, %p111
      %p113 = scmp.ne.s32.totalorder %s105, %s107
      %p114 = scmp.eq.s32.totalorder %s20, 3
      %p115 = por %p113, %p114
      %p116 = scmp.ne.s32.totalorder %s107, %s108
      %p117 = scmp.eq.s32.totalorder %s20, 0
      %p118 = por %p116, %p117
      %p119 = scmp.ne.s32.totalorder %s107, %s108
      %p120 = scmp.eq.s32.totalorder %s21, 3
      %p121 = por %p119, %p120
      %p123 = scmp.ne.s32.totalorder %s108, %s122
      %p124 = scmp.eq.s32.totalorder %s21, 0
      %p125 = por %p123, %p124
      %s127 = sadd.s32 %s126, 1
      %p130 = scmp.eq.s32.totalorder %s15, 3
      %p131 = scmp.ne.s32.totalorder %s126, %s128
      %p132 = scmp.eq.s32.totalorder %s15, 0
      %p133 = por %p131, %p132
      %p134 = scmp.ne.s32.totalorder %s126, %s128
      %p135 = scmp.eq.s32.totalorder %s20, 3
      %p136 = por %p134, %p135
      %p137 = scmp.ne.s32.totalorder %s128, %s129
      %p138 = scmp.eq.s32.totalorder %s20, 0
      %p139 = por %p137, %p138
      %p140 = scmp.ne.s32.totalorder %s128, %s129
      %p141 = scmp.eq.s32.totalorder %s21, 3
      %p142 = por %p140, %p141
      %p144 = scmp.ne.s32.totalorder %s129, %s143
      %p145 = scmp.eq.s32.totalorder %s21, 0
      %p146 = por %p144, %p145
      %s147 = ssub.s32 %s22, %s34
      %s148 = ssub.s32 %s23, %s30
      %s149 = sor.u32 %s147, %s148
      %p150 = scmp.eq.s32.totalorder %s149, 0
      %s152 = sadd.s32 %s151, 1
      %s153 = scalar_select %p150, %s151, %s152
      %p156 = pneg %p150
      %p157 = scmp.eq.s32.totalorder %s15, 3
      %p158 = por %p156, %p157
      %p159 = scmp.ne.s32.totalorder %s151, %s154
      %p160 = scmp.eq.s32.totalorder %s15, 0
      %p161 = por %p159, %p160
      %p162 = scmp.ne.s32.totalorder %s151, %s154
      %p163 = scmp.eq.s32.totalorder %s20, 3
      %p164 = por %p162, %p163
      %p165 = scmp.ne.s32.totalorder %s154, %s155
      %p166 = scmp.eq.s32.totalorder %s20, 0
      %p167 = por %p165, %p166
      %p168 = scmp.ne.s32.totalorder %s154, %s155
      %p169 = scmp.eq.s32.totalorder %s21, 3
      %p170 = por %p168, %p169
      %p172 = scmp.ne.s32.totalorder %s155, %s171
      %p173 = scmp.eq.s32.totalorder %s21, 0
      %p174 = por %p172, %p173
      %p175 = scmp.le.s32.totalorder 1, %s15
      %p176 = scmp.lt.s32.totalorder %s15, 5
      %p177 = pnand %p175, %p176
      %p178 = pneg %p177
      // Predicated region
      $region9: #{tpu_custom_call.1} parent=5 // pred_check
        _
      $region10: #{tpu_custom_call.1} parent=5 // pred_check_branch
        %180 = sbr.rel (%p177) target = $region12
      $region11: #{tpu_custom_call.1} parent=5 // pred_region
        %s181 = ssub.s32 %s15, 1
        // Predicated region
        $region13: #{tpu_custom_call.1} parent=11 // pred_check
          %p182 = pneg %p76
        $region14: #{tpu_custom_call.1} parent=11 // pred_check_branch
          %184 = sbr.rel (%p182) target = $region16
        $region15: #{tpu_custom_call.1} parent=11 // pred_region
          _
        $region16: #{tpu_custom_call.1} parent=11 // pred_fallthru
          _
        // Predicated region
        $region17: #{tpu_custom_call.1} parent=11 // pred_check
          %p185 = pneg %p97
        $region18: #{tpu_custom_call.1} parent=11 // pred_check_branch
          %187 = sbr.rel (%p185) target = $region20
        $region19: #{tpu_custom_call.1} parent=11 // pred_region
          _
        $region20: #{tpu_custom_call.1} parent=11 // pred_fallthru
          _
        // Predicated region
        $region21: #{tpu_custom_call.1} parent=11 // pred_check
          %p188 = pneg %p118
        $region22: #{tpu_custom_call.1} parent=11 // pred_check_branch
          %190 = sbr.rel (%p188) target = $region24
        $region23: #{tpu_custom_call.1} parent=11 // pred_region
          %192 = vsyncadd [#allocation4], 0
          %s193 = sshll.u32 %s3, 4
          %s194 = int_to_ptr.hbm [resolvable:$true] %s193
          %s195 = sshll.u32 [#allocation3], 4
          %s196 = int_to_ptr.vmem [resolvable:$true] %s195
          %201 = dma.hbm_to_vmem [thread:$0]  %s194, 9216, %s196, [#allocation4], 64, 64, 4
        $region24: #{tpu_custom_call.1} parent=11 // pred_fallthru
          _
        // Predicated region
        $region25: #{tpu_custom_call.1} parent=11 // pred_check
          %p202 = pneg %p139
        $region26: #{tpu_custom_call.1} parent=11 // pred_check_branch
          %204 = sbr.rel (%p202) target = $region28
        $region27: #{tpu_custom_call.1} parent=11 // pred_region
          _
        $region28: #{tpu_custom_call.1} parent=11 // pred_fallthru
          _
      $region12: #{tpu_custom_call.1} parent=5 // pred_fallthru
        _
      %p205 = scmp.lt.s32.totalorder %s15, 4
      // Predicated region
      $region29: #{tpu_custom_call.1} parent=5 // pred_check
        %p206 = pneg %p205
      $region30: #{tpu_custom_call.1} parent=5 // pred_check_branch
        %208 = sbr.rel (%p206) target = $region32
      $region31: #{tpu_custom_call.1} parent=5 // pred_region
        // Predicated region
        $region33: #{tpu_custom_call.1} parent=31 // pred_check
          %p209 = pneg %p49
        $region34: #{tpu_custom_call.1} parent=31 // pred_check_branch
          %211 = sbr.rel (%p209) target = $region36
        $region35: #{tpu_custom_call.1} parent=31 // pred_region
          %p212 = scmp.lt.s32.totalorder %s22, 1
          %s213 = scalar_select %p212, %s22, 1
          %p214 = scmp.lt.s32.totalorder %s23, 1
          %s215 = scalar_select %p214, %s23, 1
          %s216 = smul.addr %s215, 36
          %s217 = smul.addr %s213, 72
          %s218 = sadd.s32 %s216, %s217
          %s219 = smul.addr %s218, 4
          %s220 = scalar_lea.vmem %s0, %s219
        $region36: #{tpu_custom_call.1} parent=31 // pred_fallthru
          _
      $region32: #{tpu_custom_call.1} parent=5 // pred_fallthru
        _
      %p221 = scmp.le.s32.totalorder 1, %s15
      %p222 = scmp.lt.s32.totalorder %s15, 5
      %p223 = pnand %p221, %p222
      %p224 = pneg %p223
      // Predicated region
      $region37: #{tpu_custom_call.1} parent=5 // pred_check
        _
      $region38: #{tpu_custom_call.1} parent=5 // pred_check_branch
        %226 = sbr.rel (%p223) target = $region40
      $region39: #{tpu_custom_call.1} parent=5 // pred_region
        %s227 = ssub.s32 %s15, 1
        // Predicated region
        $region41: #{tpu_custom_call.1} parent=39 // pred_check
          %p228 = pneg %p118
        $region42: #{tpu_custom_call.1} parent=39 // pred_check_branch
          %230 = sbr.rel (%p228) target = $region44
        $region43: #{tpu_custom_call.1} parent=39 // pred_region
          %232 = dma.done [#allocation4], 9216
        $region44: #{tpu_custom_call.1} parent=39 // pred_fallthru
          _
        %p233 = scmp.lt.s32.totalorder %s24, 1
        %s234 = scalar_select %p233, %s24, 1
        %p235 = scmp.lt.s32.totalorder %s25, 1
        %s236 = scalar_select %p235, %s25, 1
        %s237 = smul.addr %s236, 36
        %s238 = smul.addr %s234, 72
        %s239 = sadd.s32 %s237, %s238
        %s240 = smul.addr %s239, 4
        %s241 = scalar_lea.vmem %s0, %s240
        %p242 = pneg %p55
        %p243 = pneg %p52
        %p244 = pneg %p76
        %p245 = pneg %p73
        %p246 = pneg %p97
        %p247 = pneg %p94
        %p248 = pneg %p118
        %p249 = pneg %p115
        %p250 = pneg %p139
        %p251 = pneg %p136
        %p252 = pneg %p167
        %p253 = pneg %p164
        %s254 = sand.u32 %s154, 1
        %s255 = scalar_lea.sflag [#allocation5], %s254
        %s256 = sand.u32 %s154, 1
        %s257 = smul.addr %s256, 128
        %s258 = scalar_lea.vmem [#allocation6], %s257
        %p259 = scmp.lt.s32.totalorder %s24, 1
        %s260 = scalar_select %p259, %s24, 1
        %p261 = scmp.lt.s32.totalorder %s25, 1
        %s262 = scalar_select %p261, %s25, 1
        %s263 = smul.addr %s262, 36
        %s264 = smul.addr %s260, 72
        %s265 = sadd.s32 %s263, %s264
        %s266 = smul.addr %s265, 4
        %s267 = scalar_lea.vmem %s0, %s266
        %s268 = smul.u32 8, %s25
        %v270 = vld [vmem:[%s267] sm:$0xf]
        %v271 = vld [vmem:[%s267 + $0x4] sm:$0xf]
        %v272 = vld [vmem:[%s267 + $0xc] sm:$0xf]
        %v273 = vld [vmem:[%s267 + $0x10] sm:$0xf]
        %v274 = vld [vmem:[%s267 + $0x18] sm:$0xf]
        %v275 = vld [vmem:[%s267 + $0x1c] sm:$0xf]
        %v276 = vld [vmem:[%s267 + $0x24] sm:$0xf]
        %v277 = vld [vmem:[%s267 + $0x28] sm:$0xf]
        %v278 = vld [vmem:[%s267 + $0x30] sm:$0xf]
        %v279 = vld [vmem:[%s267 + $0x34] sm:$0xf]
        %v280 = vld [vmem:[%s267 + $0x3c] sm:$0xf]
        %v281 = vld [vmem:[%s267 + $0x40] sm:$0xf]
        %v282 = vld [vmem:[%s267 + $0x48] sm:$0xf]
        %v283 = vld [vmem:[%s267 + $0x4c] sm:$0xf]
        %v284 = vld [vmem:[%s267 + $0x54] sm:$0xf]
        %v285 = vld [vmem:[%s267 + $0x58] sm:$0xf]
        %v286 = vld [vmem:[%s267 + $0x60] sm:$0xf]
        %v287 = vld [vmem:[%s267 + $0x64] sm:$0xf]
        %v288 = vld [vmem:[%s267 + $0x6c] sm:$0xf]
        %v289 = vld [vmem:[%s267 + $0x70] sm:$0xf]
        %v290 = vld [vmem:[%s267 + $0x78] sm:$0xf]
        %v291 = vld [vmem:[%s267 + $0x7c] sm:$0xf]
        %v292 = vld [vmem:[%s267 + $0x84] sm:$0xf]
        %v293 = vld [vmem:[%s267 + $0x88] sm:$0xf]
        %v294 = vld [vmem:[%s267 + $0x8] sm:$0x1]
        %v295 = vld [vmem:[%s267 + $0x14] sm:$0x1]
        %v296 = vld [vmem:[%s267 + $0x20] sm:$0x1]
        %v297 = vld [vmem:[%s267 + $0x2c] sm:$0x1]
        %v298 = vld [vmem:[%s267 + $0x38] sm:$0x1]
        %v299 = vld [vmem:[%s267 + $0x44] sm:$0x1]
        %v300 = vld [vmem:[%s267 + $0x50] sm:$0x1]
        %v301 = vld [vmem:[%s267 + $0x5c] sm:$0x1]
        %v302 = vld [vmem:[%s267 + $0x68] sm:$0x1]
        %v303 = vld [vmem:[%s267 + $0x74] sm:$0x1]
        %v304 = vld [vmem:[%s267 + $0x80] sm:$0x1]
        %v305 = vld [vmem:[%s267 + $0x8c] sm:$0x1]
        %v306 = vld [vmem:[%s267] sm:$0xe]
        %v307 = vld [vmem:[%s267 + $0xc] sm:$0xe]
        %v308 = vld [vmem:[%s267 + $0x18] sm:$0xe]
        %v309 = vld [vmem:[%s267 + $0x24] sm:$0xe]
        %v310 = vld [vmem:[%s267 + $0x30] sm:$0xe]
        %v311 = vld [vmem:[%s267 + $0x3c] sm:$0xe]
        %v312 = vld [vmem:[%s267 + $0x48] sm:$0xe]
        %v313 = vld [vmem:[%s267 + $0x54] sm:$0xe]
        %v314 = vld [vmem:[%s267 + $0x60] sm:$0xe]
        %v315 = vld [vmem:[%s267 + $0x6c] sm:$0xe]
        %v316 = vld [vmem:[%s267 + $0x78] sm:$0xe]
        %v317 = vld [vmem:[%s267 + $0x84] sm:$0xe]
        %v342 = vunpack.c.l.b16 %v270
        %v343 = vunpack.c.l.b16 %v271
        %v344 = vunpack.c.l.b16 %v272
        %v345 = vunpack.c.l.b16 %v273
        %v346 = vunpack.c.l.b16 %v274
        %v347 = vunpack.c.l.b16 %v275
        %v348 = vunpack.c.l.b16 %v276
        %v349 = vunpack.c.l.b16 %v277
        %v350 = vunpack.c.l.b16 %v278
        %v351 = vunpack.c.l.b16 %v279
        %v352 = vunpack.c.l.b16 %v280
        %v353 = vunpack.c.l.b16 %v281
        %v354 = vunpack.c.l.b16 %v282
        %v355 = vunpack.c.l.b16 %v283
        %v356 = vunpack.c.l.b16 %v284
        %v357 = vunpack.c.l.b16 %v285
        %v358 = vunpack.c.l.b16 %v286
        %v359 = vunpack.c.l.b16 %v287
        %v360 = vunpack.c.l.b16 %v288
        %v361 = vunpack.c.l.b16 %v289
        %v362 = vunpack.c.l.b16 %v290
        %v363 = vunpack.c.l.b16 %v291
        %v364 = vunpack.c.l.b16 %v292
        %v365 = vunpack.c.l.b16 %v293
        %v366 = vpack.c.b16 %v343, %v342
        %v367 = vpack.c.b16 %v345, %v344
        %v368 = vpack.c.b16 %v347, %v346
        %v369 = vpack.c.b16 %v349, %v348
        %v370 = vpack.c.b16 %v351, %v350
        %v371 = vpack.c.b16 %v353, %v352
        %v372 = vpack.c.b16 %v355, %v354
        %v373 = vpack.c.b16 %v357, %v356
        %v374 = vpack.c.b16 %v359, %v358
        %v375 = vpack.c.b16 %v361, %v360
        %v376 = vpack.c.b16 %v363, %v362
        %v377 = vpack.c.b16 %v365, %v364
        %v402 = vunpack.c.l.b16 %v294
        %v403 = vunpack.c.l.b16 %v295
        %v404 = vunpack.c.l.b16 %v296
        %v405 = vunpack.c.l.b16 %v297
        %v406 = vunpack.c.l.b16 %v298
        %v407 = vunpack.c.l.b16 %v299
        %v408 = vunpack.c.l.b16 %v300
        %v409 = vunpack.c.l.b16 %v301
        %v410 = vunpack.c.l.b16 %v302
        %v411 = vunpack.c.l.b16 %v303
        %v412 = vunpack.c.l.b16 %v304
        %v413 = vunpack.c.l.b16 %v305
        %v414 = vpack.c.b16 %v402, %v402
        %v415 = vpack.c.b16 %v403, %v403
        %v416 = vpack.c.b16 %v404, %v404
        %v417 = vpack.c.b16 %v405, %v405
        %v418 = vpack.c.b16 %v406, %v406
        %v419 = vpack.c.b16 %v407, %v407
        %v420 = vpack.c.b16 %v408, %v408
        %v421 = vpack.c.b16 %v409, %v409
        %v422 = vpack.c.b16 %v410, %v410
        %v423 = vpack.c.b16 %v411, %v411
        %v424 = vpack.c.b16 %v412, %v412
        %v425 = vpack.c.b16 %v413, %v413
        %vm426 = vsmask.f32 7424
        %v428 = vshrl.u32 %v366, 16
        %v430 = vshll.u32 %v366, 16
        %v432 = vrot.slane %v430, 1
        %v433 = vor.u32 %v428, %v432
        %v435 = vshll.u32 %v414, 16
        %v437 = vrot.slane %v435, 1
        %v438 = vsel %vm426, %v433, %v437
        %v440 = vshrl.u32 %v367, 16
        %v442 = vshll.u32 %v367, 16
        %v444 = vrot.slane %v442, 1
        %v445 = vor.u32 %v440, %v444
        %v447 = vshll.u32 %v415, 16
        %v449 = vrot.slane %v447, 1
        %v450 = vsel %vm426, %v445, %v449
        %v452 = vshrl.u32 %v368, 16
        %v454 = vshll.u32 %v368, 16
        %v456 = vrot.slane %v454, 1
        %v457 = vor.u32 %v452, %v456
        %v459 = vshll.u32 %v416, 16
        %v461 = vrot.slane %v459, 1
        %v462 = vsel %vm426, %v457, %v461
        %v464 = vshrl.u32 %v369, 16
        %v466 = vshll.u32 %v369, 16
        %v468 = vrot.slane %v466, 1
        %v469 = vor.u32 %v464, %v468
        %v471 = vshll.u32 %v417, 16
        %v473 = vrot.slane %v471, 1
        %v474 = vsel %vm426, %v469, %v473
        %v476 = vshrl.u32 %v370, 16
        %v478 = vshll.u32 %v370, 16
        %v480 = vrot.slane %v478, 1
        %v481 = vor.u32 %v476, %v480
        %v483 = vshll.u32 %v418, 16
        %v485 = vrot.slane %v483, 1
        %v486 = vsel %vm426, %v481, %v485
        %v488 = vshrl.u32 %v371, 16
        %v490 = vshll.u32 %v371, 16
        %v492 = vrot.slane %v490, 1
        %v493 = vor.u32 %v488, %v492
        %v495 = vshll.u32 %v419, 16
        %v497 = vrot.slane %v495, 1
        %v498 = vsel %vm426, %v493, %v497
        %v500 = vshrl.u32 %v372, 16
        %v502 = vshll.u32 %v372, 16
        %v504 = vrot.slane %v502, 1
        %v505 = vor.u32 %v500, %v504
        %v507 = vshll.u32 %v420, 16
        %v509 = vrot.slane %v507, 1
        %v510 = vsel %vm426, %v505, %v509
        %v512 = vshrl.u32 %v373, 16
        %v514 = vshll.u32 %v373, 16
        %v516 = vrot.slane %v514, 1
        %v517 = vor.u32 %v512, %v516
        %v519 = vshll.u32 %v421, 16
        %v521 = vrot.slane %v519, 1
        %v522 = vsel %vm426, %v517, %v521
        %v524 = vshrl.u32 %v374, 16
        %v526 = vshll.u32 %v374, 16
        %v528 = vrot.slane %v526, 1
        %v529 = vor.u32 %v524, %v528
        %v531 = vshll.u32 %v422, 16
        %v533 = vrot.slane %v531, 1
        %v534 = vsel %vm426, %v529, %v533
        %v536 = vshrl.u32 %v375, 16
        %v538 = vshll.u32 %v375, 16
        %v540 = vrot.slane %v538, 1
        %v541 = vor.u32 %v536, %v540
        %v543 = vshll.u32 %v423, 16
        %v545 = vrot.slane %v543, 1
        %v546 = vsel %vm426, %v541, %v545
        %v548 = vshrl.u32 %v376, 16
        %v550 = vshll.u32 %v376, 16
        %v552 = vrot.slane %v550, 1
        %v553 = vor.u32 %v548, %v552
        %v555 = vshll.u32 %v424, 16
        %v557 = vrot.slane %v555, 1
        %v558 = vsel %vm426, %v553, %v557
        %v560 = vshrl.u32 %v377, 16
        %v562 = vshll.u32 %v377, 16
        %v564 = vrot.slane %v562, 1
        %v565 = vor.u32 %v560, %v564
        %v567 = vshll.u32 %v425, 16
        %v569 = vrot.slane %v567, 1
        %v570 = vsel %vm426, %v565, %v569
        %v595 = vunpack.c.l.b16 %v306
        %v596 = vunpack.c.l.b16 %v307
        %v597 = vunpack.c.l.b16 %v308
        %v598 = vunpack.c.l.b16 %v309
        %v599 = vunpack.c.l.b16 %v310
        %v600 = vunpack.c.l.b16 %v311
        %v601 = vunpack.c.l.b16 %v312
        %v602 = vunpack.c.l.b16 %v313
        %v603 = vunpack.c.l.b16 %v314
        %v604 = vunpack.c.l.b16 %v315
        %v605 = vunpack.c.l.b16 %v316
        %v606 = vunpack.c.l.b16 %v317
        %v607 = vpack.c.b16 %v343, %v595
        %v608 = vpack.c.b16 %v345, %v596
        %v609 = vpack.c.b16 %v347, %v597
        %v610 = vpack.c.b16 %v349, %v598
        %v611 = vpack.c.b16 %v351, %v599
        %v612 = vpack.c.b16 %v353, %v600
        %v613 = vpack.c.b16 %v355, %v601
        %v614 = vpack.c.b16 %v357, %v602
        %v615 = vpack.c.b16 %v359, %v603
        %v616 = vpack.c.b16 %v361, %v604
        %v617 = vpack.c.b16 %v363, %v605
        %v618 = vpack.c.b16 %v365, %v606
        %vm619 = vcmask 1046528
        %v620 = vrot.slane %v607, 1
        %v621 = vrot.slane %v414, 1
        %v622 = vsel %vm619, %v620, %v621
        %v623 = vrot.slane %v608, 1
        %v624 = vrot.slane %v415, 1
        %v625 = vsel %vm619, %v623, %v624
        %v626 = vrot.slane %v609, 1
        %v627 = vrot.slane %v416, 1
        %v628 = vsel %vm619, %v626, %v627
        %v629 = vrot.slane %v610, 1
        %v630 = vrot.slane %v417, 1
        %v631 = vsel %vm619, %v629, %v630
        %v632 = vrot.slane %v611, 1
        %v633 = vrot.slane %v418, 1
        %v634 = vsel %vm619, %v632, %v633
        %v635 = vrot.slane %v612, 1
        %v636 = vrot.slane %v419, 1
        %v637 = vsel %vm619, %v635, %v636
        %v638 = vrot.slane %v613, 1
        %v639 = vrot.slane %v420, 1
        %v640 = vsel %vm619, %v638, %v639
        %v641 = vrot.slane %v614, 1
        %v642 = vrot.slane %v421, 1
        %v643 = vsel %vm619, %v641, %v642
        %v644 = vrot.slane %v615, 1
        %v645 = vrot.slane %v422, 1
        %v646 = vsel %vm619, %v644, %v645
        %v647 = vrot.slane %v616, 1
        %v648 = vrot.slane %v423, 1
        %v649 = vsel %vm619, %v647, %v648
        %v650 = vrot.slane %v617, 1
        %v651 = vrot.slane %v424, 1
        %v652 = vsel %vm619, %v650, %v651
        %v653 = vrot.slane %v618, 1
        %v654 = vrot.slane %v425, 1
        %v655 = vsel %vm619, %v653, %v654
        %v668 = vld [vmem:[%s1] sm:$0xf]
        %v669 = vld [vmem:[%s1 + $0x4] sm:$0xf]
        %v670 = vld [vmem:[%s1 + $0x8] sm:$0xf]
        %v671 = vld [vmem:[%s1 + $0xc] sm:$0xf]
        %v672 = vld [vmem:[%s1 + $0x10] sm:$0xf]
        %v673 = vld [vmem:[%s1 + $0x14] sm:$0xf]
        %v674 = vld [vmem:[%s1 + $0x18] sm:$0xf]
        %v675 = vld [vmem:[%s1 + $0x1c] sm:$0xf]
        %v676 = vld [vmem:[%s1 + $0x20] sm:$0xf]
        %v677 = vld [vmem:[%s1 + $0x24] sm:$0xf]
        %v678 = vld [vmem:[%s1 + $0x28] sm:$0xf]
        %v679 = vld [vmem:[%s1 + $0x2c] sm:$0xf]
        %v680 = vld [vmem:[%s1 + $0x30] sm:$0xf]
        %v681 = vld [vmem:[%s1 + $0x34] sm:$0xf]
        %v682 = vld [vmem:[%s1 + $0x38] sm:$0xf]
        %v683 = vld [vmem:[%s1 + $0x3c] sm:$0xf]
        %v684 = vld [vmem:[%s1 + $0x40] sm:$0xf]
        %v685 = vld [vmem:[%s1 + $0x44] sm:$0xf]
        %v686 = vld [vmem:[%s1 + $0x48] sm:$0xf]
        %v687 = vld [vmem:[%s1 + $0x4c] sm:$0xf]
        %v688 = vld [vmem:[%s1 + $0x50] sm:$0xf]
        %v689 = vld [vmem:[%s1 + $0x54] sm:$0xf]
        %v690 = vld [vmem:[%s1 + $0x58] sm:$0xf]
        %v691 = vld [vmem:[%s1 + $0x5c] sm:$0xf]
        %v692 = vld [vmem:[%s1 + $0x60] sm:$0xf]
        %v693 = vld [vmem:[%s1 + $0x64] sm:$0xf]
        %v694 = vld [vmem:[%s1 + $0x68] sm:$0xf]
        %v695 = vld [vmem:[%s1 + $0x6c] sm:$0xf]
        %v696 = vld [vmem:[%s1 + $0x70] sm:$0xf]
        %v697 = vld [vmem:[%s1 + $0x74] sm:$0xf]
        %v698 = vld [vmem:[%s1 + $0x78] sm:$0xf]
        %v699 = vld [vmem:[%s1 + $0x7c] sm:$0xf]
        %v700 = vld [vmem:[%s1 + $0x80] sm:$0xf]
        %v701 = vld [vmem:[%s1 + $0x84] sm:$0xf]
        %v702 = vld [vmem:[%s1 + $0x88] sm:$0xf]
        %v703 = vld [vmem:[%s1 + $0x8c] sm:$0xf]
        %v704 = vld [vmem:[%s1 + $0x90] sm:$0xf]
        %v705 = vld [vmem:[%s1 + $0x94] sm:$0xf]
        %v706 = vld [vmem:[%s1 + $0x98] sm:$0xf]
        %v707 = vld [vmem:[%s1 + $0x9c] sm:$0xf]
        %v708 = vld [vmem:[%s1 + $0xa0] sm:$0xf]
        %v709 = vld [vmem:[%s1 + $0xa4] sm:$0xf]
        %v710 = vld [vmem:[%s1 + $0xa8] sm:$0xf]
        %v711 = vld [vmem:[%s1 + $0xac] sm:$0xf]
        %v712 = vld [vmem:[%s1 + $0xb0] sm:$0xf]
        %v713 = vld [vmem:[%s1 + $0xb4] sm:$0xf]
        %v714 = vld [vmem:[%s1 + $0xb8] sm:$0xf]
        %v715 = vld [vmem:[%s1 + $0xbc] sm:$0xf]
        %v716 = vld [vmem:[%s1 + $0xc0] sm:$0xf]
        %v717 = vld [vmem:[%s1 + $0xc4] sm:$0xf]
        %v718 = vld [vmem:[%s1 + $0xc8] sm:$0xf]
        %v719 = vld [vmem:[%s1 + $0xcc] sm:$0xf]
        %v720 = vld [vmem:[%s1 + $0xd0] sm:$0xf]
        %v721 = vld [vmem:[%s1 + $0xd4] sm:$0xf]
        %v722 = vld [vmem:[%s1 + $0xd8] sm:$0xf]
        %v723 = vld [vmem:[%s1 + $0xdc] sm:$0xf]
        %v724 = vld [vmem:[%s1 + $0xe0] sm:$0xf]
        %v725 = vld [vmem:[%s1 + $0xe4] sm:$0xf]
        %v726 = vld [vmem:[%s1 + $0xe8] sm:$0xf]
        %v727 = vld [vmem:[%s1 + $0xec] sm:$0xf]
        %v728 = vld [vmem:[%s1 + $0xf0] sm:$0xf]
        %v729 = vld [vmem:[%s1 + $0xf4] sm:$0xf]
        %v730 = vld [vmem:[%s1 + $0xf8] sm:$0xf]
        %v731 = vld [vmem:[%s1 + $0xfc] sm:$0xf]
        %v732 = vld [vmem:[%s1 + $0x100] sm:$0xf]
        %v733 = vld [vmem:[%s1 + $0x104] sm:$0xf]
        %v734 = vld [vmem:[%s1 + $0x108] sm:$0xf]
        %v735 = vld [vmem:[%s1 + $0x10c] sm:$0xf]
        %v736 = vld [vmem:[%s1 + $0x110] sm:$0xf]
        %v737 = vld [vmem:[%s1 + $0x114] sm:$0xf]
        %v738 = vld [vmem:[%s1 + $0x118] sm:$0xf]
        %v739 = vld [vmem:[%s1 + $0x11c] sm:$0xf]
        %v740 = vld [vmem:[%s1 + $0x120] sm:$0xf]
        %v741 = vld [vmem:[%s1 + $0x124] sm:$0xf]
        %v742 = vld [vmem:[%s1 + $0x128] sm:$0xf]
        %v743 = vld [vmem:[%s1 + $0x12c] sm:$0xf]
        %v744 = vld [vmem:[%s1 + $0x130] sm:$0xf]
        %v745 = vld [vmem:[%s1 + $0x134] sm:$0xf]
        %v746 = vld [vmem:[%s1 + $0x138] sm:$0xf]
        %v747 = vld [vmem:[%s1 + $0x13c] sm:$0xf]
        %v748 = vld [vmem:[%s1 + $0x140] sm:$0xf]
        %v749 = vld [vmem:[%s1 + $0x144] sm:$0xf]
        %v750 = vld [vmem:[%s1 + $0x148] sm:$0xf]
        %v751 = vld [vmem:[%s1 + $0x14c] sm:$0xf]
        %v752 = vld [vmem:[%s1 + $0x150] sm:$0xf]
        %v753 = vld [vmem:[%s1 + $0x154] sm:$0xf]
        %v754 = vld [vmem:[%s1 + $0x158] sm:$0xf]
        %v755 = vld [vmem:[%s1 + $0x15c] sm:$0xf]
        %v756 = vld [vmem:[%s1 + $0x160] sm:$0xf]
        %v757 = vld [vmem:[%s1 + $0x164] sm:$0xf]
        %v758 = vld [vmem:[%s1 + $0x168] sm:$0xf]
        %v759 = vld [vmem:[%s1 + $0x16c] sm:$0xf]
        %v760 = vld [vmem:[%s1 + $0x170] sm:$0xf]
        %v761 = vld [vmem:[%s1 + $0x174] sm:$0xf]
        %v762 = vld [vmem:[%s1 + $0x178] sm:$0xf]
        %v763 = vld [vmem:[%s1 + $0x17c] sm:$0xf]
        %v812 = vunpack.c.l.b16 %v716
        %v813 = vunpack.c.l.b16 %v717
        %v814 = vunpack.c.l.b16 %v718
        %v815 = vunpack.c.l.b16 %v719
        %v816 = vunpack.c.l.b16 %v720
        %v817 = vunpack.c.l.b16 %v721
        %v818 = vunpack.c.l.b16 %v722
        %v819 = vunpack.c.l.b16 %v723
        %v820 = vunpack.c.l.b16 %v724
        %v821 = vunpack.c.l.b16 %v725
        %v822 = vunpack.c.l.b16 %v726
        %v823 = vunpack.c.l.b16 %v727
        %v824 = vunpack.c.l.b16 %v728
        %v825 = vunpack.c.l.b16 %v729
        %v826 = vunpack.c.l.b16 %v730
        %v827 = vunpack.c.l.b16 %v731
        %v828 = vunpack.c.l.b16 %v732
        %v829 = vunpack.c.l.b16 %v733
        %v830 = vunpack.c.l.b16 %v734
        %v831 = vunpack.c.l.b16 %v735
        %v832 = vunpack.c.l.b16 %v736
        %v833 = vunpack.c.l.b16 %v737
        %v834 = vunpack.c.l.b16 %v738
        %v835 = vunpack.c.l.b16 %v739
        %v836 = vunpack.c.l.b16 %v740
        %v837 = vunpack.c.l.b16 %v741
        %v838 = vunpack.c.l.b16 %v742
        %v839 = vunpack.c.l.b16 %v743
        %v840 = vunpack.c.l.b16 %v744
        %v841 = vunpack.c.l.b16 %v745
        %v842 = vunpack.c.l.b16 %v746
        %v843 = vunpack.c.l.b16 %v747
        %v844 = vunpack.c.l.b16 %v748
        %v845 = vunpack.c.l.b16 %v749
        %v846 = vunpack.c.l.b16 %v750
        %v847 = vunpack.c.l.b16 %v751
        %v848 = vunpack.c.l.b16 %v752
        %v849 = vunpack.c.l.b16 %v753
        %v850 = vunpack.c.l.b16 %v754
        %v851 = vunpack.c.l.b16 %v755
        %v852 = vunpack.c.l.b16 %v756
        %v853 = vunpack.c.l.b16 %v757
        %v854 = vunpack.c.l.b16 %v758
        %v855 = vunpack.c.l.b16 %v759
        %v856 = vunpack.c.l.b16 %v760
        %v857 = vunpack.c.l.b16 %v761
        %v858 = vunpack.c.l.b16 %v762
        %v859 = vunpack.c.l.b16 %v763
        %v860 = vpack.c.b16 %v813, %v812
        %v861 = vpack.c.b16 %v815, %v814
        %v862 = vpack.c.b16 %v817, %v816
        %v863 = vpack.c.b16 %v819, %v818
        %v864 = vpack.c.b16 %v821, %v820
        %v865 = vpack.c.b16 %v823, %v822
        %v866 = vpack.c.b16 %v825, %v824
        %v867 = vpack.c.b16 %v827, %v826
        %v868 = vpack.c.b16 %v829, %v828
        %v869 = vpack.c.b16 %v831, %v830
        %v870 = vpack.c.b16 %v833, %v832
        %v871 = vpack.c.b16 %v835, %v834
        %v872 = vpack.c.b16 %v837, %v836
        %v873 = vpack.c.b16 %v839, %v838
        %v874 = vpack.c.b16 %v841, %v840
        %v875 = vpack.c.b16 %v843, %v842
        %v876 = vpack.c.b16 %v845, %v844
        %v877 = vpack.c.b16 %v847, %v846
        %v878 = vpack.c.b16 %v849, %v848
        %v879 = vpack.c.b16 %v851, %v850
        %v880 = vpack.c.b16 %v853, %v852
        %v881 = vpack.c.b16 %v855, %v854
        %v882 = vpack.c.b16 %v857, %v856
        %v883 = vpack.c.b16 %v859, %v858
        %908 = vmatpush.bf16.msra.mxu0 %v867
        %909 = vmatpush.bf16.msra.mxu0 %v866
        %910 = vmatpush.bf16.msra.mxu0 %v865
        %911 = vmatpush.bf16.msra.mxu0 %v864
        %912 = vmatpush.bf16.msra.mxu0 %v863
        %913 = vmatpush.bf16.msra.mxu0 %v862
        %914 = vmatpush.bf16.msra.mxu0 %v861
        %915 = vmatpush.bf16.msra.mxu0 %v860
        %916 = vmatmul.bf16.gmra.mxu0 %v367
        %v917 = vpop.f32.mrf.mxu0
        %v918 = vadd.f32 0.0, %v917
        %v919 = vpop.f32.mrf.mxu0
        %v920 = vadd.f32 0.0, %v919
        %921 = vmatmul.bf16.gmra.mxu0 %v368
        %v922 = vpop.f32.mrf.mxu0
        %v923 = vadd.f32 0.0, %v922
        %v924 = vpop.f32.mrf.mxu0
        %v925 = vadd.f32 0.0, %v924
        %926 = vmatmul.bf16.gmra.mxu0 %v369
        %v927 = vpop.f32.mrf.mxu0
        %v928 = vadd.f32 0.0, %v927
        %v929 = vpop.f32.mrf.mxu0
        %v930 = vadd.f32 0.0, %v929
        %931 = vmatmul.bf16.gmra.mxu0 %v370
        %v932 = vpop.f32.mrf.mxu0
        %v933 = vadd.f32 0.0, %v932
        %v934 = vpop.f32.mrf.mxu0
        %v935 = vadd.f32 0.0, %v934
        %936 = vmatmul.bf16.gmra.mxu0 %v371
        %v937 = vpop.f32.mrf.mxu0
        %v938 = vadd.f32 0.0, %v937
        %v939 = vpop.f32.mrf.mxu0
        %v940 = vadd.f32 0.0, %v939
        %941 = vmatmul.bf16.gmra.mxu0 %v372
        %v942 = vpop.f32.mrf.mxu0
        %v943 = vadd.f32 0.0, %v942
        %v944 = vpop.f32.mrf.mxu0
        %v945 = vadd.f32 0.0, %v944
        %946 = vmatmul.bf16.gmra.mxu0 %v373
        %v947 = vpop.f32.mrf.mxu0
        %v948 = vadd.f32 0.0, %v947
        %v949 = vpop.f32.mrf.mxu0
        %v950 = vadd.f32 0.0, %v949
        %951 = vmatmul.bf16.gmra.mxu0 %v374
        %v952 = vpop.f32.mrf.mxu0
        %v953 = vadd.f32 0.0, %v952
        %v954 = vpop.f32.mrf.mxu0
        %v955 = vadd.f32 0.0, %v954
        %956 = vmatmul.bf16.gmra.mxu0 %v375
        %v957 = vpop.f32.mrf.mxu0
        %v958 = vadd.f32 0.0, %v957
        %v959 = vpop.f32.mrf.mxu0
        %v960 = vadd.f32 0.0, %v959
        %961 = vmatmul.bf16.gmra.mxu0 %v376
        %v962 = vpop.f32.mrf.mxu0
        %v963 = vadd.f32 0.0, %v962
        %v964 = vpop.f32.mrf.mxu0
        %v965 = vadd.f32 0.0, %v964
        %966 = vdwg.mxu0
        %967 = vmatpush.bf16.msra.mxu0 %v875
        %968 = vmatpush.bf16.msra.mxu0 %v874
        %969 = vmatpush.bf16.msra.mxu0 %v873
        %970 = vmatpush.bf16.msra.mxu0 %v872
        %971 = vmatpush.bf16.msra.mxu0 %v871
        %972 = vmatpush.bf16.msra.mxu0 %v870
        %973 = vmatpush.bf16.msra.mxu0 %v869
        %974 = vmatpush.bf16.msra.mxu0 %v868
        %975 = vmatmul.bf16.gmra.mxu0 %v450
        %v976 = vpop.f32.mrf.mxu0
        %v977 = vadd.f32 %v918, %v976
        %v978 = vpop.f32.mrf.mxu0
        %v979 = vadd.f32 %v920, %v978
        %980 = vmatmul.bf16.gmra.mxu0 %v462
        %v981 = vpop.f32.mrf.mxu0
        %v982 = vadd.f32 %v923, %v981
        %v983 = vpop.f32.mrf.mxu0
        %v984 = vadd.f32 %v925, %v983
        %985 = vmatmul.bf16.gmra.mxu0 %v474
        %v986 = vpop.f32.mrf.mxu0
        %v987 = vadd.f32 %v928, %v986
        %v988 = vpop.f32.mrf.mxu0
        %v989 = vadd.f32 %v930, %v988
        %990 = vmatmul.bf16.gmra.mxu0 %v486
        %v991 = vpop.f32.mrf.mxu0
        %v992 = vadd.f32 %v933, %v991
        %v993 = vpop.f32.mrf.mxu0
        %v994 = vadd.f32 %v935, %v993
        %995 = vmatmul.bf16.gmra.mxu0 %v498
        %v996 = vpop.f32.mrf.mxu0
        %v997 = vadd.f32 %v938, %v996
        %v998 = vpop.f32.mrf.mxu0
        %v999 = vadd.f32 %v940, %v998
        %1000 = vmatmul.bf16.gmra.mxu0 %v510
        %v1001 = vpop.f32.mrf.mxu0
        %v1002 = vadd.f32 %v943, %v1001
        %v1003 = vpop.f32.mrf.mxu0
        %v1004 = vadd.f32 %v945, %v1003
        %1005 = vmatmul.bf16.gmra.mxu0 %v522
        %v1006 = vpop.f32.mrf.mxu0
        %v1007 = vadd.f32 %v948, %v1006
        %v1008 = vpop.f32.mrf.mxu0
        %v1009 = vadd.f32 %v950, %v1008
        %1010 = vmatmul.bf16.gmra.mxu0 %v534
        %v1011 = vpop.f32.mrf.mxu0
        %v1012 = vadd.f32 %v953, %v1011
        %v1013 = vpop.f32.mrf.mxu0
        %v1014 = vadd.f32 %v955, %v1013
        %1015 = vmatmul.bf16.gmra.mxu0 %v546
        %v1016 = vpop.f32.mrf.mxu0
        %v1017 = vadd.f32 %v958, %v1016
        %v1018 = vpop.f32.mrf.mxu0
        %v1019 = vadd.f32 %v960, %v1018
        %1020 = vmatmul.bf16.gmra.mxu0 %v558
        %v1021 = vpop.f32.mrf.mxu0
        %v1022 = vadd.f32 %v963, %v1021
        %v1023 = vpop.f32.mrf.mxu0
        %v1024 = vadd.f32 %v965, %v1023
        %1025 = vdwg.mxu0
        %1026 = vmatpush.bf16.msra.mxu0 %v883
        %1027 = vmatpush.bf16.msra.mxu0 %v882
        %1028 = vmatpush.bf16.msra.mxu0 %v881
        %1029 = vmatpush.bf16.msra.mxu0 %v880
        %1030 = vmatpush.bf16.msra.mxu0 %v879
        %1031 = vmatpush.bf16.msra.mxu0 %v878
        %1032 = vmatpush.bf16.msra.mxu0 %v877
        %1033 = vmatpush.bf16.msra.mxu0 %v876
        %1034 = vmatmul.bf16.gmra.mxu0 %v625
        %v1035 = vpop.f32.mrf.mxu0
        %v1036 = vadd.f32 %v977, %v1035
        %v1037 = vpop.f32.mrf.mxu0
        %v1038 = vadd.f32 %v979, %v1037
        %1039 = vmatmul.bf16.gmra.mxu0 %v628
        %v1040 = vpop.f32.mrf.mxu0
        %v1041 = vadd.f32 %v982, %v1040
        %v1042 = vpop.f32.mrf.mxu0
        %v1043 = vadd.f32 %v984, %v1042
        %1044 = vmatmul.bf16.gmra.mxu0 %v631
        %v1045 = vpop.f32.mrf.mxu0
        %v1046 = vadd.f32 %v987, %v1045
        %v1047 = vpop.f32.mrf.mxu0
        %v1048 = vadd.f32 %v989, %v1047
        %1049 = vmatmul.bf16.gmra.mxu0 %v634
        %v1050 = vpop.f32.mrf.mxu0
        %v1051 = vadd.f32 %v992, %v1050
        %v1052 = vpop.f32.mrf.mxu0
        %v1053 = vadd.f32 %v994, %v1052
        %1054 = vmatmul.bf16.gmra.mxu0 %v637
        %v1055 = vpop.f32.mrf.mxu0
        %v1056 = vadd.f32 %v997, %v1055
        %v1057 = vpop.f32.mrf.mxu0
        %v1058 = vadd.f32 %v999, %v1057
        %1059 = vmatmul.bf16.gmra.mxu0 %v640
        %v1060 = vpop.f32.mrf.mxu0
        %v1061 = vadd.f32 %v1002, %v1060
        %v1062 = vpop.f32.mrf.mxu0
        %v1063 = vadd.f32 %v1004, %v1062
        %1064 = vmatmul.bf16.gmra.mxu0 %v643
        %v1065 = vpop.f32.mrf.mxu0
        %v1066 = vadd.f32 %v1007, %v1065
        %v1067 = vpop.f32.mrf.mxu0
        %v1068 = vadd.f32 %v1009, %v1067
        %1069 = vmatmul.bf16.gmra.mxu0 %v646
        %v1070 = vpop.f32.mrf.mxu0
        %v1071 = vadd.f32 %v1012, %v1070
        %v1072 = vpop.f32.mrf.mxu0
        %v1073 = vadd.f32 %v1014, %v1072
        %1074 = vmatmul.bf16.gmra.mxu0 %v649
        %v1075 = vpop.f32.mrf.mxu0
        %v1076 = vadd.f32 %v1017, %v1075
        %v1077 = vpop.f32.mrf.mxu0
        %v1078 = vadd.f32 %v1019, %v1077
        %1079 = vmatmul.bf16.gmra.mxu0 %v652
        %v1080 = vpop.f32.mrf.mxu0
        %v1081 = vadd.f32 %v1022, %v1080
        %v1082 = vpop.f32.mrf.mxu0
        %v1083 = vadd.f32 %v1024, %v1082
        %1084 = vdwg.mxu0
        %v1133 = vunpack.c.l.b16 %v668
        %v1134 = vunpack.c.l.b16 %v669
        %v1135 = vunpack.c.l.b16 %v670
        %v1136 = vunpack.c.l.b16 %v671
        %v1137 = vunpack.c.l.b16 %v672
        %v1138 = vunpack.c.l.b16 %v673
        %v1139 = vunpack.c.l.b16 %v674
        %v1140 = vunpack.c.l.b16 %v675
        %v1141 = vunpack.c.l.b16 %v676
        %v1142 = vunpack.c.l.b16 %v677
        %v1143 = vunpack.c.l.b16 %v678
        %v1144 = vunpack.c.l.b16 %v679
        %v1145 = vunpack.c.l.b16 %v680
        %v1146 = vunpack.c.l.b16 %v681
        %v1147 = vunpack.c.l.b16 %v682
        %v1148 = vunpack.c.l.b16 %v683
        %v1149 = vunpack.c.l.b16 %v684
        %v1150 = vunpack.c.l.b16 %v685
        %v1151 = vunpack.c.l.b16 %v686
        %v1152 = vunpack.c.l.b16 %v687
        %v1153 = vunpack.c.l.b16 %v688
        %v1154 = vunpack.c.l.b16 %v689
        %v1155 = vunpack.c.l.b16 %v690
        %v1156 = vunpack.c.l.b16 %v691
        %v1157 = vunpack.c.l.b16 %v692
        %v1158 = vunpack.c.l.b16 %v693
        %v1159 = vunpack.c.l.b16 %v694
        %v1160 = vunpack.c.l.b16 %v695
        %v1161 = vunpack.c.l.b16 %v696
        %v1162 = vunpack.c.l.b16 %v697
        %v1163 = vunpack.c.l.b16 %v698
        %v1164 = vunpack.c.l.b16 %v699
        %v1165 = vunpack.c.l.b16 %v700
        %v1166 = vunpack.c.l.b16 %v701
        %v1167 = vunpack.c.l.b16 %v702
        %v1168 = vunpack.c.l.b16 %v703
        %v1169 = vunpack.c.l.b16 %v704
        %v1170 = vunpack.c.l.b16 %v705
        %v1171 = vunpack.c.l.b16 %v706
        %v1172 = vunpack.c.l.b16 %v707
        %v1173 = vunpack.c.l.b16 %v708
        %v1174 = vunpack.c.l.b16 %v709
        %v1175 = vunpack.c.l.b16 %v710
        %v1176 = vunpack.c.l.b16 %v711
        %v1177 = vunpack.c.l.b16 %v712
        %v1178 = vunpack.c.l.b16 %v713
        %v1179 = vunpack.c.l.b16 %v714
        %v1180 = vunpack.c.l.b16 %v715
        %v1181 = vpack.c.b16 %v1134, %v1133
        %v1182 = vpack.c.b16 %v1136, %v1135
        %v1183 = vpack.c.b16 %v1138, %v1137
        %v1184 = vpack.c.b16 %v1140, %v1139
        %v1185 = vpack.c.b16 %v1142, %v1141
        %v1186 = vpack.c.b16 %v1144, %v1143
        %v1187 = vpack.c.b16 %v1146, %v1145
        %v1188 = vpack.c.b16 %v1148, %v1147
        %v1189 = vpack.c.b16 %v1150, %v1149
        %v1190 = vpack.c.b16 %v1152, %v1151
        %v1191 = vpack.c.b16 %v1154, %v1153
        %v1192 = vpack.c.b16 %v1156, %v1155
        %v1193 = vpack.c.b16 %v1158, %v1157
        %v1194 = vpack.c.b16 %v1160, %v1159
        %v1195 = vpack.c.b16 %v1162, %v1161
        %v1196 = vpack.c.b16 %v1164, %v1163
        %v1197 = vpack.c.b16 %v1166, %v1165
        %v1198 = vpack.c.b16 %v1168, %v1167
        %v1199 = vpack.c.b16 %v1170, %v1169
        %v1200 = vpack.c.b16 %v1172, %v1171
        %v1201 = vpack.c.b16 %v1174, %v1173
        %v1202 = vpack.c.b16 %v1176, %v1175
        %v1203 = vpack.c.b16 %v1178, %v1177
        %v1204 = vpack.c.b16 %v1180, %v1179
        %1229 = vmatpush.bf16.msra.mxu0 %v1188
        %1230 = vmatpush.bf16.msra.mxu0 %v1187
        %1231 = vmatpush.bf16.msra.mxu0 %v1186
        %1232 = vmatpush.bf16.msra.mxu0 %v1185
        %1233 = vmatpush.bf16.msra.mxu0 %v1184
        %1234 = vmatpush.bf16.msra.mxu0 %v1183
        %1235 = vmatpush.bf16.msra.mxu0 %v1182
        %1236 = vmatpush.bf16.msra.mxu0 %v1181
        %1237 = vmatmul.bf16.gmra.mxu0 %v366
        %v1238 = vpop.f32.mrf.mxu0
        %v1239 = vadd.f32 %v1036, %v1238
        %v1240 = vpop.f32.mrf.mxu0
        %v1241 = vadd.f32 %v1038, %v1240
        %1242 = vmatmul.bf16.gmra.mxu0 %v367
        %v1243 = vpop.f32.mrf.mxu0
        %v1244 = vadd.f32 %v1041, %v1243
        %v1245 = vpop.f32.mrf.mxu0
        %v1246 = vadd.f32 %v1043, %v1245
        %1247 = vmatmul.bf16.gmra.mxu0 %v368
        %v1248 = vpop.f32.mrf.mxu0
        %v1249 = vadd.f32 %v1046, %v1248
        %v1250 = vpop.f32.mrf.mxu0
        %v1251 = vadd.f32 %v1048, %v1250
        %1252 = vmatmul.bf16.gmra.mxu0 %v369
        %v1253 = vpop.f32.mrf.mxu0
        %v1254 = vadd.f32 %v1051, %v1253
        %v1255 = vpop.f32.mrf.mxu0
        %v1256 = vadd.f32 %v1053, %v1255
        %1257 = vmatmul.bf16.gmra.mxu0 %v370
        %v1258 = vpop.f32.mrf.mxu0
        %v1259 = vadd.f32 %v1056, %v1258
        %v1260 = vpop.f32.mrf.mxu0
        %v1261 = vadd.f32 %v1058, %v1260
        %1262 = vmatmul.bf16.gmra.mxu0 %v371
        %v1263 = vpop.f32.mrf.mxu0
        %v1264 = vadd.f32 %v1061, %v1263
        %v1265 = vpop.f32.mrf.mxu0
        %v1266 = vadd.f32 %v1063, %v1265
        %1267 = vmatmul.bf16.gmra.mxu0 %v372
        %v1268 = vpop.f32.mrf.mxu0
        %v1269 = vadd.f32 %v1066, %v1268
        %v1270 = vpop.f32.mrf.mxu0
        %v1271 = vadd.f32 %v1068, %v1270
        %1272 = vmatmul.bf16.gmra.mxu0 %v373
        %v1273 = vpop.f32.mrf.mxu0
        %v1274 = vadd.f32 %v1071, %v1273
        %v1275 = vpop.f32.mrf.mxu0
        %v1276 = vadd.f32 %v1073, %v1275
        %1277 = vmatmul.bf16.gmra.mxu0 %v374
        %v1278 = vpop.f32.mrf.mxu0
        %v1279 = vadd.f32 %v1076, %v1278
        %v1280 = vpop.f32.mrf.mxu0
        %v1281 = vadd.f32 %v1078, %v1280
        %1282 = vmatmul.bf16.gmra.mxu0 %v375
        %v1283 = vpop.f32.mrf.mxu0
        %v1284 = vadd.f32 %v1081, %v1283
        %v1285 = vpop.f32.mrf.mxu0
        %v1286 = vadd.f32 %v1083, %v1285
        %1287 = vdwg.mxu0
        %1288 = vmatpush.bf16.msra.mxu0 %v1196
        %1289 = vmatpush.bf16.msra.mxu0 %v1195
        %1290 = vmatpush.bf16.msra.mxu0 %v1194
        %1291 = vmatpush.bf16.msra.mxu0 %v1193
        %1292 = vmatpush.bf16.msra.mxu0 %v1192
        %1293 = vmatpush.bf16.msra.mxu0 %v1191
        %1294 = vmatpush.bf16.msra.mxu0 %v1190
        %1295 = vmatpush.bf16.msra.mxu0 %v1189
        %1296 = vmatmul.bf16.gmra.mxu0 %v438
        %v1297 = vpop.f32.mrf.mxu0
        %v1298 = vadd.f32 %v1239, %v1297
        %v1299 = vpop.f32.mrf.mxu0
        %v1300 = vadd.f32 %v1241, %v1299
        %1301 = vmatmul.bf16.gmra.mxu0 %v450
        %v1302 = vpop.f32.mrf.mxu0
        %v1303 = vadd.f32 %v1244, %v1302
        %v1304 = vpop.f32.mrf.mxu0
        %v1305 = vadd.f32 %v1246, %v1304
        %1306 = vmatmul.bf16.gmra.mxu0 %v462
        %v1307 = vpop.f32.mrf.mxu0
        %v1308 = vadd.f32 %v1249, %v1307
        %v1309 = vpop.f32.mrf.mxu0
        %v1310 = vadd.f32 %v1251, %v1309
        %1311 = vmatmul.bf16.gmra.mxu0 %v474
        %v1312 = vpop.f32.mrf.mxu0
        %v1313 = vadd.f32 %v1254, %v1312
        %v1314 = vpop.f32.mrf.mxu0
        %v1315 = vadd.f32 %v1256, %v1314
        %1316 = vmatmul.bf16.gmra.mxu0 %v486
        %v1317 = vpop.f32.mrf.mxu0
        %v1318 = vadd.f32 %v1259, %v1317
        %v1319 = vpop.f32.mrf.mxu0
        %v1320 = vadd.f32 %v1261, %v1319
        %1321 = vmatmul.bf16.gmra.mxu0 %v498
        %v1322 = vpop.f32.mrf.mxu0
        %v1323 = vadd.f32 %v1264, %v1322
        %v1324 = vpop.f32.mrf.mxu0
        %v1325 = vadd.f32 %v1266, %v1324
        %1326 = vmatmul.bf16.gmra.mxu0 %v510
        %v1327 = vpop.f32.mrf.mxu0
        %v1328 = vadd.f32 %v1269, %v1327
        %v1329 = vpop.f32.mrf.mxu0
        %v1330 = vadd.f32 %v1271, %v1329
        %1331 = vmatmul.bf16.gmra.mxu0 %v522
        %v1332 = vpop.f32.mrf.mxu0
        %v1333 = vadd.f32 %v1274, %v1332
        %v1334 = vpop.f32.mrf.mxu0
        %v1335 = vadd.f32 %v1276, %v1334
        %1336 = vmatmul.bf16.gmra.mxu0 %v534
        %v1337 = vpop.f32.mrf.mxu0
        %v1338 = vadd.f32 %v1279, %v1337
        %v1339 = vpop.f32.mrf.mxu0
        %v1340 = vadd.f32 %v1281, %v1339
        %1341 = vmatmul.bf16.gmra.mxu0 %v546
        %v1342 = vpop.f32.mrf.mxu0
        %v1343 = vadd.f32 %v1284, %v1342
        %v1344 = vpop.f32.mrf.mxu0
        %v1345 = vadd.f32 %v1286, %v1344
        %1346 = vdwg.mxu0
        %1347 = vmatpush.bf16.msra.mxu0 %v1204
        %1348 = vmatpush.bf16.msra.mxu0 %v1203
        %1349 = vmatpush.bf16.msra.mxu0 %v1202
        %1350 = vmatpush.bf16.msra.mxu0 %v1201
        %1351 = vmatpush.bf16.msra.mxu0 %v1200
        %1352 = vmatpush.bf16.msra.mxu0 %v1199
        %1353 = vmatpush.bf16.msra.mxu0 %v1198
        %1354 = vmatpush.bf16.msra.mxu0 %v1197
        %1355 = vmatmul.bf16.gmra.mxu0 %v622
        %v1356 = vpop.f32.mrf.mxu0
        %v1357 = vadd.f32 %v1298, %v1356
        %v1358 = vpop.f32.mrf.mxu0
        %v1359 = vadd.f32 %v1300, %v1358
        %1360 = vmatmul.bf16.gmra.mxu0 %v625
        %v1361 = vpop.f32.mrf.mxu0
        %v1362 = vadd.f32 %v1303, %v1361
        %v1363 = vpop.f32.mrf.mxu0
        %v1364 = vadd.f32 %v1305, %v1363
        %1365 = vmatmul.bf16.gmra.mxu0 %v628
        %v1366 = vpop.f32.mrf.mxu0
        %v1367 = vadd.f32 %v1308, %v1366
        %v1368 = vpop.f32.mrf.mxu0
        %v1369 = vadd.f32 %v1310, %v1368
        %1370 = vmatmul.bf16.gmra.mxu0 %v631
        %v1371 = vpop.f32.mrf.mxu0
        %v1372 = vadd.f32 %v1313, %v1371
        %v1373 = vpop.f32.mrf.mxu0
        %v1374 = vadd.f32 %v1315, %v1373
        %1375 = vmatmul.bf16.gmra.mxu0 %v634
        %v1376 = vpop.f32.mrf.mxu0
        %v1377 = vadd.f32 %v1318, %v1376
        %v1378 = vpop.f32.mrf.mxu0
        %v1379 = vadd.f32 %v1320, %v1378
        %1380 = vmatmul.bf16.gmra.mxu0 %v637
        %v1381 = vpop.f32.mrf.mxu0
        %v1382 = vadd.f32 %v1323, %v1381
        %v1383 = vpop.f32.mrf.mxu0
        %v1384 = vadd.f32 %v1325, %v1383
        %1385 = vmatmul.bf16.gmra.mxu0 %v640
        %v1386 = vpop.f32.mrf.mxu0
        %v1387 = vadd.f32 %v1328, %v1386
        %v1388 = vpop.f32.mrf.mxu0
        %v1389 = vadd.f32 %v1330, %v1388
        %1390 = vmatmul.bf16.gmra.mxu0 %v643
        %v1391 = vpop.f32.mrf.mxu0
        %v1392 = vadd.f32 %v1333, %v1391
        %v1393 = vpop.f32.mrf.mxu0
        %v1394 = vadd.f32 %v1335, %v1393
        %1395 = vmatmul.bf16.gmra.mxu0 %v646
        %v1396 = vpop.f32.mrf.mxu0
        %v1397 = vadd.f32 %v1338, %v1396
        %v1398 = vpop.f32.mrf.mxu0
        %v1399 = vadd.f32 %v1340, %v1398
        %1400 = vmatmul.bf16.gmra.mxu0 %v649
        %v1401 = vpop.f32.mrf.mxu0
        %v1402 = vadd.f32 %v1343, %v1401
        %v1403 = vpop.f32.mrf.mxu0
        %v1404 = vadd.f32 %v1345, %v1403
        %1405 = vdwg.mxu0
        %v1406 = vld [vmem:[%s1 + $0x180] sm:$0xf]
        %v1407 = vld [vmem:[%s1 + $0x184] sm:$0xf]
        %v1408 = vld [vmem:[%s1 + $0x188] sm:$0xf]
        %v1409 = vld [vmem:[%s1 + $0x18c] sm:$0xf]
        %v1410 = vld [vmem:[%s1 + $0x190] sm:$0xf]
        %v1411 = vld [vmem:[%s1 + $0x194] sm:$0xf]
        %v1412 = vld [vmem:[%s1 + $0x198] sm:$0xf]
        %v1413 = vld [vmem:[%s1 + $0x19c] sm:$0xf]
        %v1414 = vld [vmem:[%s1 + $0x1a0] sm:$0xf]
        %v1415 = vld [vmem:[%s1 + $0x1a4] sm:$0xf]
        %v1416 = vld [vmem:[%s1 + $0x1a8] sm:$0xf]
        %v1417 = vld [vmem:[%s1 + $0x1ac] sm:$0xf]
        %v1418 = vld [vmem:[%s1 + $0x1b0] sm:$0xf]
        %v1419 = vld [vmem:[%s1 + $0x1b4] sm:$0xf]
        %v1420 = vld [vmem:[%s1 + $0x1b8] sm:$0xf]
        %v1421 = vld [vmem:[%s1 + $0x1bc] sm:$0xf]
        %v1422 = vld [vmem:[%s1 + $0x1c0] sm:$0xf]
        %v1423 = vld [vmem:[%s1 + $0x1c4] sm:$0xf]
        %v1424 = vld [vmem:[%s1 + $0x1c8] sm:$0xf]
        %v1425 = vld [vmem:[%s1 + $0x1cc] sm:$0xf]
        %v1426 = vld [vmem:[%s1 + $0x1d0] sm:$0xf]
        %v1427 = vld [vmem:[%s1 + $0x1d4] sm:$0xf]
        %v1428 = vld [vmem:[%s1 + $0x1d8] sm:$0xf]
        %v1429 = vld [vmem:[%s1 + $0x1dc] sm:$0xf]
        %v1430 = vld [vmem:[%s1 + $0x1e0] sm:$0xf]
        %v1431 = vld [vmem:[%s1 + $0x1e4] sm:$0xf]
        %v1432 = vld [vmem:[%s1 + $0x1e8] sm:$0xf]
        %v1433 = vld [vmem:[%s1 + $0x1ec] sm:$0xf]
        %v1434 = vld [vmem:[%s1 + $0x1f0] sm:$0xf]
        %v1435 = vld [vmem:[%s1 + $0x1f4] sm:$0xf]
        %v1436 = vld [vmem:[%s1 + $0x1f8] sm:$0xf]
        %v1437 = vld [vmem:[%s1 + $0x1fc] sm:$0xf]
        %v1438 = vld [vmem:[%s1 + $0x200] sm:$0xf]
        %v1439 = vld [vmem:[%s1 + $0x204] sm:$0xf]
        %v1440 = vld [vmem:[%s1 + $0x208] sm:$0xf]
        %v1441 = vld [vmem:[%s1 + $0x20c] sm:$0xf]
        %v1442 = vld [vmem:[%s1 + $0x210] sm:$0xf]
        %v1443 = vld [vmem:[%s1 + $0x214] sm:$0xf]
        %v1444 = vld [vmem:[%s1 + $0x218] sm:$0xf]
        %v1445 = vld [vmem:[%s1 + $0x21c] sm:$0xf]
        %v1446 = vld [vmem:[%s1 + $0x220] sm:$0xf]
        %v1447 = vld [vmem:[%s1 + $0x224] sm:$0xf]
        %v1448 = vld [vmem:[%s1 + $0x228] sm:$0xf]
        %v1449 = vld [vmem:[%s1 + $0x22c] sm:$0xf]
        %v1450 = vld [vmem:[%s1 + $0x230] sm:$0xf]
        %v1451 = vld [vmem:[%s1 + $0x234] sm:$0xf]
        %v1452 = vld [vmem:[%s1 + $0x238] sm:$0xf]
        %v1453 = vld [vmem:[%s1 + $0x23c] sm:$0xf]
        %v1502 = vunpack.c.l.b16 %v1406
        %v1503 = vunpack.c.l.b16 %v1407
        %v1504 = vunpack.c.l.b16 %v1408
        %v1505 = vunpack.c.l.b16 %v1409
        %v1506 = vunpack.c.l.b16 %v1410
        %v1507 = vunpack.c.l.b16 %v1411
        %v1508 = vunpack.c.l.b16 %v1412
        %v1509 = vunpack.c.l.b16 %v1413
        %v1510 = vunpack.c.l.b16 %v1414
        %v1511 = vunpack.c.l.b16 %v1415
        %v1512 = vunpack.c.l.b16 %v1416
        %v1513 = vunpack.c.l.b16 %v1417
        %v1514 = vunpack.c.l.b16 %v1418
        %v1515 = vunpack.c.l.b16 %v1419
        %v1516 = vunpack.c.l.b16 %v1420
        %v1517 = vunpack.c.l.b16 %v1421
        %v1518 = vunpack.c.l.b16 %v1422
        %v1519 = vunpack.c.l.b16 %v1423
        %v1520 = vunpack.c.l.b16 %v1424
        %v1521 = vunpack.c.l.b16 %v1425
        %v1522 = vunpack.c.l.b16 %v1426
        %v1523 = vunpack.c.l.b16 %v1427
        %v1524 = vunpack.c.l.b16 %v1428
        %v1525 = vunpack.c.l.b16 %v1429
        %v1526 = vunpack.c.l.b16 %v1430
        %v1527 = vunpack.c.l.b16 %v1431
        %v1528 = vunpack.c.l.b16 %v1432
        %v1529 = vunpack.c.l.b16 %v1433
        %v1530 = vunpack.c.l.b16 %v1434
        %v1531 = vunpack.c.l.b16 %v1435
        %v1532 = vunpack.c.l.b16 %v1436
        %v1533 = vunpack.c.l.b16 %v1437
        %v1534 = vunpack.c.l.b16 %v1438
        %v1535 = vunpack.c.l.b16 %v1439
        %v1536 = vunpack.c.l.b16 %v1440
        %v1537 = vunpack.c.l.b16 %v1441
        %v1538 = vunpack.c.l.b16 %v1442
        %v1539 = vunpack.c.l.b16 %v1443
        %v1540 = vunpack.c.l.b16 %v1444
        %v1541 = vunpack.c.l.b16 %v1445
        %v1542 = vunpack.c.l.b16 %v1446
        %v1543 = vunpack.c.l.b16 %v1447
        %v1544 = vunpack.c.l.b16 %v1448
        %v1545 = vunpack.c.l.b16 %v1449
        %v1546 = vunpack.c.l.b16 %v1450
        %v1547 = vunpack.c.l.b16 %v1451
        %v1548 = vunpack.c.l.b16 %v1452
        %v1549 = vunpack.c.l.b16 %v1453
        %v1550 = vpack.c.b16 %v1503, %v1502
        %v1551 = vpack.c.b16 %v1505, %v1504
        %v1552 = vpack.c.b16 %v1507, %v1506
        %v1553 = vpack.c.b16 %v1509, %v1508
        %v1554 = vpack.c.b16 %v1511, %v1510
        %v1555 = vpack.c.b16 %v1513, %v1512
        %v1556 = vpack.c.b16 %v1515, %v1514
        %v1557 = vpack.c.b16 %v1517, %v1516
        %v1558 = vpack.c.b16 %v1519, %v1518
        %v1559 = vpack.c.b16 %v1521, %v1520
        %v1560 = vpack.c.b16 %v1523, %v1522
        %v1561 = vpack.c.b16 %v1525, %v1524
        %v1562 = vpack.c.b16 %v1527, %v1526
        %v1563 = vpack.c.b16 %v1529, %v1528
        %v1564 = vpack.c.b16 %v1531, %v1530
        %v1565 = vpack.c.b16 %v1533, %v1532
        %v1566 = vpack.c.b16 %v1535, %v1534
        %v1567 = vpack.c.b16 %v1537, %v1536
        %v1568 = vpack.c.b16 %v1539, %v1538
        %v1569 = vpack.c.b16 %v1541, %v1540
        %v1570 = vpack.c.b16 %v1543, %v1542
        %v1571 = vpack.c.b16 %v1545, %v1544
        %v1572 = vpack.c.b16 %v1547, %v1546
        %v1573 = vpack.c.b16 %v1549, %v1548
        %1598 = vmatpush.bf16.msra.mxu0 %v1557
        %1599 = vmatpush.bf16.msra.mxu0 %v1556
        %1600 = vmatpush.bf16.msra.mxu0 %v1555
        %1601 = vmatpush.bf16.msra.mxu0 %v1554
        %1602 = vmatpush.bf16.msra.mxu0 %v1553
        %1603 = vmatpush.bf16.msra.mxu0 %v1552
        %1604 = vmatpush.bf16.msra.mxu0 %v1551
        %1605 = vmatpush.bf16.msra.mxu0 %v1550
        %1606 = vmatmul.bf16.gmra.mxu0 %v368
        %v1607 = vpop.f32.mrf.mxu0
        %v1608 = vadd.f32 0.0, %v1607
        %v1609 = vpop.f32.mrf.mxu0
        %v1610 = vadd.f32 0.0, %v1609
        %1611 = vmatmul.bf16.gmra.mxu0 %v369
        %v1612 = vpop.f32.mrf.mxu0
        %v1613 = vadd.f32 0.0, %v1612
        %v1614 = vpop.f32.mrf.mxu0
        %v1615 = vadd.f32 0.0, %v1614
        %1616 = vmatmul.bf16.gmra.mxu0 %v370
        %v1617 = vpop.f32.mrf.mxu0
        %v1618 = vadd.f32 0.0, %v1617
        %v1619 = vpop.f32.mrf.mxu0
        %v1620 = vadd.f32 0.0, %v1619
        %1621 = vmatmul.bf16.gmra.mxu0 %v371
        %v1622 = vpop.f32.mrf.mxu0
        %v1623 = vadd.f32 0.0, %v1622
        %v1624 = vpop.f32.mrf.mxu0
        %v1625 = vadd.f32 0.0, %v1624
        %1626 = vmatmul.bf16.gmra.mxu0 %v372
        %v1627 = vpop.f32.mrf.mxu0
        %v1628 = vadd.f32 0.0, %v1627
        %v1629 = vpop.f32.mrf.mxu0
        %v1630 = vadd.f32 0.0, %v1629
        %1631 = vmatmul.bf16.gmra.mxu0 %v373
        %v1632 = vpop.f32.mrf.mxu0
        %v1633 = vadd.f32 0.0, %v1632
        %v1634 = vpop.f32.mrf.mxu0
        %v1635 = vadd.f32 0.0, %v1634
        %1636 = vmatmul.bf16.gmra.mxu0 %v374
        %v1637 = vpop.f32.mrf.mxu0
        %v1638 = vadd.f32 0.0, %v1637
        %v1639 = vpop.f32.mrf.mxu0
        %v1640 = vadd.f32 0.0, %v1639
        %1641 = vmatmul.bf16.gmra.mxu0 %v375
        %v1642 = vpop.f32.mrf.mxu0
        %v1643 = vadd.f32 0.0, %v1642
        %v1644 = vpop.f32.mrf.mxu0
        %v1645 = vadd.f32 0.0, %v1644
        %1646 = vmatmul.bf16.gmra.mxu0 %v376
        %v1647 = vpop.f32.mrf.mxu0
        %v1648 = vadd.f32 0.0, %v1647
        %v1649 = vpop.f32.mrf.mxu0
        %v1650 = vadd.f32 0.0, %v1649
        %1651 = vmatmul.bf16.gmra.mxu0 %v377
        %v1652 = vpop.f32.mrf.mxu0
        %v1653 = vadd.f32 0.0, %v1652
        %v1654 = vpop.f32.mrf.mxu0
        %v1655 = vadd.f32 0.0, %v1654
        %1656 = vdwg.mxu0
        %1657 = vmatpush.bf16.msra.mxu0 %v1565
        %1658 = vmatpush.bf16.msra.mxu0 %v1564
        %1659 = vmatpush.bf16.msra.mxu0 %v1563
        %1660 = vmatpush.bf16.msra.mxu0 %v1562
        %1661 = vmatpush.bf16.msra.mxu0 %v1561
        %1662 = vmatpush.bf16.msra.mxu0 %v1560
        %1663 = vmatpush.bf16.msra.mxu0 %v1559
        %1664 = vmatpush.bf16.msra.mxu0 %v1558
        %1665 = vmatmul.bf16.gmra.mxu0 %v462
        %v1666 = vpop.f32.mrf.mxu0
        %v1667 = vadd.f32 %v1608, %v1666
        %v1668 = vpop.f32.mrf.mxu0
        %v1669 = vadd.f32 %v1610, %v1668
        %1670 = vmatmul.bf16.gmra.mxu0 %v474
        %v1671 = vpop.f32.mrf.mxu0
        %v1672 = vadd.f32 %v1613, %v1671
        %v1673 = vpop.f32.mrf.mxu0
        %v1674 = vadd.f32 %v1615, %v1673
        %1675 = vmatmul.bf16.gmra.mxu0 %v486
        %v1676 = vpop.f32.mrf.mxu0
        %v1677 = vadd.f32 %v1618, %v1676
        %v1678 = vpop.f32.mrf.mxu0
        %v1679 = vadd.f32 %v1620, %v1678
        %1680 = vmatmul.bf16.gmra.mxu0 %v498
        %v1681 = vpop.f32.mrf.mxu0
        %v1682 = vadd.f32 %v1623, %v1681
        %v1683 = vpop.f32.mrf.mxu0
        %v1684 = vadd.f32 %v1625, %v1683
        %1685 = vmatmul.bf16.gmra.mxu0 %v510
        %v1686 = vpop.f32.mrf.mxu0
        %v1687 = vadd.f32 %v1628, %v1686
        %v1688 = vpop.f32.mrf.mxu0
        %v1689 = vadd.f32 %v1630, %v1688
        %1690 = vmatmul.bf16.gmra.mxu0 %v522
        %v1691 = vpop.f32.mrf.mxu0
        %v1692 = vadd.f32 %v1633, %v1691
        %v1693 = vpop.f32.mrf.mxu0
        %v1694 = vadd.f32 %v1635, %v1693
        %1695 = vmatmul.bf16.gmra.mxu0 %v534
        %v1696 = vpop.f32.mrf.mxu0
        %v1697 = vadd.f32 %v1638, %v1696
        %v1698 = vpop.f32.mrf.mxu0
        %v1699 = vadd.f32 %v1640, %v1698
        %1700 = vmatmul.bf16.gmra.mxu0 %v546
        %v1701 = vpop.f32.mrf.mxu0
        %v1702 = vadd.f32 %v1643, %v1701
        %v1703 = vpop.f32.mrf.mxu0
        %v1704 = vadd.f32 %v1645, %v1703
        %1705 = vmatmul.bf16.gmra.mxu0 %v558
        %v1706 = vpop.f32.mrf.mxu0
        %v1707 = vadd.f32 %v1648, %v1706
        %v1708 = vpop.f32.mrf.mxu0
        %v1709 = vadd.f32 %v1650, %v1708
        %1710 = vmatmul.bf16.gmra.mxu0 %v570
        %v1711 = vpop.f32.mrf.mxu0
        %v1712 = vadd.f32 %v1653, %v1711
        %v1713 = vpop.f32.mrf.mxu0
        %v1714 = vadd.f32 %v1655, %v1713
        %1715 = vdwg.mxu0
        %1716 = vmatpush.bf16.msra.mxu0 %v1573
        %1717 = vmatpush.bf16.msra.mxu0 %v1572
        %1718 = vmatpush.bf16.msra.mxu0 %v1571
        %1719 = vmatpush.bf16.msra.mxu0 %v1570
        %1720 = vmatpush.bf16.msra.mxu0 %v1569
        %1721 = vmatpush.bf16.msra.mxu0 %v1568
        %1722 = vmatpush.bf16.msra.mxu0 %v1567
        %1723 = vmatpush.bf16.msra.mxu0 %v1566
        %1724 = vmatmul.bf16.gmra.mxu0 %v628
        %v1725 = vpop.f32.mrf.mxu0
        %v1726 = vadd.f32 %v1667, %v1725
        %v1727 = vpop.f32.mrf.mxu0
        %v1728 = vadd.f32 %v1669, %v1727
        %1729 = vmatmul.bf16.gmra.mxu0 %v631
        %v1730 = vpop.f32.mrf.mxu0
        %v1731 = vadd.f32 %v1672, %v1730
        %v1732 = vpop.f32.mrf.mxu0
        %v1733 = vadd.f32 %v1674, %v1732
        %1734 = vmatmul.bf16.gmra.mxu0 %v634
        %v1735 = vpop.f32.mrf.mxu0
        %v1736 = vadd.f32 %v1677, %v1735
        %v1737 = vpop.f32.mrf.mxu0
        %v1738 = vadd.f32 %v1679, %v1737
        %1739 = vmatmul.bf16.gmra.mxu0 %v637
        %v1740 = vpop.f32.mrf.mxu0
        %v1741 = vadd.f32 %v1682, %v1740
        %v1742 = vpop.f32.mrf.mxu0
        %v1743 = vadd.f32 %v1684, %v1742
        %1744 = vmatmul.bf16.gmra.mxu0 %v640
        %v1745 = vpop.f32.mrf.mxu0
        %v1746 = vadd.f32 %v1687, %v1745
        %v1747 = vpop.f32.mrf.mxu0
        %v1748 = vadd.f32 %v1689, %v1747
        %1749 = vmatmul.bf16.gmra.mxu0 %v643
        %v1750 = vpop.f32.mrf.mxu0
        %v1751 = vadd.f32 %v1692, %v1750
        %v1752 = vpop.f32.mrf.mxu0
        %v1753 = vadd.f32 %v1694, %v1752
        %1754 = vmatmul.bf16.gmra.mxu0 %v646
        %v1755 = vpop.f32.mrf.mxu0
        %v1756 = vadd.f32 %v1697, %v1755
        %v1757 = vpop.f32.mrf.mxu0
        %v1758 = vadd.f32 %v1699, %v1757
        %1759 = vmatmul.bf16.gmra.mxu0 %v649
        %v1760 = vpop.f32.mrf.mxu0
        %v1761 = vadd.f32 %v1702, %v1760
        %v1762 = vpop.f32.mrf.mxu0
        %v1763 = vadd.f32 %v1704, %v1762
        %1764 = vmatmul.bf16.gmra.mxu0 %v652
        %v1765 = vpop.f32.mrf.mxu0
        %v1766 = vadd.f32 %v1707, %v1765
        %v1767 = vpop.f32.mrf.mxu0
        %v1768 = vadd.f32 %v1709, %v1767
        %1769 = vmatmul.bf16.gmra.mxu0 %v655
        %v1770 = vpop.f32.mrf.mxu0
        %v1771 = vadd.f32 %v1712, %v1770
        %v1772 = vpop.f32.mrf.mxu0
        %v1773 = vadd.f32 %v1714, %v1772
        %1774 = vdwg.mxu0
        %v1775 = vadd.f32 %v1357, %v1726
        %v1776 = vadd.f32 %v1359, %v1728
        %v1777 = vadd.f32 %v1362, %v1731
        %v1778 = vadd.f32 %v1364, %v1733
        %v1779 = vadd.f32 %v1367, %v1736
        %v1780 = vadd.f32 %v1369, %v1738
        %v1781 = vadd.f32 %v1372, %v1741
        %v1782 = vadd.f32 %v1374, %v1743
        %v1783 = vadd.f32 %v1377, %v1746
        %v1784 = vadd.f32 %v1379, %v1748
        %v1785 = vadd.f32 %v1382, %v1751
        %v1786 = vadd.f32 %v1384, %v1753
        %v1787 = vadd.f32 %v1387, %v1756
        %v1788 = vadd.f32 %v1389, %v1758
        %v1789 = vadd.f32 %v1392, %v1761
        %v1790 = vadd.f32 %v1394, %v1763
        %v1791 = vadd.f32 %v1397, %v1766
        %v1792 = vadd.f32 %v1399, %v1768
        %v1793 = vadd.f32 %v1402, %v1771
        %v1794 = vadd.f32 %v1404, %v1773
        %v1795 = vld [vmem:[%s2] sm:$0x1]
        %v1797 = vperm.slane %v1795, 0
        %v1799 = vadd.f32 %v1775, %v1797
        %v1800 = vadd.f32 %v1776, %v1797
        %v1801 = vadd.f32 %v1777, %v1797
        %v1802 = vadd.f32 %v1778, %v1797
        %v1803 = vadd.f32 %v1779, %v1797
        %v1804 = vadd.f32 %v1780, %v1797
        %v1805 = vadd.f32 %v1781, %v1797
        %v1806 = vadd.f32 %v1782, %v1797
        %v1807 = vadd.f32 %v1783, %v1797
        %v1808 = vadd.f32 %v1784, %v1797
        %v1809 = vadd.f32 %v1785, %v1797
        %v1810 = vadd.f32 %v1786, %v1797
        %v1811 = vadd.f32 %v1787, %v1797
        %v1812 = vadd.f32 %v1788, %v1797
        %v1813 = vadd.f32 %v1789, %v1797
        %v1814 = vadd.f32 %v1790, %v1797
        %v1815 = vadd.f32 %v1791, %v1797
        %v1816 = vadd.f32 %v1792, %v1797
        %v1817 = vadd.f32 %v1793, %v1797
        %v1818 = vadd.f32 %v1794, %v1797
        %v1819 = vmax.f32 %v1799, 0.0
        %v1820 = vmax.f32 %v1800, 0.0
        %v1821 = vmax.f32 %v1801, 0.0
        %v1822 = vmax.f32 %v1802, 0.0
        %v1823 = vmax.f32 %v1803, 0.0
        %v1824 = vmax.f32 %v1804, 0.0
        %v1825 = vmax.f32 %v1805, 0.0
        %v1826 = vmax.f32 %v1806, 0.0
        %v1827 = vmax.f32 %v1807, 0.0
        %v1828 = vmax.f32 %v1808, 0.0
        %v1829 = vmax.f32 %v1809, 0.0
        %v1830 = vmax.f32 %v1810, 0.0
        %v1831 = vmax.f32 %v1811, 0.0
        %v1832 = vmax.f32 %v1812, 0.0
        %v1833 = vmax.f32 %v1813, 0.0
        %v1834 = vmax.f32 %v1814, 0.0
        %v1835 = vmax.f32 %v1815, 0.0
        %v1836 = vmax.f32 %v1816, 0.0
        %v1837 = vmax.f32 %v1817, 0.0
        %v1838 = vmax.f32 %v1818, 0.0
        %s1839 = smul.u32 %s25, 8
        %s1840 = ssub.s32 %s1839, 1
        %v1841 = vlaneseq
        %v1842 = vshrl.u32 %v1841, 7
        %v1843 = vadd.s32 %v1842, 8
        %v1844 = vstv %s1840
        %v1845 = vadd.s32 %v1844, %v1842
        %v1846 = vadd.s32 %v1844, %v1843
        %vm1847 = vcmp.ge.s32.totalorder %v1845, 0
        %vm1848 = vcmp.ge.s32.totalorder %v1846, 0
        %vm1849 = vcmp.lt.s32.totalorder %v1845, 16
        %vm1850 = vcmp.lt.s32.totalorder %v1846, 16
        %vm1851 = vmand %vm1847, %vm1849
        %vm1852 = vmand %vm1848, %vm1850
        %v1853 = vsel %vm1851, 1, 0
        %v1854 = vsel %vm1852, 1, 0
        %v1855 = vperm.slane %v1853, 0
        %v1856 = vperm.slane %v1853, 1
        %v1857 = vperm.slane %v1853, 2
        %v1858 = vperm.slane %v1853, 3
        %v1859 = vperm.slane %v1853, 4
        %v1860 = vperm.slane %v1853, 5
        %v1861 = vperm.slane %v1853, 6
        %v1862 = vperm.slane %v1853, 7
        %v1863 = vperm.slane %v1854, 0
        %v1864 = vperm.slane %v1854, 1
        %vm1865 = vcmp.ne.s32.totalorder %v1855, 0
        %vm1866 = vcmp.ne.s32.totalorder %v1856, 0
        %vm1867 = vcmp.ne.s32.totalorder %v1857, 0
        %vm1868 = vcmp.ne.s32.totalorder %v1858, 0
        %vm1869 = vcmp.ne.s32.totalorder %v1859, 0
        %vm1870 = vcmp.ne.s32.totalorder %v1860, 0
        %vm1871 = vcmp.ne.s32.totalorder %v1861, 0
        %vm1872 = vcmp.ne.s32.totalorder %v1862, 0
        %vm1873 = vcmp.ne.s32.totalorder %v1863, 0
        %vm1874 = vcmp.ne.s32.totalorder %v1864, 0
        %v1875 = vsel %vm1865, 1, 0
        %v1876 = vsel %vm1866, 1, 0
        %v1877 = vsel %vm1867, 1, 0
        %v1878 = vsel %vm1868, 1, 0
        %v1879 = vsel %vm1869, 1, 0
        %v1880 = vsel %vm1870, 1, 0
        %v1881 = vsel %vm1871, 1, 0
        %v1882 = vsel %vm1872, 1, 0
        %v1883 = vsel %vm1873, 1, 0
        %v1884 = vsel %vm1874, 1, 0
        %vm1885 = vcmp.eq.s32.totalorder %v1875, 1
        %vm1886 = vcmp.eq.s32.totalorder %v1876, 1
        %vm1887 = vcmp.eq.s32.totalorder %v1877, 1
        %vm1888 = vcmp.eq.s32.totalorder %v1878, 1
        %vm1889 = vcmp.eq.s32.totalorder %v1879, 1
        %vm1890 = vcmp.eq.s32.totalorder %v1880, 1
        %vm1891 = vcmp.eq.s32.totalorder %v1881, 1
        %vm1892 = vcmp.eq.s32.totalorder %v1882, 1
        %vm1893 = vcmp.eq.s32.totalorder %v1883, 1
        %vm1894 = vcmp.eq.s32.totalorder %v1884, 1
        %v1895 = vsel %vm1885, %v1819, 0.0
        %v1896 = vsel %vm1885, %v1820, 0.0
        %v1897 = vsel %vm1886, %v1821, 0.0
        %v1898 = vsel %vm1886, %v1822, 0.0
        %v1899 = vsel %vm1887, %v1823, 0.0
        %v1900 = vsel %vm1887, %v1824, 0.0
        %v1901 = vsel %vm1888, %v1825, 0.0
        %v1902 = vsel %vm1888, %v1826, 0.0
        %v1903 = vsel %vm1889, %v1827, 0.0
        %v1904 = vsel %vm1889, %v1828, 0.0
        %v1905 = vsel %vm1890, %v1829, 0.0
        %v1906 = vsel %vm1890, %v1830, 0.0
        %v1907 = vsel %vm1891, %v1831, 0.0
        %v1908 = vsel %vm1891, %v1832, 0.0
        %v1909 = vsel %vm1892, %v1833, 0.0
        %v1910 = vsel %vm1892, %v1834, 0.0
        %v1911 = vsel %vm1893, %v1835, 0.0
        %v1912 = vsel %vm1893, %v1836, 0.0
        %v1913 = vsel %vm1894, %v1837, 0.0
        %v1914 = vsel %vm1894, %v1838, 0.0
        %v1915 = vpack.c.bf16 %v1895, %v1895
        %v1916 = vpack.c.bf16 %v1896, %v1896
        %v1917 = vpack.c.bf16 %v1897, %v1897
        %v1918 = vpack.c.bf16 %v1898, %v1898
        %v1919 = vpack.c.bf16 %v1899, %v1899
        %v1920 = vpack.c.bf16 %v1900, %v1900
        %v1921 = vpack.c.bf16 %v1901, %v1901
        %v1922 = vpack.c.bf16 %v1902, %v1902
        %v1923 = vpack.c.bf16 %v1903, %v1903
        %v1924 = vpack.c.bf16 %v1904, %v1904
        %v1925 = vpack.c.bf16 %v1905, %v1905
        %v1926 = vpack.c.bf16 %v1906, %v1906
        %v1927 = vpack.c.bf16 %v1907, %v1907
        %v1928 = vpack.c.bf16 %v1908, %v1908
        %v1929 = vpack.c.bf16 %v1909, %v1909
        %v1930 = vpack.c.bf16 %v1910, %v1910
        %v1931 = vpack.c.bf16 %v1911, %v1911
        %v1932 = vpack.c.bf16 %v1912, %v1912
        %v1933 = vpack.c.bf16 %v1913, %v1913
        %v1934 = vpack.c.bf16 %v1914, %v1914
        %vm1935 = vcmask 1043459
        %vm1936 = vsmask.f32 7950
        %vm1937 = vmand %vm1935, %vm1936
        %v1938 = vld [vmem:[#allocation2 + $0x4] sm:$0x8]
        %v1939 = vsel %vm1937, 0, %v1938
        %1940 = vst [vmem:[#allocation2 + $0x4] sm:$0x8] %v1939
        %v1941 = vld [vmem:[#allocation2 + $0x1c] sm:$0x8]
        %v1942 = vsel %vm1937, 0, %v1941
        %1943 = vst [vmem:[#allocation2 + $0x1c] sm:$0x8] %v1942
        %v1944 = vld [vmem:[#allocation2 + $0x34] sm:$0x8]
        %v1945 = vsel %vm1937, 0, %v1944
        %1946 = vst [vmem:[#allocation2 + $0x34] sm:$0x8] %v1945
        %v1947 = vld [vmem:[#allocation2 + $0x4c] sm:$0x8]
        %v1948 = vsel %vm1937, 0, %v1947
        %1949 = vst [vmem:[#allocation2 + $0x4c] sm:$0x8] %v1948
        %v1950 = vld [vmem:[#allocation2 + $0x64] sm:$0x8]
        %v1951 = vsel %vm1937, 0, %v1950
        %1952 = vst [vmem:[#allocation2 + $0x64] sm:$0x8] %v1951
        %v1953 = vld [vmem:[#allocation2 + $0x7c] sm:$0x8]
        %v1954 = vsel %vm1937, 0, %v1953
        %1955 = vst [vmem:[#allocation2 + $0x7c] sm:$0x8] %v1954
        %v1956 = vld [vmem:[#allocation2 + $0x94] sm:$0x8]
        %v1957 = vsel %vm1937, 0, %v1956
        %1958 = vst [vmem:[#allocation2 + $0x94] sm:$0x8] %v1957
        %v1959 = vld [vmem:[#allocation2 + $0xac] sm:$0x8]
        %v1960 = vsel %vm1937, 0, %v1959
        %1961 = vst [vmem:[#allocation2 + $0xac] sm:$0x8] %v1960
        %v1962 = vld [vmem:[#allocation2 + $0xc4] sm:$0x8]
        %v1963 = vsel %vm1937, 0, %v1962
        %1964 = vst [vmem:[#allocation2 + $0xc4] sm:$0x8] %v1963
        %v1965 = vld [vmem:[#allocation2 + $0xdc] sm:$0x8]
        %v1966 = vsel %vm1937, 0, %v1965
        %1967 = vst [vmem:[#allocation2 + $0xdc] sm:$0x8] %v1966
        %vm1968 = vcmask 1040384
        %vm1969 = vsmask.f32 256
        %vm1970 = vmand %vm1968, %vm1969
        %v1971 = vld [vmem:[#allocation2 + $0x10] sm:$0x1]
        %v1972 = vsel %vm1970, 0, %v1971
        %1973 = vst [vmem:[#allocation2 + $0x10] sm:$0x1] %v1972
        %v1974 = vld [vmem:[#allocation2 + $0x28] sm:$0x1]
        %v1975 = vsel %vm1970, 0, %v1974
        %1976 = vst [vmem:[#allocation2 + $0x28] sm:$0x1] %v1975
        %v1977 = vld [vmem:[#allocation2 + $0x40] sm:$0x1]
        %v1978 = vsel %vm1970, 0, %v1977
        %1979 = vst [vmem:[#allocation2 + $0x40] sm:$0x1] %v1978
        %v1980 = vld [vmem:[#allocation2 + $0x58] sm:$0x1]
        %v1981 = vsel %vm1970, 0, %v1980
        %1982 = vst [vmem:[#allocation2 + $0x58] sm:$0x1] %v1981
        %v1983 = vld [vmem:[#allocation2 + $0x70] sm:$0x1]
        %v1984 = vsel %vm1970, 0, %v1983
        %1985 = vst [vmem:[#allocation2 + $0x70] sm:$0x1] %v1984
        %v1986 = vld [vmem:[#allocation2 + $0x88] sm:$0x1]
        %v1987 = vsel %vm1970, 0, %v1986
        %1988 = vst [vmem:[#allocation2 + $0x88] sm:$0x1] %v1987
        %v1989 = vld [vmem:[#allocation2 + $0xa0] sm:$0x1]
        %v1990 = vsel %vm1970, 0, %v1989
        %1991 = vst [vmem:[#allocation2 + $0xa0] sm:$0x1] %v1990
        %v1992 = vld [vmem:[#allocation2 + $0xb8] sm:$0x1]
        %v1993 = vsel %vm1970, 0, %v1992
        %1994 = vst [vmem:[#allocation2 + $0xb8] sm:$0x1] %v1993
        %v1995 = vld [vmem:[#allocation2 + $0xd0] sm:$0x1]
        %v1996 = vsel %vm1970, 0, %v1995
        %1997 = vst [vmem:[#allocation2 + $0xd0] sm:$0x1] %v1996
        %v1998 = vld [vmem:[#allocation2 + $0xe8] sm:$0x1]
        %v1999 = vsel %vm1970, 0, %v1998
        %2000 = vst [vmem:[#allocation2 + $0xe8] sm:$0x1] %v1999
        %2001 = vst [vmem:[#allocation2 + $0x8] sm:$0xf] %v1915
        %2002 = vst [vmem:[#allocation2 + $0xc] sm:$0xf] %v1916
        %2003 = vst [vmem:[#allocation2 + $0x20] sm:$0xf] %v1917
        %2004 = vst [vmem:[#allocation2 + $0x24] sm:$0xf] %v1918
        %2005 = vst [vmem:[#allocation2 + $0x38] sm:$0xf] %v1919
        %2006 = vst [vmem:[#allocation2 + $0x3c] sm:$0xf] %v1920
        %2007 = vst [vmem:[#allocation2 + $0x50] sm:$0xf] %v1921
        %2008 = vst [vmem:[#allocation2 + $0x54] sm:$0xf] %v1922
        %2009 = vst [vmem:[#allocation2 + $0x68] sm:$0xf] %v1923
        %2010 = vst [vmem:[#allocation2 + $0x6c] sm:$0xf] %v1924
        %2011 = vst [vmem:[#allocation2 + $0x80] sm:$0xf] %v1925
        %2012 = vst [vmem:[#allocation2 + $0x84] sm:$0xf] %v1926
        %2013 = vst [vmem:[#allocation2 + $0x98] sm:$0xf] %v1927
        %2014 = vst [vmem:[#allocation2 + $0x9c] sm:$0xf] %v1928
        %2015 = vst [vmem:[#allocation2 + $0xb0] sm:$0xf] %v1929
        %2016 = vst [vmem:[#allocation2 + $0xb4] sm:$0xf] %v1930
        %2017 = vst [vmem:[#allocation2 + $0xc8] sm:$0xf] %v1931
        %2018 = vst [vmem:[#allocation2 + $0xcc] sm:$0xf] %v1932
        %2019 = vst [vmem:[#allocation2 + $0xe0] sm:$0xf] %v1933
        %2020 = vst [vmem:[#allocation2 + $0xe4] sm:$0xf] %v1934
        %v2021 = vld [vmem:[#allocation2 + $0x4] sm:$0x8]
        %v2022 = vld [vmem:[#allocation2 + $0x8] sm:$0xf]
        %v2023 = vld [vmem:[#allocation2 + $0xc] sm:$0xf]
        %v2024 = vld [vmem:[#allocation2 + $0x1c] sm:$0x8]
        %v2025 = vld [vmem:[#allocation2 + $0x20] sm:$0xf]
        %v2026 = vld [vmem:[#allocation2 + $0x24] sm:$0xf]
        %v2027 = vld [vmem:[#allocation2 + $0x34] sm:$0x8]
        %v2028 = vld [vmem:[#allocation2 + $0x38] sm:$0xf]
        %v2029 = vld [vmem:[#allocation2 + $0x3c] sm:$0xf]
        %v2030 = vld [vmem:[#allocation2 + $0x4c] sm:$0x8]
        %v2031 = vld [vmem:[#allocation2 + $0x50] sm:$0xf]
        %v2032 = vld [vmem:[#allocation2 + $0x54] sm:$0xf]
        %v2033 = vld [vmem:[#allocation2 + $0x64] sm:$0x8]
        %v2034 = vld [vmem:[#allocation2 + $0x68] sm:$0xf]
        %v2035 = vld [vmem:[#allocation2 + $0x6c] sm:$0xf]
        %v2036 = vld [vmem:[#allocation2 + $0x7c] sm:$0x8]
        %v2037 = vld [vmem:[#allocation2 + $0x80] sm:$0xf]
        %v2038 = vld [vmem:[#allocation2 + $0x84] sm:$0xf]
        %v2039 = vld [vmem:[#allocation2 + $0x94] sm:$0x8]
        %v2040 = vld [vmem:[#allocation2 + $0x98] sm:$0xf]
        %v2041 = vld [vmem:[#allocation2 + $0x9c] sm:$0xf]
        %v2042 = vld [vmem:[#allocation2 + $0xac] sm:$0x8]
        %v2043 = vld [vmem:[#allocation2 + $0xb0] sm:$0xf]
        %v2044 = vld [vmem:[#allocation2 + $0xb4] sm:$0xf]
        %v2045 = vld [vmem:[#allocation2 + $0xc4] sm:$0x8]
        %v2046 = vld [vmem:[#allocation2 + $0xc8] sm:$0xf]
        %v2047 = vld [vmem:[#allocation2 + $0xcc] sm:$0xf]
        %v2048 = vld [vmem:[#allocation2 + $0xdc] sm:$0x8]
        %v2049 = vld [vmem:[#allocation2 + $0xe0] sm:$0xf]
        %v2050 = vld [vmem:[#allocation2 + $0xe4] sm:$0xf]
        %v2051 = vld [vmem:[#allocation2 + $0x10] sm:$0x1]
        %v2052 = vld [vmem:[#allocation2 + $0x28] sm:$0x1]
        %v2053 = vld [vmem:[#allocation2 + $0x40] sm:$0x1]
        %v2054 = vld [vmem:[#allocation2 + $0x58] sm:$0x1]
        %v2055 = vld [vmem:[#allocation2 + $0x70] sm:$0x1]
        %v2056 = vld [vmem:[#allocation2 + $0x88] sm:$0x1]
        %v2057 = vld [vmem:[#allocation2 + $0xa0] sm:$0x1]
        %v2058 = vld [vmem:[#allocation2 + $0xb8] sm:$0x1]
        %v2059 = vld [vmem:[#allocation2 + $0xd0] sm:$0x1]
        %v2060 = vld [vmem:[#allocation2 + $0xe8] sm:$0x1]
        %v2091 = vunpack.c.l.b16 %v2021
        %v2092 = vunpack.c.l.b16 %v2022
        %v2093 = vunpack.c.l.b16 %v2023
        %v2094 = vunpack.c.l.b16 %v2024
        %v2095 = vunpack.c.l.b16 %v2025
        %v2096 = vunpack.c.l.b16 %v2026
        %v2097 = vunpack.c.l.b16 %v2027
        %v2098 = vunpack.c.l.b16 %v2028
        %v2099 = vunpack.c.l.b16 %v2029
        %v2100 = vunpack.c.l.b16 %v2030
        %v2101 = vunpack.c.l.b16 %v2031
        %v2102 = vunpack.c.l.b16 %v2032
        %v2103 = vunpack.c.l.b16 %v2033
        %v2104 = vunpack.c.l.b16 %v2034
        %v2105 = vunpack.c.l.b16 %v2035
        %v2106 = vunpack.c.l.b16 %v2036
        %v2107 = vunpack.c.l.b16 %v2037
        %v2108 = vunpack.c.l.b16 %v2038
        %v2109 = vunpack.c.l.b16 %v2039
        %v2110 = vunpack.c.l.b16 %v2040
        %v2111 = vunpack.c.l.b16 %v2041
        %v2112 = vunpack.c.l.b16 %v2042
        %v2113 = vunpack.c.l.b16 %v2043
        %v2114 = vunpack.c.l.b16 %v2044
        %v2115 = vunpack.c.l.b16 %v2045
        %v2116 = vunpack.c.l.b16 %v2046
        %v2117 = vunpack.c.l.b16 %v2047
        %v2118 = vunpack.c.l.b16 %v2048
        %v2119 = vunpack.c.l.b16 %v2049
        %v2120 = vunpack.c.l.b16 %v2050
        %v2121 = vpack.c.b16 %v2092, %v2091
        %v2122 = vpack.c.b16 %v2093, %v2093
        %v2123 = vpack.c.b16 %v2095, %v2094
        %v2124 = vpack.c.b16 %v2096, %v2096
        %v2125 = vpack.c.b16 %v2098, %v2097
        %v2126 = vpack.c.b16 %v2099, %v2099
        %v2127 = vpack.c.b16 %v2101, %v2100
        %v2128 = vpack.c.b16 %v2102, %v2102
        %v2129 = vpack.c.b16 %v2104, %v2103
        %v2130 = vpack.c.b16 %v2105, %v2105
        %v2131 = vpack.c.b16 %v2107, %v2106
        %v2132 = vpack.c.b16 %v2108, %v2108
        %v2133 = vpack.c.b16 %v2110, %v2109
        %v2134 = vpack.c.b16 %v2111, %v2111
        %v2135 = vpack.c.b16 %v2113, %v2112
        %v2136 = vpack.c.b16 %v2114, %v2114
        %v2137 = vpack.c.b16 %v2116, %v2115
        %v2138 = vpack.c.b16 %v2117, %v2117
        %v2139 = vpack.c.b16 %v2119, %v2118
        %v2140 = vpack.c.b16 %v2120, %v2120
        %v2141 = vpack.c.b16 %v2093, %v2092
        %v2142 = vpack.c.b16 %v2096, %v2095
        %v2143 = vpack.c.b16 %v2099, %v2098
        %v2144 = vpack.c.b16 %v2102, %v2101
        %v2145 = vpack.c.b16 %v2105, %v2104
        %v2146 = vpack.c.b16 %v2108, %v2107
        %v2147 = vpack.c.b16 %v2111, %v2110
        %v2148 = vpack.c.b16 %v2114, %v2113
        %v2149 = vpack.c.b16 %v2117, %v2116
        %v2150 = vpack.c.b16 %v2120, %v2119
        %v2152 = vshrl.u32 %v2141, 16
        %v2154 = vrot.slane %v2152, 4
        %v2155 = vshll.u32 %v2141, 16
        %v2157 = vrot.slane %v2155, 5
        %v2158 = vor.u32 %v2154, %v2157
        %v2160 = vshrl.u32 %v2142, 16
        %v2162 = vrot.slane %v2160, 4
        %v2163 = vshll.u32 %v2142, 16
        %v2165 = vrot.slane %v2163, 5
        %v2166 = vor.u32 %v2162, %v2165
        %v2168 = vshrl.u32 %v2143, 16
        %v2170 = vrot.slane %v2168, 4
        %v2171 = vshll.u32 %v2143, 16
        %v2173 = vrot.slane %v2171, 5
        %v2174 = vor.u32 %v2170, %v2173
        %v2176 = vshrl.u32 %v2144, 16
        %v2178 = vrot.slane %v2176, 4
        %v2179 = vshll.u32 %v2144, 16
        %v2181 = vrot.slane %v2179, 5
        %v2182 = vor.u32 %v2178, %v2181
        %v2184 = vshrl.u32 %v2145, 16
        %v2186 = vrot.slane %v2184, 4
        %v2187 = vshll.u32 %v2145, 16
        %v2189 = vrot.slane %v2187, 5
        %v2190 = vor.u32 %v2186, %v2189
        %v2192 = vshrl.u32 %v2146, 16
        %v2194 = vrot.slane %v2192, 4
        %v2195 = vshll.u32 %v2146, 16
        %v2197 = vrot.slane %v2195, 5
        %v2198 = vor.u32 %v2194, %v2197
        %v2200 = vshrl.u32 %v2147, 16
        %v2202 = vrot.slane %v2200, 4
        %v2203 = vshll.u32 %v2147, 16
        %v2205 = vrot.slane %v2203, 5
        %v2206 = vor.u32 %v2202, %v2205
        %v2208 = vshrl.u32 %v2148, 16
        %v2210 = vrot.slane %v2208, 4
        %v2211 = vshll.u32 %v2148, 16
        %v2213 = vrot.slane %v2211, 5
        %v2214 = vor.u32 %v2210, %v2213
        %v2216 = vshrl.u32 %v2149, 16
        %v2218 = vrot.slane %v2216, 4
        %v2219 = vshll.u32 %v2149, 16
        %v2221 = vrot.slane %v2219, 5
        %v2222 = vor.u32 %v2218, %v2221
        %v2224 = vshrl.u32 %v2150, 16
        %v2226 = vrot.slane %v2224, 4
        %v2227 = vshll.u32 %v2150, 16
        %v2229 = vrot.slane %v2227, 5
        %v2230 = vor.u32 %v2226, %v2229
        %v2241 = vunpack.c.l.b16 %v2051
        %v2242 = vunpack.c.l.b16 %v2052
        %v2243 = vunpack.c.l.b16 %v2053
        %v2244 = vunpack.c.l.b16 %v2054
        %v2245 = vunpack.c.l.b16 %v2055
        %v2246 = vunpack.c.l.b16 %v2056
        %v2247 = vunpack.c.l.b16 %v2057
        %v2248 = vunpack.c.l.b16 %v2058
        %v2249 = vunpack.c.l.b16 %v2059
        %v2250 = vunpack.c.l.b16 %v2060
        %v2251 = vpack.c.b16 %v2241, %v2241
        %v2252 = vpack.c.b16 %v2242, %v2242
        %v2253 = vpack.c.b16 %v2243, %v2243
        %v2254 = vpack.c.b16 %v2244, %v2244
        %v2255 = vpack.c.b16 %v2245, %v2245
        %v2256 = vpack.c.b16 %v2246, %v2246
        %v2257 = vpack.c.b16 %v2247, %v2247
        %v2258 = vpack.c.b16 %v2248, %v2248
        %v2259 = vpack.c.b16 %v2249, %v2249
        %v2260 = vpack.c.b16 %v2250, %v2250
        %vm2261 = vcmask 1042432
        %v2262 = vrot.slane %v2141, 5
        %v2263 = vrot.slane %v2251, 5
        %v2264 = vsel %vm2261, %v2262, %v2263
        %v2265 = vrot.slane %v2142, 5
        %v2266 = vrot.slane %v2252, 5
        %v2267 = vsel %vm2261, %v2265, %v2266
        %v2268 = vrot.slane %v2143, 5
        %v2269 = vrot.slane %v2253, 5
        %v2270 = vsel %vm2261, %v2268, %v2269
        %v2271 = vrot.slane %v2144, 5
        %v2272 = vrot.slane %v2254, 5
        %v2273 = vsel %vm2261, %v2271, %v2272
        %v2274 = vrot.slane %v2145, 5
        %v2275 = vrot.slane %v2255, 5
        %v2276 = vsel %vm2261, %v2274, %v2275
        %v2277 = vrot.slane %v2146, 5
        %v2278 = vrot.slane %v2256, 5
        %v2279 = vsel %vm2261, %v2277, %v2278
        %v2280 = vrot.slane %v2147, 5
        %v2281 = vrot.slane %v2257, 5
        %v2282 = vsel %vm2261, %v2280, %v2281
        %v2283 = vrot.slane %v2148, 5
        %v2284 = vrot.slane %v2258, 5
        %v2285 = vsel %vm2261, %v2283, %v2284
        %v2286 = vrot.slane %v2149, 5
        %v2287 = vrot.slane %v2259, 5
        %v2288 = vsel %vm2261, %v2286, %v2287
        %v2289 = vrot.slane %v2150, 5
        %v2290 = vrot.slane %v2260, 5
        %v2291 = vsel %vm2261, %v2289, %v2290
        %vm2292 = vsmask.f32 4352
        %v2294 = vshrl.u32 %v2121, 16
        %v2296 = vrot.slane %v2294, 3
        %v2297 = vshll.u32 %v2121, 16
        %v2299 = vrot.slane %v2297, 4
        %v2300 = vor.u32 %v2296, %v2299
        %v2302 = vshrl.u32 %v2122, 16
        %v2304 = vrot.slane %v2302, 3
        %v2305 = vshll.u32 %v2122, 16
        %v2307 = vrot.slane %v2305, 4
        %v2308 = vor.u32 %v2304, %v2307
        %v2309 = vsel %vm2292, %v2300, %v2308
        %v2311 = vshrl.u32 %v2158, 16
        %v2313 = vrot.slane %v2311, 3
        %v2314 = vshll.u32 %v2158, 16
        %v2316 = vrot.slane %v2314, 4
        %v2317 = vor.u32 %v2313, %v2316
        %v2318 = vsel %vm2292, %v2317, %v2317
        %v2320 = vshrl.u32 %v2262, 16
        %v2322 = vrot.slane %v2320, 3
        %v2323 = vshll.u32 %v2262, 16
        %v2325 = vrot.slane %v2323, 4
        %v2326 = vor.u32 %v2322, %v2325
        %v2328 = vshrl.u32 %v2264, 16
        %v2330 = vrot.slane %v2328, 3
        %v2331 = vshll.u32 %v2264, 16
        %v2333 = vrot.slane %v2331, 4
        %v2334 = vor.u32 %v2330, %v2333
        %v2335 = vsel %vm2292, %v2326, %v2334
        %v2337 = vshrl.u32 %v2123, 16
        %v2339 = vrot.slane %v2337, 3
        %v2340 = vshll.u32 %v2123, 16
        %v2342 = vrot.slane %v2340, 4
        %v2343 = vor.u32 %v2339, %v2342
        %v2345 = vshrl.u32 %v2124, 16
        %v2347 = vrot.slane %v2345, 3
        %v2348 = vshll.u32 %v2124, 16
        %v2350 = vrot.slane %v2348, 4
        %v2351 = vor.u32 %v2347, %v2350
        %v2352 = vsel %vm2292, %v2343, %v2351
        %v2354 = vshrl.u32 %v2166, 16
        %v2356 = vrot.slane %v2354, 3
        %v2357 = vshll.u32 %v2166, 16
        %v2359 = vrot.slane %v2357, 4
        %v2360 = vor.u32 %v2356, %v2359
        %v2361 = vsel %vm2292, %v2360, %v2360
        %v2363 = vshrl.u32 %v2265, 16
        %v2365 = vrot.slane %v2363, 3
        %v2366 = vshll.u32 %v2265, 16
        %v2368 = vrot.slane %v2366, 4
        %v2369 = vor.u32 %v2365, %v2368
        %v2371 = vshrl.u32 %v2267, 16
        %v2373 = vrot.slane %v2371, 3
        %v2374 = vshll.u32 %v2267, 16
        %v2376 = vrot.slane %v2374, 4
        %v2377 = vor.u32 %v2373, %v2376
        %v2378 = vsel %vm2292, %v2369, %v2377
        %v2380 = vshrl.u32 %v2125, 16
        %v2382 = vrot.slane %v2380, 3
        %v2383 = vshll.u32 %v2125, 16
        %v2385 = vrot.slane %v2383, 4
        %v2386 = vor.u32 %v2382, %v2385
        %v2388 = vshrl.u32 %v2126, 16
        %v2390 = vrot.slane %v2388, 3
        %v2391 = vshll.u32 %v2126, 16
        %v2393 = vrot.slane %v2391, 4
        %v2394 = vor.u32 %v2390, %v2393
        %v2395 = vsel %vm2292, %v2386, %v2394
        %v2397 = vshrl.u32 %v2174, 16
        %v2399 = vrot.slane %v2397, 3
        %v2400 = vshll.u32 %v2174, 16
        %v2402 = vrot.slane %v2400, 4
        %v2403 = vor.u32 %v2399, %v2402
        %v2404 = vsel %vm2292, %v2403, %v2403
        %v2406 = vshrl.u32 %v2268, 16
        %v2408 = vrot.slane %v2406, 3
        %v2409 = vshll.u32 %v2268, 16
        %v2411 = vrot.slane %v2409, 4
        %v2412 = vor.u32 %v2408, %v2411
        %v2414 = vshrl.u32 %v2270, 16
        %v2416 = vrot.slane %v2414, 3
        %v2417 = vshll.u32 %v2270, 16
        %v2419 = vrot.slane %v2417, 4
        %v2420 = vor.u32 %v2416, %v2419
        %v2421 = vsel %vm2292, %v2412, %v2420
        %v2423 = vshrl.u32 %v2127, 16
        %v2425 = vrot.slane %v2423, 3
        %v2426 = vshll.u32 %v2127, 16
        %v2428 = vrot.slane %v2426, 4
        %v2429 = vor.u32 %v2425, %v2428
        %v2431 = vshrl.u32 %v2128, 16
        %v2433 = vrot.slane %v2431, 3
        %v2434 = vshll.u32 %v2128, 16
        %v2436 = vrot.slane %v2434, 4
        %v2437 = vor.u32 %v2433, %v2436
        %v2438 = vsel %vm2292, %v2429, %v2437
        %v2440 = vshrl.u32 %v2182, 16
        %v2442 = vrot.slane %v2440, 3
        %v2443 = vshll.u32 %v2182, 16
        %v2445 = vrot.slane %v2443, 4
        %v2446 = vor.u32 %v2442, %v2445
        %v2447 = vsel %vm2292, %v2446, %v2446
        %v2449 = vshrl.u32 %v2271, 16
        %v2451 = vrot.slane %v2449, 3
        %v2452 = vshll.u32 %v2271, 16
        %v2454 = vrot.slane %v2452, 4
        %v2455 = vor.u32 %v2451, %v2454
        %v2457 = vshrl.u32 %v2273, 16
        %v2459 = vrot.slane %v2457, 3
        %v2460 = vshll.u32 %v2273, 16
        %v2462 = vrot.slane %v2460, 4
        %v2463 = vor.u32 %v2459, %v2462
        %v2464 = vsel %vm2292, %v2455, %v2463
        %v2466 = vshrl.u32 %v2129, 16
        %v2468 = vrot.slane %v2466, 3
        %v2469 = vshll.u32 %v2129, 16
        %v2471 = vrot.slane %v2469, 4
        %v2472 = vor.u32 %v2468, %v2471
        %v2474 = vshrl.u32 %v2130, 16
        %v2476 = vrot.slane %v2474, 3
        %v2477 = vshll.u32 %v2130, 16
        %v2479 = vrot.slane %v2477, 4
        %v2480 = vor.u32 %v2476, %v2479
        %v2481 = vsel %vm2292, %v2472, %v2480
        %v2483 = vshrl.u32 %v2190, 16
        %v2485 = vrot.slane %v2483, 3
        %v2486 = vshll.u32 %v2190, 16
        %v2488 = vrot.slane %v2486, 4
        %v2489 = vor.u32 %v2485, %v2488
        %v2490 = vsel %vm2292, %v2489, %v2489
        %v2492 = vshrl.u32 %v2274, 16
        %v2494 = vrot.slane %v2492, 3
        %v2495 = vshll.u32 %v2274, 16
        %v2497 = vrot.slane %v2495, 4
        %v2498 = vor.u32 %v2494, %v2497
        %v2500 = vshrl.u32 %v2276, 16
        %v2502 = vrot.slane %v2500, 3
        %v2503 = vshll.u32 %v2276, 16
        %v2505 = vrot.slane %v2503, 4
        %v2506 = vor.u32 %v2502, %v2505
        %v2507 = vsel %vm2292, %v2498, %v2506
        %v2509 = vshrl.u32 %v2131, 16
        %v2511 = vrot.slane %v2509, 3
        %v2512 = vshll.u32 %v2131, 16
        %v2514 = vrot.slane %v2512, 4
        %v2515 = vor.u32 %v2511, %v2514
        %v2517 = vshrl.u32 %v2132, 16
        %v2519 = vrot.slane %v2517, 3
        %v2520 = vshll.u32 %v2132, 16
        %v2522 = vrot.slane %v2520, 4
        %v2523 = vor.u32 %v2519, %v2522
        %v2524 = vsel %vm2292, %v2515, %v2523
        %v2526 = vshrl.u32 %v2198, 16
        %v2528 = vrot.slane %v2526, 3
        %v2529 = vshll.u32 %v2198, 16
        %v2531 = vrot.slane %v2529, 4
        %v2532 = vor.u32 %v2528, %v2531
        %v2533 = vsel %vm2292, %v2532, %v2532
        %v2535 = vshrl.u32 %v2277, 16
        %v2537 = vrot.slane %v2535, 3
        %v2538 = vshll.u32 %v2277, 16
        %v2540 = vrot.slane %v2538, 4
        %v2541 = vor.u32 %v2537, %v2540
        %v2543 = vshrl.u32 %v2279, 16
        %v2545 = vrot.slane %v2543, 3
        %v2546 = vshll.u32 %v2279, 16
        %v2548 = vrot.slane %v2546, 4
        %v2549 = vor.u32 %v2545, %v2548
        %v2550 = vsel %vm2292, %v2541, %v2549
        %v2552 = vshrl.u32 %v2133, 16
        %v2554 = vrot.slane %v2552, 3
        %v2555 = vshll.u32 %v2133, 16
        %v2557 = vrot.slane %v2555, 4
        %v2558 = vor.u32 %v2554, %v2557
        %v2560 = vshrl.u32 %v2134, 16
        %v2562 = vrot.slane %v2560, 3
        %v2563 = vshll.u32 %v2134, 16
        %v2565 = vrot.slane %v2563, 4
        %v2566 = vor.u32 %v2562, %v2565
        %v2567 = vsel %vm2292, %v2558, %v2566
        %v2569 = vshrl.u32 %v2206, 16
        %v2571 = vrot.slane %v2569, 3
        %v2572 = vshll.u32 %v2206, 16
        %v2574 = vrot.slane %v2572, 4
        %v2575 = vor.u32 %v2571, %v2574
        %v2576 = vsel %vm2292, %v2575, %v2575
        %v2578 = vshrl.u32 %v2280, 16
        %v2580 = vrot.slane %v2578, 3
        %v2581 = vshll.u32 %v2280, 16
        %v2583 = vrot.slane %v2581, 4
        %v2584 = vor.u32 %v2580, %v2583
        %v2586 = vshrl.u32 %v2282, 16
        %v2588 = vrot.slane %v2586, 3
        %v2589 = vshll.u32 %v2282, 16
        %v2591 = vrot.slane %v2589, 4
        %v2592 = vor.u32 %v2588, %v2591
        %v2593 = vsel %vm2292, %v2584, %v2592
        %v2595 = vshrl.u32 %v2135, 16
        %v2597 = vrot.slane %v2595, 3
        %v2598 = vshll.u32 %v2135, 16
        %v2600 = vrot.slane %v2598, 4
        %v2601 = vor.u32 %v2597, %v2600
        %v2603 = vshrl.u32 %v2136, 16
        %v2605 = vrot.slane %v2603, 3
        %v2606 = vshll.u32 %v2136, 16
        %v2608 = vrot.slane %v2606, 4
        %v2609 = vor.u32 %v2605, %v2608
        %v2610 = vsel %vm2292, %v2601, %v2609
        %v2612 = vshrl.u32 %v2214, 16
        %v2614 = vrot.slane %v2612, 3
        %v2615 = vshll.u32 %v2214, 16
        %v2617 = vrot.slane %v2615, 4
        %v2618 = vor.u32 %v2614, %v2617
        %v2619 = vsel %vm2292, %v2618, %v2618
        %v2621 = vshrl.u32 %v2283, 16
        %v2623 = vrot.slane %v2621, 3
        %v2624 = vshll.u32 %v2283, 16
        %v2626 = vrot.slane %v2624, 4
        %v2627 = vor.u32 %v2623, %v2626
        %v2629 = vshrl.u32 %v2285, 16
        %v2631 = vrot.slane %v2629, 3
        %v2632 = vshll.u32 %v2285, 16
        %v2634 = vrot.slane %v2632, 4
        %v2635 = vor.u32 %v2631, %v2634
        %v2636 = vsel %vm2292, %v2627, %v2635
        %v2661 = vld [vmem:[#allocation3] sm:$0xf]
        %v2662 = vld [vmem:[#allocation3 + $0x4] sm:$0xf]
        %v2663 = vld [vmem:[#allocation3 + $0x8] sm:$0xf]
        %v2664 = vld [vmem:[#allocation3 + $0xc] sm:$0xf]
        %v2665 = vld [vmem:[#allocation3 + $0x10] sm:$0xf]
        %v2666 = vld [vmem:[#allocation3 + $0x14] sm:$0xf]
        %v2667 = vld [vmem:[#allocation3 + $0x18] sm:$0xf]
        %v2668 = vld [vmem:[#allocation3 + $0x1c] sm:$0xf]
        %v2669 = vld [vmem:[#allocation3 + $0x20] sm:$0xf]
        %v2670 = vld [vmem:[#allocation3 + $0x24] sm:$0xf]
        %v2671 = vld [vmem:[#allocation3 + $0x28] sm:$0xf]
        %v2672 = vld [vmem:[#allocation3 + $0x2c] sm:$0xf]
        %v2673 = vld [vmem:[#allocation3 + $0x30] sm:$0xf]
        %v2674 = vld [vmem:[#allocation3 + $0x34] sm:$0xf]
        %v2675 = vld [vmem:[#allocation3 + $0x38] sm:$0xf]
        %v2676 = vld [vmem:[#allocation3 + $0x3c] sm:$0xf]
        %v2677 = vld [vmem:[#allocation3 + $0x40] sm:$0xf]
        %v2678 = vld [vmem:[#allocation3 + $0x44] sm:$0xf]
        %v2679 = vld [vmem:[#allocation3 + $0x48] sm:$0xf]
        %v2680 = vld [vmem:[#allocation3 + $0x4c] sm:$0xf]
        %v2681 = vld [vmem:[#allocation3 + $0x50] sm:$0xf]
        %v2682 = vld [vmem:[#allocation3 + $0x54] sm:$0xf]
        %v2683 = vld [vmem:[#allocation3 + $0x58] sm:$0xf]
        %v2684 = vld [vmem:[#allocation3 + $0x5c] sm:$0xf]
        %v2685 = vld [vmem:[#allocation3 + $0x60] sm:$0xf]
        %v2686 = vld [vmem:[#allocation3 + $0x64] sm:$0xf]
        %v2687 = vld [vmem:[#allocation3 + $0x68] sm:$0xf]
        %v2688 = vld [vmem:[#allocation3 + $0x6c] sm:$0xf]
        %v2689 = vld [vmem:[#allocation3 + $0x70] sm:$0xf]
        %v2690 = vld [vmem:[#allocation3 + $0x74] sm:$0xf]
        %v2691 = vld [vmem:[#allocation3 + $0x78] sm:$0xf]
        %v2692 = vld [vmem:[#allocation3 + $0x7c] sm:$0xf]
        %v2693 = vld [vmem:[#allocation3 + $0x80] sm:$0xf]
        %v2694 = vld [vmem:[#allocation3 + $0x84] sm:$0xf]
        %v2695 = vld [vmem:[#allocation3 + $0x88] sm:$0xf]
        %v2696 = vld [vmem:[#allocation3 + $0x8c] sm:$0xf]
        %v2697 = vld [vmem:[#allocation3 + $0x90] sm:$0xf]
        %v2698 = vld [vmem:[#allocation3 + $0x94] sm:$0xf]
        %v2699 = vld [vmem:[#allocation3 + $0x98] sm:$0xf]
        %v2700 = vld [vmem:[#allocation3 + $0x9c] sm:$0xf]
        %v2701 = vld [vmem:[#allocation3 + $0xa0] sm:$0xf]
        %v2702 = vld [vmem:[#allocation3 + $0xa4] sm:$0xf]
        %v2703 = vld [vmem:[#allocation3 + $0xa8] sm:$0xf]
        %v2704 = vld [vmem:[#allocation3 + $0xac] sm:$0xf]
        %v2705 = vld [vmem:[#allocation3 + $0xb0] sm:$0xf]
        %v2706 = vld [vmem:[#allocation3 + $0xb4] sm:$0xf]
        %v2707 = vld [vmem:[#allocation3 + $0xb8] sm:$0xf]
        %v2708 = vld [vmem:[#allocation3 + $0xbc] sm:$0xf]
        %v2710 = vshrl.u32 %v2137, 16
        %v2712 = vrot.slane %v2710, 3
        %v2713 = vshll.u32 %v2137, 16
        %v2715 = vrot.slane %v2713, 4
        %v2716 = vor.u32 %v2712, %v2715
        %v2718 = vshrl.u32 %v2138, 16
        %v2720 = vrot.slane %v2718, 3
        %v2721 = vshll.u32 %v2138, 16
        %v2723 = vrot.slane %v2721, 4
        %v2724 = vor.u32 %v2720, %v2723
        %v2725 = vsel %vm2292, %v2716, %v2724
        %v2727 = vshrl.u32 %v2222, 16
        %v2729 = vrot.slane %v2727, 3
        %v2730 = vshll.u32 %v2222, 16
        %v2732 = vrot.slane %v2730, 4
        %v2733 = vor.u32 %v2729, %v2732
        %v2734 = vsel %vm2292, %v2733, %v2733
        %v2736 = vshrl.u32 %v2286, 16
        %v2738 = vrot.slane %v2736, 3
        %v2739 = vshll.u32 %v2286, 16
        %v2741 = vrot.slane %v2739, 4
        %v2742 = vor.u32 %v2738, %v2741
        %v2744 = vshrl.u32 %v2288, 16
        %v2746 = vrot.slane %v2744, 3
        %v2747 = vshll.u32 %v2288, 16
        %v2749 = vrot.slane %v2747, 4
        %v2750 = vor.u32 %v2746, %v2749
        %v2751 = vsel %vm2292, %v2742, %v2750
        %v2755 = vld [vmem:[#allocation3 + $0xc0] sm:$0xf]
        %v2756 = vld [vmem:[#allocation3 + $0xc4] sm:$0xf]
        %v2757 = vld [vmem:[#allocation3 + $0xc8] sm:$0xf]
        %v2758 = vld [vmem:[#allocation3 + $0xcc] sm:$0xf]
        %v2759 = vld [vmem:[#allocation3 + $0xd0] sm:$0xf]
        %v2760 = vld [vmem:[#allocation3 + $0xd4] sm:$0xf]
        %v2761 = vld [vmem:[#allocation3 + $0xd8] sm:$0xf]
        %v2762 = vld [vmem:[#allocation3 + $0xdc] sm:$0xf]
        %v2763 = vld [vmem:[#allocation3 + $0xe0] sm:$0xf]
        %v2764 = vld [vmem:[#allocation3 + $0xe4] sm:$0xf]
        %v2765 = vld [vmem:[#allocation3 + $0xe8] sm:$0xf]
        %v2766 = vld [vmem:[#allocation3 + $0xec] sm:$0xf]
        %v2767 = vld [vmem:[#allocation3 + $0xf0] sm:$0xf]
        %v2768 = vld [vmem:[#allocation3 + $0xf4] sm:$0xf]
        %v2769 = vld [vmem:[#allocation3 + $0xf8] sm:$0xf]
        %v2770 = vld [vmem:[#allocation3 + $0xfc] sm:$0xf]
        %v2771 = vld [vmem:[#allocation3 + $0x100] sm:$0xf]
        %v2772 = vld [vmem:[#allocation3 + $0x104] sm:$0xf]
        %v2773 = vld [vmem:[#allocation3 + $0x108] sm:$0xf]
        %v2774 = vld [vmem:[#allocation3 + $0x10c] sm:$0xf]
        %v2775 = vld [vmem:[#allocation3 + $0x110] sm:$0xf]
        %v2776 = vld [vmem:[#allocation3 + $0x114] sm:$0xf]
        %v2777 = vld [vmem:[#allocation3 + $0x118] sm:$0xf]
        %v2778 = vld [vmem:[#allocation3 + $0x11c] sm:$0xf]
        %v2779 = vld [vmem:[#allocation3 + $0x120] sm:$0xf]
        %v2780 = vld [vmem:[#allocation3 + $0x124] sm:$0xf]
        %v2781 = vld [vmem:[#allocation3 + $0x128] sm:$0xf]
        %v2782 = vld [vmem:[#allocation3 + $0x12c] sm:$0xf]
        %v2783 = vld [vmem:[#allocation3 + $0x130] sm:$0xf]
        %v2784 = vld [vmem:[#allocation3 + $0x134] sm:$0xf]
        %v2785 = vld [vmem:[#allocation3 + $0x138] sm:$0xf]
        %v2786 = vld [vmem:[#allocation3 + $0x13c] sm:$0xf]
        %v2787 = vld [vmem:[#allocation3 + $0x140] sm:$0xf]
        %v2788 = vld [vmem:[#allocation3 + $0x144] sm:$0xf]
        %v2789 = vld [vmem:[#allocation3 + $0x148] sm:$0xf]
        %v2790 = vld [vmem:[#allocation3 + $0x14c] sm:$0xf]
        %v2791 = vld [vmem:[#allocation3 + $0x150] sm:$0xf]
        %v2792 = vld [vmem:[#allocation3 + $0x154] sm:$0xf]
        %v2793 = vld [vmem:[#allocation3 + $0x158] sm:$0xf]
        %v2794 = vld [vmem:[#allocation3 + $0x15c] sm:$0xf]
        %v2795 = vld [vmem:[#allocation3 + $0x160] sm:$0xf]
        %v2796 = vld [vmem:[#allocation3 + $0x164] sm:$0xf]
        %v2797 = vld [vmem:[#allocation3 + $0x168] sm:$0xf]
        %v2798 = vld [vmem:[#allocation3 + $0x16c] sm:$0xf]
        %v2799 = vld [vmem:[#allocation3 + $0x170] sm:$0xf]
        %v2800 = vld [vmem:[#allocation3 + $0x174] sm:$0xf]
        %v2801 = vld [vmem:[#allocation3 + $0x178] sm:$0xf]
        %v2802 = vld [vmem:[#allocation3 + $0x17c] sm:$0xf]
        %v2851 = vunpack.c.l.b16 %v2755
        %v2852 = vunpack.c.l.b16 %v2756
        %v2853 = vunpack.c.l.b16 %v2757
        %v2854 = vunpack.c.l.b16 %v2758
        %v2855 = vunpack.c.l.b16 %v2759
        %v2856 = vunpack.c.l.b16 %v2760
        %v2857 = vunpack.c.l.b16 %v2761
        %v2858 = vunpack.c.l.b16 %v2762
        %v2859 = vunpack.c.l.b16 %v2763
        %v2860 = vunpack.c.l.b16 %v2764
        %v2861 = vunpack.c.l.b16 %v2765
        %v2862 = vunpack.c.l.b16 %v2766
        %v2863 = vunpack.c.l.b16 %v2767
        %v2864 = vunpack.c.l.b16 %v2768
        %v2865 = vunpack.c.l.b16 %v2769
        %v2866 = vunpack.c.l.b16 %v2770
        %v2867 = vunpack.c.l.b16 %v2771
        %v2868 = vunpack.c.l.b16 %v2772
        %v2869 = vunpack.c.l.b16 %v2773
        %v2870 = vunpack.c.l.b16 %v2774
        %v2871 = vunpack.c.l.b16 %v2775
        %v2872 = vunpack.c.l.b16 %v2776
        %v2873 = vunpack.c.l.b16 %v2777
        %v2874 = vunpack.c.l.b16 %v2778
        %v2875 = vunpack.c.l.b16 %v2779
        %v2876 = vunpack.c.l.b16 %v2780
        %v2877 = vunpack.c.l.b16 %v2781
        %v2878 = vunpack.c.l.b16 %v2782
        %v2879 = vunpack.c.l.b16 %v2783
        %v2880 = vunpack.c.l.b16 %v2784
        %v2881 = vunpack.c.l.b16 %v2785
        %v2882 = vunpack.c.l.b16 %v2786
        %v2883 = vunpack.c.l.b16 %v2787
        %v2884 = vunpack.c.l.b16 %v2788
        %v2885 = vunpack.c.l.b16 %v2789
        %v2886 = vunpack.c.l.b16 %v2790
        %v2887 = vunpack.c.l.b16 %v2791
        %v2888 = vunpack.c.l.b16 %v2792
        %v2889 = vunpack.c.l.b16 %v2793
        %v2890 = vunpack.c.l.b16 %v2794
        %v2891 = vunpack.c.l.b16 %v2795
        %v2892 = vunpack.c.l.b16 %v2796
        %v2893 = vunpack.c.l.b16 %v2797
        %v2894 = vunpack.c.l.b16 %v2798
        %v2895 = vunpack.c.l.b16 %v2799
        %v2896 = vunpack.c.l.b16 %v2800
        %v2897 = vunpack.c.l.b16 %v2801
        %v2898 = vunpack.c.l.b16 %v2802
        %v2899 = vpack.c.b16 %v2852, %v2851
        %v2900 = vpack.c.b16 %v2854, %v2853
        %v2901 = vpack.c.b16 %v2856, %v2855
        %v2902 = vpack.c.b16 %v2858, %v2857
        %v2903 = vpack.c.b16 %v2860, %v2859
        %v2904 = vpack.c.b16 %v2862, %v2861
        %v2905 = vpack.c.b16 %v2864, %v2863
        %v2906 = vpack.c.b16 %v2866, %v2865
        %v2907 = vpack.c.b16 %v2868, %v2867
        %v2908 = vpack.c.b16 %v2870, %v2869
        %v2909 = vpack.c.b16 %v2872, %v2871
        %v2910 = vpack.c.b16 %v2874, %v2873
        %v2911 = vpack.c.b16 %v2876, %v2875
        %v2912 = vpack.c.b16 %v2878, %v2877
        %v2913 = vpack.c.b16 %v2880, %v2879
        %v2914 = vpack.c.b16 %v2882, %v2881
        %v2915 = vpack.c.b16 %v2884, %v2883
        %v2916 = vpack.c.b16 %v2886, %v2885
        %v2917 = vpack.c.b16 %v2888, %v2887
        %v2918 = vpack.c.b16 %v2890, %v2889
        %v2919 = vpack.c.b16 %v2892, %v2891
        %v2920 = vpack.c.b16 %v2894, %v2893
        %v2921 = vpack.c.b16 %v2896, %v2895
        %v2922 = vpack.c.b16 %v2898, %v2897
        %2947 = vmatpush.bf16.msra.mxu0 %v2906
        %2948 = vmatpush.bf16.msra.mxu0 %v2905
        %2949 = vmatpush.bf16.msra.mxu0 %v2904
        %2950 = vmatpush.bf16.msra.mxu0 %v2903
        %2951 = vmatpush.bf16.msra.mxu0 %v2902
        %2952 = vmatpush.bf16.msra.mxu0 %v2901
        %2953 = vmatpush.bf16.msra.mxu0 %v2900
        %2954 = vmatpush.bf16.msra.mxu0 %v2899
        %2955 = vmatmul.bf16.gmra.mxu0 %v2352
        %v2956 = vpop.f32.mrf.mxu0
        %v2957 = vadd.f32 0.0, %v2956
        %v2958 = vpop.f32.mrf.mxu0
        %v2959 = vadd.f32 0.0, %v2958
        %2960 = vmatmul.bf16.gmra.mxu0 %v2395
        %v2961 = vpop.f32.mrf.mxu0
        %v2962 = vadd.f32 0.0, %v2961
        %v2963 = vpop.f32.mrf.mxu0
        %v2964 = vadd.f32 0.0, %v2963
        %2965 = vmatmul.bf16.gmra.mxu0 %v2438
        %v2966 = vpop.f32.mrf.mxu0
        %v2967 = vadd.f32 0.0, %v2966
        %v2968 = vpop.f32.mrf.mxu0
        %v2969 = vadd.f32 0.0, %v2968
        %2970 = vmatmul.bf16.gmra.mxu0 %v2481
        %v2971 = vpop.f32.mrf.mxu0
        %v2972 = vadd.f32 0.0, %v2971
        %v2973 = vpop.f32.mrf.mxu0
        %v2974 = vadd.f32 0.0, %v2973
        %2975 = vmatmul.bf16.gmra.mxu0 %v2524
        %v2976 = vpop.f32.mrf.mxu0
        %v2977 = vadd.f32 0.0, %v2976
        %v2978 = vpop.f32.mrf.mxu0
        %v2979 = vadd.f32 0.0, %v2978
        %2980 = vmatmul.bf16.gmra.mxu0 %v2567
        %v2981 = vpop.f32.mrf.mxu0
        %v2982 = vadd.f32 0.0, %v2981
        %v2983 = vpop.f32.mrf.mxu0
        %v2984 = vadd.f32 0.0, %v2983
        %2985 = vmatmul.bf16.gmra.mxu0 %v2610
        %v2986 = vpop.f32.mrf.mxu0
        %v2987 = vadd.f32 0.0, %v2986
        %v2988 = vpop.f32.mrf.mxu0
        %v2989 = vadd.f32 0.0, %v2988
        %2990 = vmatmul.bf16.gmra.mxu0 %v2725
        %v2991 = vpop.f32.mrf.mxu0
        %v2992 = vadd.f32 0.0, %v2991
        %v2993 = vpop.f32.mrf.mxu0
        %v2994 = vadd.f32 0.0, %v2993
        %2995 = vdwg.mxu0
        %2996 = vmatpush.bf16.msra.mxu0 %v2914
        %2997 = vmatpush.bf16.msra.mxu0 %v2913
        %2998 = vmatpush.bf16.msra.mxu0 %v2912
        %2999 = vmatpush.bf16.msra.mxu0 %v2911
        %3000 = vmatpush.bf16.msra.mxu0 %v2910
        %3001 = vmatpush.bf16.msra.mxu0 %v2909
        %3002 = vmatpush.bf16.msra.mxu0 %v2908
        %3003 = vmatpush.bf16.msra.mxu0 %v2907
        %3004 = vmatmul.bf16.gmra.mxu0 %v2361
        %v3005 = vpop.f32.mrf.mxu0
        %v3006 = vadd.f32 %v2957, %v3005
        %v3007 = vpop.f32.mrf.mxu0
        %v3008 = vadd.f32 %v2959, %v3007
        %3009 = vmatmul.bf16.gmra.mxu0 %v2404
        %v3010 = vpop.f32.mrf.mxu0
        %v3011 = vadd.f32 %v2962, %v3010
        %v3012 = vpop.f32.mrf.mxu0
        %v3013 = vadd.f32 %v2964, %v3012
        %3014 = vmatmul.bf16.gmra.mxu0 %v2447
        %v3015 = vpop.f32.mrf.mxu0
        %v3016 = vadd.f32 %v2967, %v3015
        %v3017 = vpop.f32.mrf.mxu0
        %v3018 = vadd.f32 %v2969, %v3017
        %3019 = vmatmul.bf16.gmra.mxu0 %v2490
        %v3020 = vpop.f32.mrf.mxu0
        %v3021 = vadd.f32 %v2972, %v3020
        %v3022 = vpop.f32.mrf.mxu0
        %v3023 = vadd.f32 %v2974, %v3022
        %3024 = vmatmul.bf16.gmra.mxu0 %v2533
        %v3025 = vpop.f32.mrf.mxu0
        %v3026 = vadd.f32 %v2977, %v3025
        %v3027 = vpop.f32.mrf.mxu0
        %v3028 = vadd.f32 %v2979, %v3027
        %3029 = vmatmul.bf16.gmra.mxu0 %v2576
        %v3030 = vpop.f32.mrf.mxu0
        %v3031 = vadd.f32 %v2982, %v3030
        %v3032 = vpop.f32.mrf.mxu0
        %v3033 = vadd.f32 %v2984, %v3032
        %3034 = vmatmul.bf16.gmra.mxu0 %v2619
        %v3035 = vpop.f32.mrf.mxu0
        %v3036 = vadd.f32 %v2987, %v3035
        %v3037 = vpop.f32.mrf.mxu0
        %v3038 = vadd.f32 %v2989, %v3037
        %3039 = vmatmul.bf16.gmra.mxu0 %v2734
        %v3040 = vpop.f32.mrf.mxu0
        %v3041 = vadd.f32 %v2992, %v3040
        %v3042 = vpop.f32.mrf.mxu0
        %v3043 = vadd.f32 %v2994, %v3042
        %3044 = vdwg.mxu0
        %3045 = vmatpush.bf16.msra.mxu0 %v2922
        %3046 = vmatpush.bf16.msra.mxu0 %v2921
        %3047 = vmatpush.bf16.msra.mxu0 %v2920
        %3048 = vmatpush.bf16.msra.mxu0 %v2919
        %3049 = vmatpush.bf16.msra.mxu0 %v2918
        %3050 = vmatpush.bf16.msra.mxu0 %v2917
        %3051 = vmatpush.bf16.msra.mxu0 %v2916
        %3052 = vmatpush.bf16.msra.mxu0 %v2915
        %3053 = vmatmul.bf16.gmra.mxu0 %v2378
        %v3054 = vpop.f32.mrf.mxu0
        %v3055 = vadd.f32 %v3006, %v3054
        %v3056 = vpop.f32.mrf.mxu0
        %v3057 = vadd.f32 %v3008, %v3056
        %3058 = vmatmul.bf16.gmra.mxu0 %v2421
        %v3059 = vpop.f32.mrf.mxu0
        %v3060 = vadd.f32 %v3011, %v3059
        %v3061 = vpop.f32.mrf.mxu0
        %v3062 = vadd.f32 %v3013, %v3061
        %3063 = vmatmul.bf16.gmra.mxu0 %v2464
        %v3064 = vpop.f32.mrf.mxu0
        %v3065 = vadd.f32 %v3016, %v3064
        %v3066 = vpop.f32.mrf.mxu0
        %v3067 = vadd.f32 %v3018, %v3066
        %3068 = vmatmul.bf16.gmra.mxu0 %v2507
        %v3069 = vpop.f32.mrf.mxu0
        %v3070 = vadd.f32 %v3021, %v3069
        %v3071 = vpop.f32.mrf.mxu0
        %v3072 = vadd.f32 %v3023, %v3071
        %3073 = vmatmul.bf16.gmra.mxu0 %v2550
        %v3074 = vpop.f32.mrf.mxu0
        %v3075 = vadd.f32 %v3026, %v3074
        %v3076 = vpop.f32.mrf.mxu0
        %v3077 = vadd.f32 %v3028, %v3076
        %3078 = vmatmul.bf16.gmra.mxu0 %v2593
        %v3079 = vpop.f32.mrf.mxu0
        %v3080 = vadd.f32 %v3031, %v3079
        %v3081 = vpop.f32.mrf.mxu0
        %v3082 = vadd.f32 %v3033, %v3081
        %3083 = vmatmul.bf16.gmra.mxu0 %v2636
        %v3084 = vpop.f32.mrf.mxu0
        %v3085 = vadd.f32 %v3036, %v3084
        %v3086 = vpop.f32.mrf.mxu0
        %v3087 = vadd.f32 %v3038, %v3086
        %3088 = vmatmul.bf16.gmra.mxu0 %v2751
        %v3089 = vpop.f32.mrf.mxu0
        %v3090 = vadd.f32 %v3041, %v3089
        %v3091 = vpop.f32.mrf.mxu0
        %v3092 = vadd.f32 %v3043, %v3091
        %3093 = vdwg.mxu0
        %v3142 = vunpack.c.l.b16 %v2661
        %v3143 = vunpack.c.l.b16 %v2662
        %v3144 = vunpack.c.l.b16 %v2663
        %v3145 = vunpack.c.l.b16 %v2664
        %v3146 = vunpack.c.l.b16 %v2665
        %v3147 = vunpack.c.l.b16 %v2666
        %v3148 = vunpack.c.l.b16 %v2667
        %v3149 = vunpack.c.l.b16 %v2668
        %v3150 = vunpack.c.l.b16 %v2669
        %v3151 = vunpack.c.l.b16 %v2670
        %v3152 = vunpack.c.l.b16 %v2671
        %v3153 = vunpack.c.l.b16 %v2672
        %v3154 = vunpack.c.l.b16 %v2673
        %v3155 = vunpack.c.l.b16 %v2674
        %v3156 = vunpack.c.l.b16 %v2675
        %v3157 = vunpack.c.l.b16 %v2676
        %v3158 = vunpack.c.l.b16 %v2677
        %v3159 = vunpack.c.l.b16 %v2678
        %v3160 = vunpack.c.l.b16 %v2679
        %v3161 = vunpack.c.l.b16 %v2680
        %v3162 = vunpack.c.l.b16 %v2681
        %v3163 = vunpack.c.l.b16 %v2682
        %v3164 = vunpack.c.l.b16 %v2683
        %v3165 = vunpack.c.l.b16 %v2684
        %v3166 = vunpack.c.l.b16 %v2685
        %v3167 = vunpack.c.l.b16 %v2686
        %v3168 = vunpack.c.l.b16 %v2687
        %v3169 = vunpack.c.l.b16 %v2688
        %v3170 = vunpack.c.l.b16 %v2689
        %v3171 = vunpack.c.l.b16 %v2690
        %v3172 = vunpack.c.l.b16 %v2691
        %v3173 = vunpack.c.l.b16 %v2692
        %v3174 = vunpack.c.l.b16 %v2693
        %v3175 = vunpack.c.l.b16 %v2694
        %v3176 = vunpack.c.l.b16 %v2695
        %v3177 = vunpack.c.l.b16 %v2696
        %v3178 = vunpack.c.l.b16 %v2697
        %v3179 = vunpack.c.l.b16 %v2698
        %v3180 = vunpack.c.l.b16 %v2699
        %v3181 = vunpack.c.l.b16 %v2700
        %v3182 = vunpack.c.l.b16 %v2701
        %v3183 = vunpack.c.l.b16 %v2702
        %v3184 = vunpack.c.l.b16 %v2703
        %v3185 = vunpack.c.l.b16 %v2704
        %v3186 = vunpack.c.l.b16 %v2705
        %v3187 = vunpack.c.l.b16 %v2706
        %v3188 = vunpack.c.l.b16 %v2707
        %v3189 = vunpack.c.l.b16 %v2708
        %v3190 = vpack.c.b16 %v3143, %v3142
        %v3191 = vpack.c.b16 %v3145, %v3144
        %v3192 = vpack.c.b16 %v3147, %v3146
        %v3193 = vpack.c.b16 %v3149, %v3148
        %v3194 = vpack.c.b16 %v3151, %v3150
        %v3195 = vpack.c.b16 %v3153, %v3152
        %v3196 = vpack.c.b16 %v3155, %v3154
        %v3197 = vpack.c.b16 %v3157, %v3156
        %v3198 = vpack.c.b16 %v3159, %v3158
        %v3199 = vpack.c.b16 %v3161, %v3160
        %v3200 = vpack.c.b16 %v3163, %v3162
        %v3201 = vpack.c.b16 %v3165, %v3164
        %v3202 = vpack.c.b16 %v3167, %v3166
        %v3203 = vpack.c.b16 %v3169, %v3168
        %v3204 = vpack.c.b16 %v3171, %v3170
        %v3205 = vpack.c.b16 %v3173, %v3172
        %v3206 = vpack.c.b16 %v3175, %v3174
        %v3207 = vpack.c.b16 %v3177, %v3176
        %v3208 = vpack.c.b16 %v3179, %v3178
        %v3209 = vpack.c.b16 %v3181, %v3180
        %v3210 = vpack.c.b16 %v3183, %v3182
        %v3211 = vpack.c.b16 %v3185, %v3184
        %v3212 = vpack.c.b16 %v3187, %v3186
        %v3213 = vpack.c.b16 %v3189, %v3188
        %3238 = vmatpush.bf16.msra.mxu0 %v3197
        %3239 = vmatpush.bf16.msra.mxu0 %v3196
        %3240 = vmatpush.bf16.msra.mxu0 %v3195
        %3241 = vmatpush.bf16.msra.mxu0 %v3194
        %3242 = vmatpush.bf16.msra.mxu0 %v3193
        %3243 = vmatpush.bf16.msra.mxu0 %v3192
        %3244 = vmatpush.bf16.msra.mxu0 %v3191
        %3245 = vmatpush.bf16.msra.mxu0 %v3190
        %3246 = vmatmul.bf16.gmra.mxu0 %v2309
        %v3247 = vpop.f32.mrf.mxu0
        %v3248 = vadd.f32 %v3055, %v3247
        %v3249 = vpop.f32.mrf.mxu0
        %v3250 = vadd.f32 %v3057, %v3249
        %3251 = vmatmul.bf16.gmra.mxu0 %v2352
        %v3252 = vpop.f32.mrf.mxu0
        %v3253 = vadd.f32 %v3060, %v3252
        %v3254 = vpop.f32.mrf.mxu0
        %v3255 = vadd.f32 %v3062, %v3254
        %3256 = vmatmul.bf16.gmra.mxu0 %v2395
        %v3257 = vpop.f32.mrf.mxu0
        %v3258 = vadd.f32 %v3065, %v3257
        %v3259 = vpop.f32.mrf.mxu0
        %v3260 = vadd.f32 %v3067, %v3259
        %3261 = vmatmul.bf16.gmra.mxu0 %v2438
        %v3262 = vpop.f32.mrf.mxu0
        %v3263 = vadd.f32 %v3070, %v3262
        %v3264 = vpop.f32.mrf.mxu0
        %v3265 = vadd.f32 %v3072, %v3264
        %3266 = vmatmul.bf16.gmra.mxu0 %v2481
        %v3267 = vpop.f32.mrf.mxu0
        %v3268 = vadd.f32 %v3075, %v3267
        %v3269 = vpop.f32.mrf.mxu0
        %v3270 = vadd.f32 %v3077, %v3269
        %3271 = vmatmul.bf16.gmra.mxu0 %v2524
        %v3272 = vpop.f32.mrf.mxu0
        %v3273 = vadd.f32 %v3080, %v3272
        %v3274 = vpop.f32.mrf.mxu0
        %v3275 = vadd.f32 %v3082, %v3274
        %3276 = vmatmul.bf16.gmra.mxu0 %v2567
        %v3277 = vpop.f32.mrf.mxu0
        %v3278 = vadd.f32 %v3085, %v3277
        %v3279 = vpop.f32.mrf.mxu0
        %v3280 = vadd.f32 %v3087, %v3279
        %3281 = vmatmul.bf16.gmra.mxu0 %v2610
        %v3282 = vpop.f32.mrf.mxu0
        %v3283 = vadd.f32 %v3090, %v3282
        %v3284 = vpop.f32.mrf.mxu0
        %v3285 = vadd.f32 %v3092, %v3284
        %3286 = vdwg.mxu0
        %3287 = vmatpush.bf16.msra.mxu0 %v3205
        %3288 = vmatpush.bf16.msra.mxu0 %v3204
        %3289 = vmatpush.bf16.msra.mxu0 %v3203
        %3290 = vmatpush.bf16.msra.mxu0 %v3202
        %3291 = vmatpush.bf16.msra.mxu0 %v3201
        %3292 = vmatpush.bf16.msra.mxu0 %v3200
        %3293 = vmatpush.bf16.msra.mxu0 %v3199
        %3294 = vmatpush.bf16.msra.mxu0 %v3198
        %3295 = vmatmul.bf16.gmra.mxu0 %v2318
        %v3296 = vpop.f32.mrf.mxu0
        %v3297 = vadd.f32 %v3248, %v3296
        %v3298 = vpop.f32.mrf.mxu0
        %v3299 = vadd.f32 %v3250, %v3298
        %3300 = vmatmul.bf16.gmra.mxu0 %v2361
        %v3301 = vpop.f32.mrf.mxu0
        %v3302 = vadd.f32 %v3253, %v3301
        %v3303 = vpop.f32.mrf.mxu0
        %v3304 = vadd.f32 %v3255, %v3303
        %3305 = vmatmul.bf16.gmra.mxu0 %v2404
        %v3306 = vpop.f32.mrf.mxu0
        %v3307 = vadd.f32 %v3258, %v3306
        %v3308 = vpop.f32.mrf.mxu0
        %v3309 = vadd.f32 %v3260, %v3308
        %3310 = vmatmul.bf16.gmra.mxu0 %v2447
        %v3311 = vpop.f32.mrf.mxu0
        %v3312 = vadd.f32 %v3263, %v3311
        %v3313 = vpop.f32.mrf.mxu0
        %v3314 = vadd.f32 %v3265, %v3313
        %3315 = vmatmul.bf16.gmra.mxu0 %v2490
        %v3316 = vpop.f32.mrf.mxu0
        %v3317 = vadd.f32 %v3268, %v3316
        %v3318 = vpop.f32.mrf.mxu0
        %v3319 = vadd.f32 %v3270, %v3318
        %3320 = vmatmul.bf16.gmra.mxu0 %v2533
        %v3321 = vpop.f32.mrf.mxu0
        %v3322 = vadd.f32 %v3273, %v3321
        %v3323 = vpop.f32.mrf.mxu0
        %v3324 = vadd.f32 %v3275, %v3323
        %3325 = vmatmul.bf16.gmra.mxu0 %v2576
        %v3326 = vpop.f32.mrf.mxu0
        %v3327 = vadd.f32 %v3278, %v3326
        %v3328 = vpop.f32.mrf.mxu0
        %v3329 = vadd.f32 %v3280, %v3328
        %3330 = vmatmul.bf16.gmra.mxu0 %v2619
        %v3331 = vpop.f32.mrf.mxu0
        %v3332 = vadd.f32 %v3283, %v3331
        %v3333 = vpop.f32.mrf.mxu0
        %v3334 = vadd.f32 %v3285, %v3333
        %3335 = vdwg.mxu0
        %3336 = vmatpush.bf16.msra.mxu0 %v3213
        %3337 = vmatpush.bf16.msra.mxu0 %v3212
        %3338 = vmatpush.bf16.msra.mxu0 %v3211
        %3339 = vmatpush.bf16.msra.mxu0 %v3210
        %3340 = vmatpush.bf16.msra.mxu0 %v3209
        %3341 = vmatpush.bf16.msra.mxu0 %v3208
        %3342 = vmatpush.bf16.msra.mxu0 %v3207
        %3343 = vmatpush.bf16.msra.mxu0 %v3206
        %3344 = vmatmul.bf16.gmra.mxu0 %v2335
        %v3345 = vpop.f32.mrf.mxu0
        %v3346 = vadd.f32 %v3297, %v3345
        %v3347 = vpop.f32.mrf.mxu0
        %v3348 = vadd.f32 %v3299, %v3347
        %3349 = vmatmul.bf16.gmra.mxu0 %v2378
        %v3350 = vpop.f32.mrf.mxu0
        %v3351 = vadd.f32 %v3302, %v3350
        %v3352 = vpop.f32.mrf.mxu0
        %v3353 = vadd.f32 %v3304, %v3352
        %3354 = vmatmul.bf16.gmra.mxu0 %v2421
        %v3355 = vpop.f32.mrf.mxu0
        %v3356 = vadd.f32 %v3307, %v3355
        %v3357 = vpop.f32.mrf.mxu0
        %v3358 = vadd.f32 %v3309, %v3357
        %3359 = vmatmul.bf16.gmra.mxu0 %v2464
        %v3360 = vpop.f32.mrf.mxu0
        %v3361 = vadd.f32 %v3312, %v3360
        %v3362 = vpop.f32.mrf.mxu0
        %v3363 = vadd.f32 %v3314, %v3362
        %3364 = vmatmul.bf16.gmra.mxu0 %v2507
        %v3365 = vpop.f32.mrf.mxu0
        %v3366 = vadd.f32 %v3317, %v3365
        %v3367 = vpop.f32.mrf.mxu0
        %v3368 = vadd.f32 %v3319, %v3367
        %3369 = vmatmul.bf16.gmra.mxu0 %v2550
        %v3370 = vpop.f32.mrf.mxu0
        %v3371 = vadd.f32 %v3322, %v3370
        %v3372 = vpop.f32.mrf.mxu0
        %v3373 = vadd.f32 %v3324, %v3372
        %3374 = vmatmul.bf16.gmra.mxu0 %v2593
        %v3375 = vpop.f32.mrf.mxu0
        %v3376 = vadd.f32 %v3327, %v3375
        %v3377 = vpop.f32.mrf.mxu0
        %v3378 = vadd.f32 %v3329, %v3377
        %3379 = vmatmul.bf16.gmra.mxu0 %v2636
        %v3380 = vpop.f32.mrf.mxu0
        %v3381 = vadd.f32 %v3332, %v3380
        %v3382 = vpop.f32.mrf.mxu0
        %v3383 = vadd.f32 %v3334, %v3382
        %3384 = vdwg.mxu0
        %v3386 = vshrl.u32 %v2139, 16
        %v3388 = vrot.slane %v3386, 3
        %v3389 = vshll.u32 %v2139, 16
        %v3391 = vrot.slane %v3389, 4
        %v3392 = vor.u32 %v3388, %v3391
        %v3394 = vshrl.u32 %v2140, 16
        %v3396 = vrot.slane %v3394, 3
        %v3397 = vshll.u32 %v2140, 16
        %v3399 = vrot.slane %v3397, 4
        %v3400 = vor.u32 %v3396, %v3399
        %v3401 = vsel %vm2292, %v3392, %v3400
        %v3403 = vshrl.u32 %v2230, 16
        %v3405 = vrot.slane %v3403, 3
        %v3406 = vshll.u32 %v2230, 16
        %v3408 = vrot.slane %v3406, 4
        %v3409 = vor.u32 %v3405, %v3408
        %v3410 = vsel %vm2292, %v3409, %v3409
        %v3412 = vshrl.u32 %v2289, 16
        %v3414 = vrot.slane %v3412, 3
        %v3415 = vshll.u32 %v2289, 16
        %v3417 = vrot.slane %v3415, 4
        %v3418 = vor.u32 %v3414, %v3417
        %v3420 = vshrl.u32 %v2291, 16
        %v3422 = vrot.slane %v3420, 3
        %v3423 = vshll.u32 %v2291, 16
        %v3425 = vrot.slane %v3423, 4
        %v3426 = vor.u32 %v3422, %v3425
        %v3427 = vsel %vm2292, %v3418, %v3426
        %v3431 = vld [vmem:[#allocation3 + $0x180] sm:$0xf]
        %v3432 = vld [vmem:[#allocation3 + $0x184] sm:$0xf]
        %v3433 = vld [vmem:[#allocation3 + $0x188] sm:$0xf]
        %v3434 = vld [vmem:[#allocation3 + $0x18c] sm:$0xf]
        %v3435 = vld [vmem:[#allocation3 + $0x190] sm:$0xf]
        %v3436 = vld [vmem:[#allocation3 + $0x194] sm:$0xf]
        %v3437 = vld [vmem:[#allocation3 + $0x198] sm:$0xf]
        %v3438 = vld [vmem:[#allocation3 + $0x19c] sm:$0xf]
        %v3439 = vld [vmem:[#allocation3 + $0x1a0] sm:$0xf]
        %v3440 = vld [vmem:[#allocation3 + $0x1a4] sm:$0xf]
        %v3441 = vld [vmem:[#allocation3 + $0x1a8] sm:$0xf]
        %v3442 = vld [vmem:[#allocation3 + $0x1ac] sm:$0xf]
        %v3443 = vld [vmem:[#allocation3 + $0x1b0] sm:$0xf]
        %v3444 = vld [vmem:[#allocation3 + $0x1b4] sm:$0xf]
        %v3445 = vld [vmem:[#allocation3 + $0x1b8] sm:$0xf]
        %v3446 = vld [vmem:[#allocation3 + $0x1bc] sm:$0xf]
        %v3447 = vld [vmem:[#allocation3 + $0x1c0] sm:$0xf]
        %v3448 = vld [vmem:[#allocation3 + $0x1c4] sm:$0xf]
        %v3449 = vld [vmem:[#allocation3 + $0x1c8] sm:$0xf]
        %v3450 = vld [vmem:[#allocation3 + $0x1cc] sm:$0xf]
        %v3451 = vld [vmem:[#allocation3 + $0x1d0] sm:$0xf]
        %v3452 = vld [vmem:[#allocation3 + $0x1d4] sm:$0xf]
        %v3453 = vld [vmem:[#allocation3 + $0x1d8] sm:$0xf]
        %v3454 = vld [vmem:[#allocation3 + $0x1dc] sm:$0xf]
        %v3455 = vld [vmem:[#allocation3 + $0x1e0] sm:$0xf]
        %v3456 = vld [vmem:[#allocation3 + $0x1e4] sm:$0xf]
        %v3457 = vld [vmem:[#allocation3 + $0x1e8] sm:$0xf]
        %v3458 = vld [vmem:[#allocation3 + $0x1ec] sm:$0xf]
        %v3459 = vld [vmem:[#allocation3 + $0x1f0] sm:$0xf]
        %v3460 = vld [vmem:[#allocation3 + $0x1f4] sm:$0xf]
        %v3461 = vld [vmem:[#allocation3 + $0x1f8] sm:$0xf]
        %v3462 = vld [vmem:[#allocation3 + $0x1fc] sm:$0xf]
        %v3463 = vld [vmem:[#allocation3 + $0x200] sm:$0xf]
        %v3464 = vld [vmem:[#allocation3 + $0x204] sm:$0xf]
        %v3465 = vld [vmem:[#allocation3 + $0x208] sm:$0xf]
        %v3466 = vld [vmem:[#allocation3 + $0x20c] sm:$0xf]
        %v3467 = vld [vmem:[#allocation3 + $0x210] sm:$0xf]
        %v3468 = vld [vmem:[#allocation3 + $0x214] sm:$0xf]
        %v3469 = vld [vmem:[#allocation3 + $0x218] sm:$0xf]
        %v3470 = vld [vmem:[#allocation3 + $0x21c] sm:$0xf]
        %v3471 = vld [vmem:[#allocation3 + $0x220] sm:$0xf]
        %v3472 = vld [vmem:[#allocation3 + $0x224] sm:$0xf]
        %v3473 = vld [vmem:[#allocation3 + $0x228] sm:$0xf]
        %v3474 = vld [vmem:[#allocation3 + $0x22c] sm:$0xf]
        %v3475 = vld [vmem:[#allocation3 + $0x230] sm:$0xf]
        %v3476 = vld [vmem:[#allocation3 + $0x234] sm:$0xf]
        %v3477 = vld [vmem:[#allocation3 + $0x238] sm:$0xf]
        %v3478 = vld [vmem:[#allocation3 + $0x23c] sm:$0xf]
        %v3527 = vunpack.c.l.b16 %v3431
        %v3528 = vunpack.c.l.b16 %v3432
        %v3529 = vunpack.c.l.b16 %v3433
        %v3530 = vunpack.c.l.b16 %v3434
        %v3531 = vunpack.c.l.b16 %v3435
        %v3532 = vunpack.c.l.b16 %v3436
        %v3533 = vunpack.c.l.b16 %v3437
        %v3534 = vunpack.c.l.b16 %v3438
        %v3535 = vunpack.c.l.b16 %v3439
        %v3536 = vunpack.c.l.b16 %v3440
        %v3537 = vunpack.c.l.b16 %v3441
        %v3538 = vunpack.c.l.b16 %v3442
        %v3539 = vunpack.c.l.b16 %v3443
        %v3540 = vunpack.c.l.b16 %v3444
        %v3541 = vunpack.c.l.b16 %v3445
        %v3542 = vunpack.c.l.b16 %v3446
        %v3543 = vunpack.c.l.b16 %v3447
        %v3544 = vunpack.c.l.b16 %v3448
        %v3545 = vunpack.c.l.b16 %v3449
        %v3546 = vunpack.c.l.b16 %v3450
        %v3547 = vunpack.c.l.b16 %v3451
        %v3548 = vunpack.c.l.b16 %v3452
        %v3549 = vunpack.c.l.b16 %v3453
        %v3550 = vunpack.c.l.b16 %v3454
        %v3551 = vunpack.c.l.b16 %v3455
        %v3552 = vunpack.c.l.b16 %v3456
        %v3553 = vunpack.c.l.b16 %v3457
        %v3554 = vunpack.c.l.b16 %v3458
        %v3555 = vunpack.c.l.b16 %v3459
        %v3556 = vunpack.c.l.b16 %v3460
        %v3557 = vunpack.c.l.b16 %v3461
        %v3558 = vunpack.c.l.b16 %v3462
        %v3559 = vunpack.c.l.b16 %v3463
        %v3560 = vunpack.c.l.b16 %v3464
        %v3561 = vunpack.c.l.b16 %v3465
        %v3562 = vunpack.c.l.b16 %v3466
        %v3563 = vunpack.c.l.b16 %v3467
        %v3564 = vunpack.c.l.b16 %v3468
        %v3565 = vunpack.c.l.b16 %v3469
        %v3566 = vunpack.c.l.b16 %v3470
        %v3567 = vunpack.c.l.b16 %v3471
        %v3568 = vunpack.c.l.b16 %v3472
        %v3569 = vunpack.c.l.b16 %v3473
        %v3570 = vunpack.c.l.b16 %v3474
        %v3571 = vunpack.c.l.b16 %v3475
        %v3572 = vunpack.c.l.b16 %v3476
        %v3573 = vunpack.c.l.b16 %v3477
        %v3574 = vunpack.c.l.b16 %v3478
        %v3575 = vpack.c.b16 %v3528, %v3527
        %v3576 = vpack.c.b16 %v3530, %v3529
        %v3577 = vpack.c.b16 %v3532, %v3531
        %v3578 = vpack.c.b16 %v3534, %v3533
        %v3579 = vpack.c.b16 %v3536, %v3535
        %v3580 = vpack.c.b16 %v3538, %v3537
        %v3581 = vpack.c.b16 %v3540, %v3539
        %v3582 = vpack.c.b16 %v3542, %v3541
        %v3583 = vpack.c.b16 %v3544, %v3543
        %v3584 = vpack.c.b16 %v3546, %v3545
        %v3585 = vpack.c.b16 %v3548, %v3547
        %v3586 = vpack.c.b16 %v3550, %v3549
        %v3587 = vpack.c.b16 %v3552, %v3551
        %v3588 = vpack.c.b16 %v3554, %v3553
        %v3589 = vpack.c.b16 %v3556, %v3555
        %v3590 = vpack.c.b16 %v3558, %v3557
        %v3591 = vpack.c.b16 %v3560, %v3559
        %v3592 = vpack.c.b16 %v3562, %v3561
        %v3593 = vpack.c.b16 %v3564, %v3563
        %v3594 = vpack.c.b16 %v3566, %v3565
        %v3595 = vpack.c.b16 %v3568, %v3567
        %v3596 = vpack.c.b16 %v3570, %v3569
        %v3597 = vpack.c.b16 %v3572, %v3571
        %v3598 = vpack.c.b16 %v3574, %v3573
        %3623 = vmatpush.bf16.msra.mxu0 %v3582
        %3624 = vmatpush.bf16.msra.mxu0 %v3581
        %3625 = vmatpush.bf16.msra.mxu0 %v3580
        %3626 = vmatpush.bf16.msra.mxu0 %v3579
        %3627 = vmatpush.bf16.msra.mxu0 %v3578
        %3628 = vmatpush.bf16.msra.mxu0 %v3577
        %3629 = vmatpush.bf16.msra.mxu0 %v3576
        %3630 = vmatpush.bf16.msra.mxu0 %v3575
        %3631 = vmatmul.bf16.gmra.mxu0 %v2395
        %v3632 = vpop.f32.mrf.mxu0
        %v3633 = vadd.f32 0.0, %v3632
        %v3634 = vpop.f32.mrf.mxu0
        %v3635 = vadd.f32 0.0, %v3634
        %3636 = vmatmul.bf16.gmra.mxu0 %v2438
        %v3637 = vpop.f32.mrf.mxu0
        %v3638 = vadd.f32 0.0, %v3637
        %v3639 = vpop.f32.mrf.mxu0
        %v3640 = vadd.f32 0.0, %v3639
        %3641 = vmatmul.bf16.gmra.mxu0 %v2481
        %v3642 = vpop.f32.mrf.mxu0
        %v3643 = vadd.f32 0.0, %v3642
        %v3644 = vpop.f32.mrf.mxu0
        %v3645 = vadd.f32 0.0, %v3644
        %3646 = vmatmul.bf16.gmra.mxu0 %v2524
        %v3647 = vpop.f32.mrf.mxu0
        %v3648 = vadd.f32 0.0, %v3647
        %v3649 = vpop.f32.mrf.mxu0
        %v3650 = vadd.f32 0.0, %v3649
        %3651 = vmatmul.bf16.gmra.mxu0 %v2567
        %v3652 = vpop.f32.mrf.mxu0
        %v3653 = vadd.f32 0.0, %v3652
        %v3654 = vpop.f32.mrf.mxu0
        %v3655 = vadd.f32 0.0, %v3654
        %3656 = vmatmul.bf16.gmra.mxu0 %v2610
        %v3657 = vpop.f32.mrf.mxu0
        %v3658 = vadd.f32 0.0, %v3657
        %v3659 = vpop.f32.mrf.mxu0
        %v3660 = vadd.f32 0.0, %v3659
        %3661 = vmatmul.bf16.gmra.mxu0 %v2725
        %v3662 = vpop.f32.mrf.mxu0
        %v3663 = vadd.f32 0.0, %v3662
        %v3664 = vpop.f32.mrf.mxu0
        %v3665 = vadd.f32 0.0, %v3664
        %3666 = vmatmul.bf16.gmra.mxu0 %v3401
        %v3667 = vpop.f32.mrf.mxu0
        %v3668 = vadd.f32 0.0, %v3667
        %v3669 = vpop.f32.mrf.mxu0
        %v3670 = vadd.f32 0.0, %v3669
        %3671 = vdwg.mxu0
        %3672 = vmatpush.bf16.msra.mxu0 %v3590
        %3673 = vmatpush.bf16.msra.mxu0 %v3589
        %3674 = vmatpush.bf16.msra.mxu0 %v3588
        %3675 = vmatpush.bf16.msra.mxu0 %v3587
        %3676 = vmatpush.bf16.msra.mxu0 %v3586
        %3677 = vmatpush.bf16.msra.mxu0 %v3585
        %3678 = vmatpush.bf16.msra.mxu0 %v3584
        %3679 = vmatpush.bf16.msra.mxu0 %v3583
        %3680 = vmatmul.bf16.gmra.mxu0 %v2404
        %v3681 = vpop.f32.mrf.mxu0
        %v3682 = vadd.f32 %v3633, %v3681
        %v3683 = vpop.f32.mrf.mxu0
        %v3684 = vadd.f32 %v3635, %v3683
        %3685 = vmatmul.bf16.gmra.mxu0 %v2447
        %v3686 = vpop.f32.mrf.mxu0
        %v3687 = vadd.f32 %v3638, %v3686
        %v3688 = vpop.f32.mrf.mxu0
        %v3689 = vadd.f32 %v3640, %v3688
        %3690 = vmatmul.bf16.gmra.mxu0 %v2490
        %v3691 = vpop.f32.mrf.mxu0
        %v3692 = vadd.f32 %v3643, %v3691
        %v3693 = vpop.f32.mrf.mxu0
        %v3694 = vadd.f32 %v3645, %v3693
        %3695 = vmatmul.bf16.gmra.mxu0 %v2533
        %v3696 = vpop.f32.mrf.mxu0
        %v3697 = vadd.f32 %v3648, %v3696
        %v3698 = vpop.f32.mrf.mxu0
        %v3699 = vadd.f32 %v3650, %v3698
        %3700 = vmatmul.bf16.gmra.mxu0 %v2576
        %v3701 = vpop.f32.mrf.mxu0
        %v3702 = vadd.f32 %v3653, %v3701
        %v3703 = vpop.f32.mrf.mxu0
        %v3704 = vadd.f32 %v3655, %v3703
        %3705 = vmatmul.bf16.gmra.mxu0 %v2619
        %v3706 = vpop.f32.mrf.mxu0
        %v3707 = vadd.f32 %v3658, %v3706
        %v3708 = vpop.f32.mrf.mxu0
        %v3709 = vadd.f32 %v3660, %v3708
        %3710 = vmatmul.bf16.gmra.mxu0 %v2734
        %v3711 = vpop.f32.mrf.mxu0
        %v3712 = vadd.f32 %v3663, %v3711
        %v3713 = vpop.f32.mrf.mxu0
        %v3714 = vadd.f32 %v3665, %v3713
        %3715 = vmatmul.bf16.gmra.mxu0 %v3410
        %v3716 = vpop.f32.mrf.mxu0
        %v3717 = vadd.f32 %v3668, %v3716
        %v3718 = vpop.f32.mrf.mxu0
        %v3719 = vadd.f32 %v3670, %v3718
        %3720 = vdwg.mxu0
        %3721 = vmatpush.bf16.msra.mxu0 %v3598
        %3722 = vmatpush.bf16.msra.mxu0 %v3597
        %3723 = vmatpush.bf16.msra.mxu0 %v3596
        %3724 = vmatpush.bf16.msra.mxu0 %v3595
        %3725 = vmatpush.bf16.msra.mxu0 %v3594
        %3726 = vmatpush.bf16.msra.mxu0 %v3593
        %3727 = vmatpush.bf16.msra.mxu0 %v3592
        %3728 = vmatpush.bf16.msra.mxu0 %v3591
        %3729 = vmatmul.bf16.gmra.mxu0 %v2421
        %v3730 = vpop.f32.mrf.mxu0
        %v3731 = vadd.f32 %v3682, %v3730
        %v3732 = vpop.f32.mrf.mxu0
        %v3733 = vadd.f32 %v3684, %v3732
        %3734 = vmatmul.bf16.gmra.mxu0 %v2464
        %v3735 = vpop.f32.mrf.mxu0
        %v3736 = vadd.f32 %v3687, %v3735
        %v3737 = vpop.f32.mrf.mxu0
        %v3738 = vadd.f32 %v3689, %v3737
        %3739 = vmatmul.bf16.gmra.mxu0 %v2507
        %v3740 = vpop.f32.mrf.mxu0
        %v3741 = vadd.f32 %v3692, %v3740
        %v3742 = vpop.f32.mrf.mxu0
        %v3743 = vadd.f32 %v3694, %v3742
        %3744 = vmatmul.bf16.gmra.mxu0 %v2550
        %v3745 = vpop.f32.mrf.mxu0
        %v3746 = vadd.f32 %v3697, %v3745
        %v3747 = vpop.f32.mrf.mxu0
        %v3748 = vadd.f32 %v3699, %v3747
        %3749 = vmatmul.bf16.gmra.mxu0 %v2593
        %v3750 = vpop.f32.mrf.mxu0
        %v3751 = vadd.f32 %v3702, %v3750
        %v3752 = vpop.f32.mrf.mxu0
        %v3753 = vadd.f32 %v3704, %v3752
        %3754 = vmatmul.bf16.gmra.mxu0 %v2636
        %v3755 = vpop.f32.mrf.mxu0
        %v3756 = vadd.f32 %v3707, %v3755
        %v3757 = vpop.f32.mrf.mxu0
        %v3758 = vadd.f32 %v3709, %v3757
        %3759 = vmatmul.bf16.gmra.mxu0 %v2751
        %v3760 = vpop.f32.mrf.mxu0
        %v3761 = vadd.f32 %v3712, %v3760
        %v3762 = vpop.f32.mrf.mxu0
        %v3763 = vadd.f32 %v3714, %v3762
        %3764 = vmatmul.bf16.gmra.mxu0 %v3427
        %v3765 = vpop.f32.mrf.mxu0
        %v3766 = vadd.f32 %v3717, %v3765
        %v3767 = vpop.f32.mrf.mxu0
        %v3768 = vadd.f32 %v3719, %v3767
        %3769 = vdwg.mxu0
        %v3770 = vadd.f32 %v3346, %v3731
        %v3771 = vadd.f32 %v3348, %v3733
        %v3772 = vadd.f32 %v3351, %v3736
        %v3773 = vadd.f32 %v3353, %v3738
        %v3774 = vadd.f32 %v3356, %v3741
        %v3775 = vadd.f32 %v3358, %v3743
        %v3776 = vadd.f32 %v3361, %v3746
        %v3777 = vadd.f32 %v3363, %v3748
        %v3778 = vadd.f32 %v3366, %v3751
        %v3779 = vadd.f32 %v3368, %v3753
        %v3780 = vadd.f32 %v3371, %v3756
        %v3781 = vadd.f32 %v3373, %v3758
        %v3782 = vadd.f32 %v3376, %v3761
        %v3783 = vadd.f32 %v3378, %v3763
        %v3784 = vadd.f32 %v3381, %v3766
        %v3785 = vadd.f32 %v3383, %v3768
        %v3786 = vld [vmem:[%s4] sm:$0x1]
        %v3788 = vperm.slane %v3786, 0
        %v3790 = vadd.f32 %v3770, %v3788
        %v3791 = vadd.f32 %v3771, %v3788
        %v3792 = vadd.f32 %v3772, %v3788
        %v3793 = vadd.f32 %v3773, %v3788
        %v3794 = vadd.f32 %v3774, %v3788
        %v3795 = vadd.f32 %v3775, %v3788
        %v3796 = vadd.f32 %v3776, %v3788
        %v3797 = vadd.f32 %v3777, %v3788
        %v3798 = vadd.f32 %v3778, %v3788
        %v3799 = vadd.f32 %v3779, %v3788
        %v3800 = vadd.f32 %v3780, %v3788
        %v3801 = vadd.f32 %v3781, %v3788
        %v3802 = vadd.f32 %v3782, %v3788
        %v3803 = vadd.f32 %v3783, %v3788
        %v3804 = vadd.f32 %v3784, %v3788
        %v3805 = vadd.f32 %v3785, %v3788
        %v3806 = vmax.f32 %v3790, 0.0
        %v3807 = vmax.f32 %v3791, 0.0
        %v3808 = vmax.f32 %v3792, 0.0
        %v3809 = vmax.f32 %v3793, 0.0
        %v3810 = vmax.f32 %v3794, 0.0
        %v3811 = vmax.f32 %v3795, 0.0
        %v3812 = vmax.f32 %v3796, 0.0
        %v3813 = vmax.f32 %v3797, 0.0
        %v3814 = vmax.f32 %v3798, 0.0
        %v3815 = vmax.f32 %v3799, 0.0
        %v3816 = vmax.f32 %v3800, 0.0
        %v3817 = vmax.f32 %v3801, 0.0
        %v3818 = vmax.f32 %v3802, 0.0
        %v3819 = vmax.f32 %v3803, 0.0
        %v3820 = vmax.f32 %v3804, 0.0
        %v3821 = vmax.f32 %v3805, 0.0
        %3822 = vst [vmem:[%s258] sm:$0xff] %v3806
        %3823 = vst [vmem:[%s258 + $0x8] sm:$0xff] %v3807
        %3824 = vst [vmem:[%s258 + $0x10] sm:$0xff] %v3808
        %3825 = vst [vmem:[%s258 + $0x18] sm:$0xff] %v3809
        %3826 = vst [vmem:[%s258 + $0x20] sm:$0xff] %v3810
        %3827 = vst [vmem:[%s258 + $0x28] sm:$0xff] %v3811
        %3828 = vst [vmem:[%s258 + $0x30] sm:$0xff] %v3812
        %3829 = vst [vmem:[%s258 + $0x38] sm:$0xff] %v3813
        %3830 = vst [vmem:[%s258 + $0x40] sm:$0xff] %v3814
        %3831 = vst [vmem:[%s258 + $0x48] sm:$0xff] %v3815
        %3832 = vst [vmem:[%s258 + $0x50] sm:$0xff] %v3816
        %3833 = vst [vmem:[%s258 + $0x58] sm:$0xff] %v3817
        %3834 = vst [vmem:[%s258 + $0x60] sm:$0xff] %v3818
        %3835 = vst [vmem:[%s258 + $0x68] sm:$0xff] %v3819
        %3836 = vst [vmem:[%s258 + $0x70] sm:$0xff] %v3820
        %3837 = vst [vmem:[%s258 + $0x78] sm:$0xff] %v3821
        %s3838 = sand.u32 %s154, 1
        %s3839 = scalar_lea.sflag [#allocation5], %s3838
        %s3840 = sand.u32 %s154, 1
        %s3841 = smul.addr %s3840, 128
        %s3842 = scalar_lea.vmem [#allocation6], %s3841
        // Predicated region
        $region45: #{tpu_custom_call.1} parent=39 // pred_check
          %p3843 = pneg %p164
        $region46: #{tpu_custom_call.1} parent=39 // pred_check_branch
          %3845 = sbr.rel (%p3843) target = $region48
        $region47: #{tpu_custom_call.1} parent=39 // pred_region
          %s3846 = smul.u32 8, %s25
          %3848 = vsyncadd %s3839, 0
          %s3849 = smul.addr %s3846, 2
          %s3850 = smul.addr %s24, 32
          %s3851 = sadd.s32 %s3849, %s3850
          %s3852 = smul.addr %s3851, 8
          %s3853 = scalar_lea.hbm %s5, %s3852
          %s3854 = sshll.u32 %s3842, 4
          %s3855 = int_to_ptr.vmem [resolvable:$true] %s3854
          %s3856 = sshll.u32 %s3853, 4
          %s3857 = int_to_ptr.hbm [resolvable:$true] %s3856
          %3862 = dma.vmem_to_hbm [thread:$0]  %s3855, 2048, %s3857, %s3839, 128, 128, 8
        $region48: #{tpu_custom_call.1} parent=39 // pred_fallthru
          _
      $region40: #{tpu_custom_call.1} parent=5 // pred_fallthru
        _
      %p3863 = scmp.le.s32.totalorder 2, %s15
      // Predicated region
      $region49: #{tpu_custom_call.1} parent=5 // pred_check
        %p3864 = pneg %p3863
      $region50: #{tpu_custom_call.1} parent=5 // pred_check_branch
        %3866 = sbr.rel (%p3864) target = $region52
      $region51: #{tpu_custom_call.1} parent=5 // pred_region
        %s3867 = ssub.s32 %s15, 2
        // Predicated region
        $region53: #{tpu_custom_call.1} parent=51 // pred_check
          %p3868 = pneg %p170
        $region54: #{tpu_custom_call.1} parent=51 // pred_check_branch
          %3870 = sbr.rel (%p3868) target = $region56
        $region55: #{tpu_custom_call.1} parent=51 // pred_region
          %s3871 = sand.u32 %s155, 1
          %s3872 = scalar_lea.sflag [#allocation5], %s3871
          %s3873 = sand.u32 %s155, 1
          %s3874 = smul.addr %s3873, 128
          %s3875 = scalar_lea.vmem [#allocation6], %s3874
          %3877 = dma.done %s3872, 2048
        $region56: #{tpu_custom_call.1} parent=51 // pred_fallthru
          _
      $region52: #{tpu_custom_call.1} parent=5 // pred_fallthru
        _
    $region6: #{tpu_custom_call.1} parent=1 // loop_footer
      %s19 = sadd.s32 1, %s15
    $region7: #{tpu_custom_call.1} parent=1 // loop_footer_branch
      %14 = sbr.rel target = $region3
    $region8: #{tpu_custom_call.1} parent=1 // loop_exit
      _
    %3878 = vsyncpa [#allocation4], 1
    %s3879 = scalar_lea.sflag [#allocation4], 1
    %3880 = vsyncpa %s3879, 1
    %3881 = vsyncpa [#allocation5], 1
    %s3882 = scalar_lea.sflag [#allocation5], 1
    %3883 = vsyncpa %s3882, 1

</llo_original>
